<compile_context>
chip_gen: v6e
topology: v6e:2x2x1
jax: 0.10.0
libtpu: 0.0.40
codegen_flags: <defaults>
</compile_context>

<pallas_src>
import jax
import jax.numpy as jnp
from jax.experimental import pallas as pl
from jax.experimental.pallas import tpu as pltpu


# ------------------------------ fused forward kernel ---------------------------

def _make_kernel(*, T, B_chunk, H, L):
    LH = L * H            # packed state width (all layers' h / c side by side)
    G = 4 * LH            # packed gate width, gate-grouped: [i_0..i_L | f | g | o]
    T_ext = T + L - 1     # wavefront start-up + drain ticks

    def kernel(x_ref, w_in_ref, w_fused_ref, b_ref, w_head_ref, b_head_ref,
               out0_ref, hn_ref, gx_scr, seq_scr):
        # ---- hoisted input projection + all-layer biases (pre-scaled columns) ----
        # x_ref: (T_ext*B_chunk, D); rows for t >= T are zero -> gx row == biases.
        gx_scr[...] = jnp.dot(x_ref[...], w_in_ref[...],
                              preferred_element_type=jnp.float32) + b_ref[...]

        # Activation fix-up: non-g lanes were pre-scaled by 0.5 in the weights, so a
        # single tanh gives tanh(x/2) there; sigmoid(x) = 0.5*tanh(x/2) + 0.5.
        lane = jax.lax.broadcasted_iota(jnp.int32, (1, G), 1)
        is_g = jnp.logical_and(lane >= 2 * LH, lane < 3 * LH)
        post_a = jnp.where(is_g, 1.0, 0.5).astype(jnp.float32)   # (1, G)
        post_b = jnp.where(is_g, 0.0, 0.5).astype(jnp.float32)   # (1, G)

        h_all = jnp.zeros((B_chunk, LH), jnp.float32)   # h0 == zeros (self.h0)
        c_all = jnp.zeros((B_chunk, LH), jnp.float32)   # c0 == zeros (self.c0)

        # ---- wavefront: at tick s, layer l processes time step (s - l) ----
        for s in range(T_ext):
            r0 = s * B_chunk
            gx = gx_scr[r0:r0 + B_chunk, :]                       # (B, G)
            if s == 0:
                z = gx                                            # h_all == 0
            else:
                # ONE fused matmul per tick: recurrent terms of ALL layers plus the
                # input projection of layers >= 1 (block upper-bidiagonal RHS).
                z = gx + jnp.dot(h_all, w_fused_ref[...],
                                 preferred_element_type=jnp.float32)

            th = jnp.tanh(z)                  # single EUP pass over every gate
            act = th * post_a + post_b        # sigmoid fix-up on i/f/o lanes (VPU)

            i_a = act[:, 0 * LH:1 * LH]
            f_a = act[:, 1 * LH:2 * LH]
            g_a = act[:, 2 * LH:3 * LH]
            o_a = act[:, 3 * LH:4 * LH]
            c_new = f_a * c_all + i_a * g_a
            h_new = o_a * jnp.tanh(c_new)     # one fused tanh(c) for all layers

            # Commit only the layers that are active at this tick (static range).
            lo = max(0, s - T + 1)
            hi = min(L - 1, s)
            if lo == 0 and hi == L - 1:
                c_all, h_all = c_new, h_new
            else:                              # start-up / drain tick: masked commit
                lv = jax.lax.broadcasted_iota(jnp.int32, (1, LH), 1)
                m = jnp.logical_and(lv >= lo * H, lv < (hi + 1) * H)
                c_all = jnp.where(m, c_new, c_all)
                h_all = jnp.where(m, h_new, h_all)

            # Stream the last layer's h for this tick to scratch (no live lists).
            t_last = s - (L - 1)
            if 0 <= t_last < T:
                seq_scr[t_last * B_chunk:(t_last + 1) * B_chunk, :] = \
                    h_new[:, (L - 1) * H:LH]

        # ---- h_n: each layer's final h already sits in its lane block of h_all ----
        #      (matches h_n.permute(1,0,2).contiguous().view(50, -1))
        hn_ref[...] = h_all

        # ---- deferred head epilogue: ReLU(h_seq @ w_head + b), batch-major (B,T) ----
        w_head = w_head_ref[...]               # (1, H)
        cols = []
        for t in range(T):
            hseq_t = seq_scr[t * B_chunk:(t + 1) * B_chunk, :]
            cols.append(jnp.sum(hseq_t * w_head, axis=-1, keepdims=True))
        y = jnp.concatenate(cols, axis=1) + b_head_ref[...]       # (B_chunk, T)
        out0_ref[...] = jnp.maximum(y, 0.0)

    return kernel


# ------------------------------ weight packing -----------------------------------

def _pack_params(params, D, H, L):
    """Gate-grouped, pre-scaled packed weights.

    Column order: [i_layer0..i_layerL-1 | f... | g... | o...], each H wide.
    w_fused rows are blocked by layer state:  block (l, l) = W_hh_l,
    block (l-1, l) = W_ih_l  (input of layer l is layer l-1's output at the same
    wavefront tick).  Non-g columns are multiplied by 0.5 (exact in f32) so the
    kernel needs only one tanh per tick.
    """
    LH = L * H
    G = 4 * LH
    w_fused = jnp.zeros((LH, G), jnp.float32)
    w_in = jnp.zeros((D, G), jnp.float32)
    b_pk = jnp.zeros((1, G), jnp.float32)
    for m, (w_ih, w_hh, bias) in enumerate(params["lstm"]):
        for k in range(4):                                  # gate order: i, f, g, o
            cs = slice(k * LH + m * H, k * LH + (m + 1) * H)
            w_fused = w_fused.at[m * H:(m + 1) * H, cs].set(w_hh[:, k * H:(k + 1) * H])
            if m == 0:
                w_in = w_in.at[:, cs].set(w_ih[:, k * H:(k + 1) * H])
            else:
                w_fused = w_fused.at[(m - 1) * H:m * H, cs].set(w_ih[:, k * H:(k + 1) * H])
            b_pk = b_pk.at[:, cs].set(bias[:, k * H:(k + 1) * H])
    col = jnp.arange(G)
    is_g = (col >= 2 * LH) & (col < 3 * LH)
    pre = jnp.where(is_g, 1.0, 0.5).astype(jnp.float32)      # 0.5 on i/f/o columns
    return w_fused * pre, w_in * pre, b_pk * pre


# ------------------------------- forward wrapper ---------------------------------

def long_rnn_forward(params, x):
    """x: (B, T, d_in) batch-first.  Returns (out[:, :, 0], h_n)."""
    B, T, D = x.shape
    H = params["lstm"][0][1].shape[0]
    L = len(params["lstm"])
    LH, G = L * H, 4 * L * H

    NCORES = 2                                    # v7x: 2 TensorCores; cheap elsewhere
    B_chunk = -(-B // (8 * NCORES)) * 8           # per-core rows, sublane-aligned (32)
    B_pad = NCORES * B_chunk                      # 64
    T_ext = T + L - 1

    w_fused, w_in, b_pk = _pack_params(params, D, H, L)

    # batch-first -> time-major; pad batch to B_pad and time by L-1 zero steps
    xt = jnp.transpose(x, (1, 0, 2))
    xt = jnp.pad(xt, ((0, L - 1), (0, B_pad - B), (0, 0)))
    # Regroup per core so each program sees a flat (T_ext*B_chunk, D) slab
    # (no in-kernel reshapes needed).
    x_cores = xt.reshape(T_ext, NCORES, B_chunk, D).transpose(1, 0, 2, 3) \
                .reshape(NCORES, T_ext * B_chunk, D)

    kernel = _make_kernel(T=T, B_chunk=B_chunk, H=H, L=L)

    # Per-core VMEM budget: scratch + double-buffered inputs/outputs (review item 8).
    vmem_bytes = 4 * (T_ext * B_chunk * G + T * B_chunk * H
                      + 2 * (T_ext * B_chunk * D + LH * G + D * G + G + H + 1)
                      + 2 * (B_chunk * T + B_chunk * LH))
    assert vmem_bytes < 16 * 1024 * 1024, vmem_bytes   # ~0.5 MiB here

    out0_p, hn_p = pl.pallas_call(
        kernel,
        grid=(NCORES,),
        in_specs=[
            pl.BlockSpec((None, T_ext * B_chunk, D), lambda c: (c, 0, 0)),  # x (sharded)
            pl.BlockSpec((D, G), lambda c: (0, 0)),      # packed input projection
            pl.BlockSpec((LH, G), lambda c: (0, 0)),     # fused recurrent weight
            pl.BlockSpec((1, G), lambda c: (0, 0)),      # packed biases
            pl.BlockSpec((1, H), lambda c: (0, 0)),      # head weight
            pl.BlockSpec((1, 1), lambda c: (0, 0)),      # head bias
        ],
        out_specs=(
            pl.BlockSpec((B_chunk, T), lambda c: (c, 0)),
            pl.BlockSpec((B_chunk, LH), lambda c: (c, 0)),
        ),
        out_shape=(jax.ShapeDtypeStruct((B_pad, T), jnp.float32),
                   jax.ShapeDtypeStruct((B_pad, LH), jnp.float32)),
        scratch_shapes=[
            pltpu.VMEM((T_ext * B_chunk, G), jnp.float32),   # hoisted gate projection
            pltpu.VMEM((T * B_chunk, H), jnp.float32),       # last layer's h sequence
        ],
        compiler_params=pltpu.CompilerParams(
            dimension_semantics=("parallel",)),
    )(x_cores, w_in, w_fused, b_pk, params["head_w"], params["head_b"])

    # TODO(synk): pad_packed_sequence is the identity for equal-length sequences;
    # variable-length PackedSequence handling is not modeled.
    return out0_p[:B], hn_p[:B]


# ------------------------------ parameter setup ---------------------------------

def init_params(key, d_in, d_hidden, num_layers):
    """Deterministic init mimicking PyTorch's U(-1/sqrt(H), 1/sqrt(H))."""
    k = 1.0 / jnp.sqrt(jnp.float32(d_hidden))
    params = {"lstm": []}
    for layer in range(num_layers):
        in_dim = d_in if layer == 0 else d_hidden
        key, k1, k2, k3, k4 = jax.random.split(key, 5)
        # Stored transposed relative to PyTorch: (in, 4H) and (H, 4H); biases combined.
        w_ih = jax.random.uniform(k1, (in_dim, 4 * d_hidden), jnp.float32, -k, k)
        w_hh = jax.random.uniform(k2, (d_hidden, 4 * d_hidden), jnp.float32, -k, k)
        b_ih = jax.random.uniform(k3, (4 * d_hidden,), jnp.float32, -k, k)
        b_hh = jax.random.uniform(k4, (4 * d_hidden,), jnp.float32, -k, k)
        params["lstm"].append((w_ih, w_hh, (b_ih + b_hh)[None, :]))
    key, k5, k6 = jax.random.split(key, 3)
    params["head_w"] = jax.random.uniform(k5, (1, d_hidden), jnp.float32, -k, k)
    params["head_b"] = jax.random.uniform(k6, (1, 1), jnp.float32, -k, k)
    return params


# ------------------------------ pure-JAX reference -------------------------------

def _ref_forward(params, x):
    xt = jnp.transpose(x, (1, 0, 2))
    inp = xt
    h_finals = []
    for (w_ih, w_hh, bias) in params["lstm"]:
        B = inp.shape[1]
        H = w_hh.shape[0]

        def step(carry, x_t, w_ih=w_ih, w_hh=w_hh, bias=bias, H=H):
            h, c = carry
            gates = x_t @ w_ih + h @ w_hh + bias[0]
            i = jax.nn.sigmoid(gates[:, :H])
            f = jax.nn.sigmoid(gates[:, H:2 * H])
            g = jnp.tanh(gates[:, 2 * H:3 * H])
            o = jax.nn.sigmoid(gates[:, 3 * H:])
            c = f * c + i * g
            h = o * jnp.tanh(c)
            return (h, c), h

        (h, _), out = jax.lax.scan(step, (jnp.zeros((B, H)), jnp.zeros((B, H))), inp)
        h_finals.append(h)
        inp = out
    h_n = jnp.transpose(jnp.stack(h_finals, 0), (1, 0, 2)).reshape(50, -1)
    y = jnp.maximum(
        jnp.einsum("tbh,oh->tbo", inp, params["head_w"])[:, :, 0]
        + params["head_b"][0, 0], 0.0)
    return jnp.transpose(y, (1, 0)), h_n


# ----------------------------------- main -----------------------------------------

if __name__ == "__main__":
    # The module's `view(50, -1)` hardcodes batch_size = 50.
    batch_size, seq_len, d_in, d_hidden, num_layers = 50, 8, 4, 32, 2

    key = jax.random.PRNGKey(0)
    key, pkey, xkey = jax.random.split(key, 3)
    params = init_params(pkey, d_in, d_hidden, num_layers)
    x = jax.random.normal(xkey, (batch_size, seq_len, d_in), jnp.float32)

    fwd = jax.jit(long_rnn_forward)
    out0, h_n = jax.block_until_ready(fwd(params, x))
    assert out0.shape == (batch_size, seq_len)
    assert h_n.shape == (50, num_layers * d_hidden)

    ref_out0, ref_h_n = _ref_forward(params, x)
    assert jnp.allclose(out0, ref_out0, rtol=1e-3, atol=1e-3), \
        float(jnp.max(jnp.abs(out0 - ref_out0)))
    assert jnp.allclose(h_n, ref_h_n, rtol=1e-3, atol=1e-3), \
        float(jnp.max(jnp.abs(h_n - ref_h_n)))

    print("KERNEL_OK")
</pallas_src>

<mosaic_0001>
module attributes {stable_mosaic.version = 11 : i64} {
  func.func @kernel(%arg0: i32, %arg1: memref<1x288x4xf32, #tpu.memory_space<vmem>>, %arg2: memref<4x256xf32, #tpu.memory_space<vmem>>, %arg3: memref<64x256xf32, #tpu.memory_space<vmem>>, %arg4: memref<1x256xf32, #tpu.memory_space<vmem>>, %arg5: memref<1x32xf32, #tpu.memory_space<vmem>>, %arg6: memref<1x1xf32, #tpu.memory_space<vmem>>, %arg7: memref<32x8xf32, #tpu.memory_space<vmem>>, %arg8: memref<32x64xf32, #tpu.memory_space<vmem>>, %arg9: memref<288x256xf32, #tpu.memory_space<vmem>>, %arg10: memref<256x32xf32, #tpu.memory_space<vmem>>) attributes {dimension_semantics = [#tpu.dimension_semantics<parallel>], iteration_bounds = array<i64: 2>, scalar_prefetch = 0 : i64, scratch_operands = 2 : i64, tpu.core_type = #tpu.core_type<tc>, window_params = [{transform_indices = @transform_0, window_bounds = array<i64: 1, 288, 4>}, {pipeline_mode = #tpu.pipeline_mode<synchronous>, transform_indices = @transform_1, window_bounds = array<i64: 4, 256>}, {pipeline_mode = #tpu.pipeline_mode<synchronous>, transform_indices = @transform_2, window_bounds = array<i64: 64, 256>}, {pipeline_mode = #tpu.pipeline_mode<synchronous>, transform_indices = @transform_3, window_bounds = array<i64: 1, 256>}, {pipeline_mode = #tpu.pipeline_mode<synchronous>, transform_indices = @transform_4, window_bounds = array<i64: 1, 32>}, {pipeline_mode = #tpu.pipeline_mode<synchronous>, transform_indices = @transform_5, window_bounds = array<i64: 1, 1>}, {transform_indices = @transform_6, window_bounds = array<i64: 32, 8>}, {transform_indices = @transform_7, window_bounds = array<i64: 32, 64>}]} {
    %c0 = arith.constant 0 : index
    %c0_0 = arith.constant 0 : index
    %c0_1 = arith.constant 0 : index
    %0 = vector.load %arg1[%c0, %c0_0, %c0_1] : memref<1x288x4xf32, #tpu.memory_space<vmem>>, vector<1x288x4xf32>
    %1 = vector.shape_cast %0 : vector<1x288x4xf32> to vector<288x4xf32>
    %c0_2 = arith.constant 0 : index
    %c0_3 = arith.constant 0 : index
    %2 = vector.load %arg2[%c0_2, %c0_3] : memref<4x256xf32, #tpu.memory_space<vmem>>, vector<4x256xf32>
    %cst = arith.constant dense<0.000000e+00> : vector<288x256xf32>
    %3 = tpu.matmul %1, %2, %cst {dimension_numbers = #tpu.dot_dimension_numbers<[1], [0], [0], [1], [0, 0, 1, 1], [], []>} : vector<288x4xf32>, vector<4x256xf32>, vector<288x256xf32> -> vector<288x256xf32>
    %c0_4 = arith.constant 0 : index
    %c0_5 = arith.constant 0 : index
    %4 = vector.load %arg4[%c0_4, %c0_5] : memref<1x256xf32, #tpu.memory_space<vmem>>, vector<1x256xf32>
    %5 = vector.broadcast %4 : vector<1x256xf32> to vector<288x256xf32>
    %6 = arith.addf %3, %5 : vector<288x256xf32>
    %c0_6 = arith.constant 0 : index
    %c0_7 = arith.constant 0 : index
    %7 = vector.load %arg9[%c0_6, %c0_7] : memref<288x256xf32, #tpu.memory_space<vmem>>, vector<288x256xf32>
    tpu.vector_store %arg9[%c0_6, %c0_7], %6 {strides = array<i32>} : memref<288x256xf32, #tpu.memory_space<vmem>>, vector<288x256xf32>,
    %8 = tpu.iota {dimensions = array<i32: 1>} : vector<1x256xi32>
    %c128_i32 = arith.constant 128 : i32
    %9 = vector.broadcast %c128_i32 : i32 to vector<1x256xi32>
    %10 = arith.cmpi sge, %8, %9 : vector<1x256xi32>
    %c192_i32 = arith.constant 192 : i32
    %11 = vector.broadcast %c192_i32 : i32 to vector<1x256xi32>
    %12 = arith.cmpi slt, %8, %11 : vector<1x256xi32>
    %13 = arith.andi %10, %12 : vector<1x256xi1>
    %cst_8 = arith.constant 1.000000e+00 : f32
    %cst_9 = arith.constant 5.000000e-01 : f32
    %14 = vector.broadcast %cst_8 : f32 to vector<1x256xf32>
    %15 = vector.broadcast %cst_9 : f32 to vector<1x256xf32>
    %16 = arith.select %13, %14, %15 : vector<1x256xi1>, vector<1x256xf32>
    %cst_10 = arith.constant 0.000000e+00 : f32
    %cst_11 = arith.constant 5.000000e-01 : f32
    %17 = vector.broadcast %cst_10 : f32 to vector<1x256xf32>
    %18 = vector.broadcast %cst_11 : f32 to vector<1x256xf32>
    %19 = arith.select %13, %17, %18 : vector<1x256xi1>, vector<1x256xf32>
    %cst_12 = arith.constant 0.000000e+00 : f32
    %20 = vector.broadcast %cst_12 : f32 to vector<32x64xf32>
    %cst_13 = arith.constant 0.000000e+00 : f32
    %21 = vector.broadcast %cst_13 : f32 to vector<32x64xf32>
    %c0_14 = arith.constant 0 : index
    %c0_15 = arith.constant 0 : index
    %22 = vector.load %arg9[%c0_14, %c0_15] : memref<288x256xf32, #tpu.memory_space<vmem>>, vector<32x256xf32>
    %23 = math.tanh %22 : vector<32x256xf32>
    %24 = vector.broadcast %16 : vector<1x256xf32> to vector<32x256xf32>
    %25 = arith.mulf %23, %24 : vector<32x256xf32>
    %26 = vector.broadcast %19 : vector<1x256xf32> to vector<32x256xf32>
    %27 = arith.addf %25, %26 : vector<32x256xf32>
    %28 = vector.extract_strided_slice %27 {offsets = [0, 0], sizes = [32, 64], strides = [1, 1]} : vector<32x256xf32> to vector<32x64xf32>
    %29 = vector.extract_strided_slice %27 {offsets = [0, 64], sizes = [32, 64], strides = [1, 1]} : vector<32x256xf32> to vector<32x64xf32>
    %30 = vector.extract_strided_slice %27 {offsets = [0, 128], sizes = [32, 64], strides = [1, 1]} : vector<32x256xf32> to vector<32x64xf32>
    %31 = vector.extract_strided_slice %27 {offsets = [0, 192], sizes = [32, 64], strides = [1, 1]} : vector<32x256xf32> to vector<32x64xf32>
    %32 = arith.mulf %29, %21 : vector<32x64xf32>
    %33 = arith.mulf %28, %30 : vector<32x64xf32>
    %34 = arith.addf %32, %33 : vector<32x64xf32>
    %35 = math.tanh %34 : vector<32x64xf32>
    %36 = arith.mulf %31, %35 : vector<32x64xf32>
    %37 = tpu.iota {dimensions = array<i32: 1>} : vector<1x64xi32>
    %c0_i32 = arith.constant 0 : i32
    %38 = vector.broadcast %c0_i32 : i32 to vector<1x64xi32>
    %39 = arith.cmpi sge, %37, %38 : vector<1x64xi32>
    %c32_i32 = arith.constant 32 : i32
    %40 = vector.broadcast %c32_i32 : i32 to vector<1x64xi32>
    %41 = arith.cmpi slt, %37, %40 : vector<1x64xi32>
    %42 = arith.andi %39, %41 : vector<1x64xi1>
    %43 = vector.shape_cast %42 : vector<1x64xi1> to vector<1x64xi1>
    %44 = vector.broadcast %43 : vector<1x64xi1> to vector<32x64xi1>
    %45 = arith.select %44, %34, %21 : vector<32x64xi1>, vector<32x64xf32>
    %46 = vector.shape_cast %42 : vector<1x64xi1> to vector<1x64xi1>
    %47 = vector.broadcast %46 : vector<1x64xi1> to vector<32x64xi1>
    %48 = arith.select %47, %36, %20 : vector<32x64xi1>, vector<32x64xf32>
    %c32 = arith.constant 32 : index
    %c0_16 = arith.constant 0 : index
    %49 = vector.load %arg9[%c32, %c0_16] : memref<288x256xf32, #tpu.memory_space<vmem>>, vector<32x256xf32>
    %c0_17 = arith.constant 0 : index
    %c0_18 = arith.constant 0 : index
    %50 = vector.load %arg3[%c0_17, %c0_18] : memref<64x256xf32, #tpu.memory_space<vmem>>, vector<64x256xf32>
    %cst_19 = arith.constant dense<0.000000e+00> : vector<32x256xf32>
    %51 = tpu.matmul %48, %50, %cst_19 {dimension_numbers = #tpu.dot_dimension_numbers<[1], [0], [0], [1], [0, 0, 1, 1], [], []>} : vector<32x64xf32>, vector<64x256xf32>, vector<32x256xf32> -> vector<32x256xf32>
    %52 = arith.addf %49, %51 : vector<32x256xf32>
    %53 = math.tanh %52 : vector<32x256xf32>
    %54 = vector.broadcast %16 : vector<1x256xf32> to vector<32x256xf32>
    %55 = arith.mulf %53, %54 : vector<32x256xf32>
    %56 = vector.broadcast %19 : vector<1x256xf32> to vector<32x256xf32>
    %57 = arith.addf %55, %56 : vector<32x256xf32>
    %58 = vector.extract_strided_slice %57 {offsets = [0, 0], sizes = [32, 64], strides = [1, 1]} : vector<32x256xf32> to vector<32x64xf32>
    %59 = vector.extract_strided_slice %57 {offsets = [0, 64], sizes = [32, 64], strides = [1, 1]} : vector<32x256xf32> to vector<32x64xf32>
    %60 = vector.extract_strided_slice %57 {offsets = [0, 128], sizes = [32, 64], strides = [1, 1]} : vector<32x256xf32> to vector<32x64xf32>
    %61 = vector.extract_strided_slice %57 {offsets = [0, 192], sizes = [32, 64], strides = [1, 1]} : vector<32x256xf32> to vector<32x64xf32>
    %62 = arith.mulf %59, %45 : vector<32x64xf32>
    %63 = arith.mulf %58, %60 : vector<32x64xf32>
    %64 = arith.addf %62, %63 : vector<32x64xf32>
    %65 = math.tanh %64 : vector<32x64xf32>
    %66 = arith.mulf %61, %65 : vector<32x64xf32>
    %67 = vector.extract_strided_slice %66 {offsets = [0, 32], sizes = [32, 32], strides = [1, 1]} : vector<32x64xf32> to vector<32x32xf32>
    %c0_20 = arith.constant 0 : index
    %c0_21 = arith.constant 0 : index
    %68 = vector.load %arg10[%c0_20, %c0_21] : memref<256x32xf32, #tpu.memory_space<vmem>>, vector<32x32xf32>
    tpu.vector_store %arg10[%c0_20, %c0_21], %67 {strides = array<i32>} : memref<256x32xf32, #tpu.memory_space<vmem>>, vector<32x32xf32>,
    %c64 = arith.constant 64 : index
    %c0_22 = arith.constant 0 : index
    %69 = vector.load %arg9[%c64, %c0_22] : memref<288x256xf32, #tpu.memory_space<vmem>>, vector<32x256xf32>
    %c0_23 = arith.constant 0 : index
    %c0_24 = arith.constant 0 : index
    %70 = vector.load %arg3[%c0_23, %c0_24] : memref<64x256xf32, #tpu.memory_space<vmem>>, vector<64x256xf32>
    %cst_25 = arith.constant dense<0.000000e+00> : vector<32x256xf32>
    %71 = tpu.matmul %66, %70, %cst_25 {dimension_numbers = #tpu.dot_dimension_numbers<[1], [0], [0], [1], [0, 0, 1, 1], [], []>} : vector<32x64xf32>, vector<64x256xf32>, vector<32x256xf32> -> vector<32x256xf32>
    %72 = arith.addf %69, %71 : vector<32x256xf32>
    %73 = math.tanh %72 : vector<32x256xf32>
    %74 = vector.broadcast %16 : vector<1x256xf32> to vector<32x256xf32>
    %75 = arith.mulf %73, %74 : vector<32x256xf32>
    %76 = vector.broadcast %19 : vector<1x256xf32> to vector<32x256xf32>
    %77 = arith.addf %75, %76 : vector<32x256xf32>
    %78 = vector.extract_strided_slice %77 {offsets = [0, 0], sizes = [32, 64], strides = [1, 1]} : vector<32x256xf32> to vector<32x64xf32>
    %79 = vector.extract_strided_slice %77 {offsets = [0, 64], sizes = [32, 64], strides = [1, 1]} : vector<32x256xf32> to vector<32x64xf32>
    %80 = vector.extract_strided_slice %77 {offsets = [0, 128], sizes = [32, 64], strides = [1, 1]} : vector<32x256xf32> to vector<32x64xf32>
    %81 = vector.extract_strided_slice %77 {offsets = [0, 192], sizes = [32, 64], strides = [1, 1]} : vector<32x256xf32> to vector<32x64xf32>
    %82 = arith.mulf %79, %64 : vector<32x64xf32>
    %83 = arith.mulf %78, %80 : vector<32x64xf32>
    %84 = arith.addf %82, %83 : vector<32x64xf32>
    %85 = math.tanh %84 : vector<32x64xf32>
    %86 = arith.mulf %81, %85 : vector<32x64xf32>
    %87 = vector.extract_strided_slice %86 {offsets = [0, 32], sizes = [32, 32], strides = [1, 1]} : vector<32x64xf32> to vector<32x32xf32>
    %c32_26 = arith.constant 32 : index
    %c0_27 = arith.constant 0 : index
    %88 = vector.load %arg10[%c32_26, %c0_27] : memref<256x32xf32, #tpu.memory_space<vmem>>, vector<32x32xf32>
    tpu.vector_store %arg10[%c32_26, %c0_27], %87 {strides = array<i32>} : memref<256x32xf32, #tpu.memory_space<vmem>>, vector<32x32xf32>,
    %c96 = arith.constant 96 : index
    %c0_28 = arith.constant 0 : index
    %89 = vector.load %arg9[%c96, %c0_28] : memref<288x256xf32, #tpu.memory_space<vmem>>, vector<32x256xf32>
    %c0_29 = arith.constant 0 : index
    %c0_30 = arith.constant 0 : index
    %90 = vector.load %arg3[%c0_29, %c0_30] : memref<64x256xf32, #tpu.memory_space<vmem>>, vector<64x256xf32>
    %cst_31 = arith.constant dense<0.000000e+00> : vector<32x256xf32>
    %91 = tpu.matmul %86, %90, %cst_31 {dimension_numbers = #tpu.dot_dimension_numbers<[1], [0], [0], [1], [0, 0, 1, 1], [], []>} : vector<32x64xf32>, vector<64x256xf32>, vector<32x256xf32> -> vector<32x256xf32>
    %92 = arith.addf %89, %91 : vector<32x256xf32>
    %93 = math.tanh %92 : vector<32x256xf32>
    %94 = vector.broadcast %16 : vector<1x256xf32> to vector<32x256xf32>
    %95 = arith.mulf %93, %94 : vector<32x256xf32>
    %96 = vector.broadcast %19 : vector<1x256xf32> to vector<32x256xf32>
    %97 = arith.addf %95, %96 : vector<32x256xf32>
    %98 = vector.extract_strided_slice %97 {offsets = [0, 0], sizes = [32, 64], strides = [1, 1]} : vector<32x256xf32> to vector<32x64xf32>
    %99 = vector.extract_strided_slice %97 {offsets = [0, 64], sizes = [32, 64], strides = [1, 1]} : vector<32x256xf32> to vector<32x64xf32>
    %100 = vector.extract_strided_slice %97 {offsets = [0, 128], sizes = [32, 64], strides = [1, 1]} : vector<32x256xf32> to vector<32x64xf32>
    %101 = vector.extract_strided_slice %97 {offsets = [0, 192], sizes = [32, 64], strides = [1, 1]} : vector<32x256xf32> to vector<32x64xf32>
    %102 = arith.mulf %99, %84 : vector<32x64xf32>
    %103 = arith.mulf %98, %100 : vector<32x64xf32>
    %104 = arith.addf %102, %103 : vector<32x64xf32>
    %105 = math.tanh %104 : vector<32x64xf32>
    %106 = arith.mulf %101, %105 : vector<32x64xf32>
    %107 = vector.extract_strided_slice %106 {offsets = [0, 32], sizes = [32, 32], strides = [1, 1]} : vector<32x64xf32> to vector<32x32xf32>
    %c64_32 = arith.constant 64 : index
    %c0_33 = arith.constant 0 : index
    %108 = vector.load %arg10[%c64_32, %c0_33] : memref<256x32xf32, #tpu.memory_space<vmem>>, vector<32x32xf32>
    tpu.vector_store %arg10[%c64_32, %c0_33], %107 {strides = array<i32>} : memref<256x32xf32, #tpu.memory_space<vmem>>, vector<32x32xf32>,
    %c128 = arith.constant 128 : index
    %c0_34 = arith.constant 0 : index
    %109 = vector.load %arg9[%c128, %c0_34] : memref<288x256xf32, #tpu.memory_space<vmem>>, vector<32x256xf32>
    %c0_35 = arith.constant 0 : index
    %c0_36 = arith.constant 0 : index
    %110 = vector.load %arg3[%c0_35, %c0_36] : memref<64x256xf32, #tpu.memory_space<vmem>>, vector<64x256xf32>
    %cst_37 = arith.constant dense<0.000000e+00> : vector<32x256xf32>
    %111 = tpu.matmul %106, %110, %cst_37 {dimension_numbers = #tpu.dot_dimension_numbers<[1], [0], [0], [1], [0, 0, 1, 1], [], []>} : vector<32x64xf32>, vector<64x256xf32>, vector<32x256xf32> -> vector<32x256xf32>
    %112 = arith.addf %109, %111 : vector<32x256xf32>
    %113 = math.tanh %112 : vector<32x256xf32>
    %114 = vector.broadcast %16 : vector<1x256xf32> to vector<32x256xf32>
    %115 = arith.mulf %113, %114 : vector<32x256xf32>
    %116 = vector.broadcast %19 : vector<1x256xf32> to vector<32x256xf32>
    %117 = arith.addf %115, %116 : vector<32x256xf32>
    %118 = vector.extract_strided_slice %117 {offsets = [0, 0], sizes = [32, 64], strides = [1, 1]} : vector<32x256xf32> to vector<32x64xf32>
    %119 = vector.extract_strided_slice %117 {offsets = [0, 64], sizes = [32, 64], strides = [1, 1]} : vector<32x256xf32> to vector<32x64xf32>
    %120 = vector.extract_strided_slice %117 {offsets = [0, 128], sizes = [32, 64], strides = [1, 1]} : vector<32x256xf32> to vector<32x64xf32>
    %121 = vector.extract_strided_slice %117 {offsets = [0, 192], sizes = [32, 64], strides = [1, 1]} : vector<32x256xf32> to vector<32x64xf32>
    %122 = arith.mulf %119, %104 : vector<32x64xf32>
    %123 = arith.mulf %118, %120 : vector<32x64xf32>
    %124 = arith.addf %122, %123 : vector<32x64xf32>
    %125 = math.tanh %124 : vector<32x64xf32>
    %126 = arith.mulf %121, %125 : vector<32x64xf32>
    %127 = vector.extract_strided_slice %126 {offsets = [0, 32], sizes = [32, 32], strides = [1, 1]} : vector<32x64xf32> to vector<32x32xf32>
    %c96_38 = arith.constant 96 : index
    %c0_39 = arith.constant 0 : index
    %128 = vector.load %arg10[%c96_38, %c0_39] : memref<256x32xf32, #tpu.memory_space<vmem>>, vector<32x32xf32>
    tpu.vector_store %arg10[%c96_38, %c0_39], %127 {strides = array<i32>} : memref<256x32xf32, #tpu.memory_space<vmem>>, vector<32x32xf32>,
    %c160 = arith.constant 160 : index
    %c0_40 = arith.constant 0 : index
    %129 = vector.load %arg9[%c160, %c0_40] : memref<288x256xf32, #tpu.memory_space<vmem>>, vector<32x256xf32>
    %c0_41 = arith.constant 0 : index
    %c0_42 = arith.constant 0 : index
    %130 = vector.load %arg3[%c0_41, %c0_42] : memref<64x256xf32, #tpu.memory_space<vmem>>, vector<64x256xf32>
    %cst_43 = arith.constant dense<0.000000e+00> : vector<32x256xf32>
    %131 = tpu.matmul %126, %130, %cst_43 {dimension_numbers = #tpu.dot_dimension_numbers<[1], [0], [0], [1], [0, 0, 1, 1], [], []>} : vector<32x64xf32>, vector<64x256xf32>, vector<32x256xf32> -> vector<32x256xf32>
    %132 = arith.addf %129, %131 : vector<32x256xf32>
    %133 = math.tanh %132 : vector<32x256xf32>
    %134 = vector.broadcast %16 : vector<1x256xf32> to vector<32x256xf32>
    %135 = arith.mulf %133, %134 : vector<32x256xf32>
    %136 = vector.broadcast %19 : vector<1x256xf32> to vector<32x256xf32>
    %137 = arith.addf %135, %136 : vector<32x256xf32>
    %138 = vector.extract_strided_slice %137 {offsets = [0, 0], sizes = [32, 64], strides = [1, 1]} : vector<32x256xf32> to vector<32x64xf32>
    %139 = vector.extract_strided_slice %137 {offsets = [0, 64], sizes = [32, 64], strides = [1, 1]} : vector<32x256xf32> to vector<32x64xf32>
    %140 = vector.extract_strided_slice %137 {offsets = [0, 128], sizes = [32, 64], strides = [1, 1]} : vector<32x256xf32> to vector<32x64xf32>
    %141 = vector.extract_strided_slice %137 {offsets = [0, 192], sizes = [32, 64], strides = [1, 1]} : vector<32x256xf32> to vector<32x64xf32>
    %142 = arith.mulf %139, %124 : vector<32x64xf32>
    %143 = arith.mulf %138, %140 : vector<32x64xf32>
    %144 = arith.addf %142, %143 : vector<32x64xf32>
    %145 = math.tanh %144 : vector<32x64xf32>
    %146 = arith.mulf %141, %145 : vector<32x64xf32>
    %147 = vector.extract_strided_slice %146 {offsets = [0, 32], sizes = [32, 32], strides = [1, 1]} : vector<32x64xf32> to vector<32x32xf32>
    %c128_44 = arith.constant 128 : index
    %c0_45 = arith.constant 0 : index
    %148 = vector.load %arg10[%c128_44, %c0_45] : memref<256x32xf32, #tpu.memory_space<vmem>>, vector<32x32xf32>
    tpu.vector_store %arg10[%c128_44, %c0_45], %147 {strides = array<i32>} : memref<256x32xf32, #tpu.memory_space<vmem>>, vector<32x32xf32>,
    %c192 = arith.constant 192 : index
    %c0_46 = arith.constant 0 : index
    %149 = vector.load %arg9[%c192, %c0_46] : memref<288x256xf32, #tpu.memory_space<vmem>>, vector<32x256xf32>
    %c0_47 = arith.constant 0 : index
    %c0_48 = arith.constant 0 : index
    %150 = vector.load %arg3[%c0_47, %c0_48] : memref<64x256xf32, #tpu.memory_space<vmem>>, vector<64x256xf32>
    %cst_49 = arith.constant dense<0.000000e+00> : vector<32x256xf32>
    %151 = tpu.matmul %146, %150, %cst_49 {dimension_numbers = #tpu.dot_dimension_numbers<[1], [0], [0], [1], [0, 0, 1, 1], [], []>} : vector<32x64xf32>, vector<64x256xf32>, vector<32x256xf32> -> vector<32x256xf32>
    %152 = arith.addf %149, %151 : vector<32x256xf32>
    %153 = math.tanh %152 : vector<32x256xf32>
    %154 = vector.broadcast %16 : vector<1x256xf32> to vector<32x256xf32>
    %155 = arith.mulf %153, %154 : vector<32x256xf32>
    %156 = vector.broadcast %19 : vector<1x256xf32> to vector<32x256xf32>
    %157 = arith.addf %155, %156 : vector<32x256xf32>
    %158 = vector.extract_strided_slice %157 {offsets = [0, 0], sizes = [32, 64], strides = [1, 1]} : vector<32x256xf32> to vector<32x64xf32>
    %159 = vector.extract_strided_slice %157 {offsets = [0, 64], sizes = [32, 64], strides = [1, 1]} : vector<32x256xf32> to vector<32x64xf32>
    %160 = vector.extract_strided_slice %157 {offsets = [0, 128], sizes = [32, 64], strides = [1, 1]} : vector<32x256xf32> to vector<32x64xf32>
    %161 = vector.extract_strided_slice %157 {offsets = [0, 192], sizes = [32, 64], strides = [1, 1]} : vector<32x256xf32> to vector<32x64xf32>
    %162 = arith.mulf %159, %144 : vector<32x64xf32>
    %163 = arith.mulf %158, %160 : vector<32x64xf32>
    %164 = arith.addf %162, %163 : vector<32x64xf32>
    %165 = math.tanh %164 : vector<32x64xf32>
    %166 = arith.mulf %161, %165 : vector<32x64xf32>
    %167 = vector.extract_strided_slice %166 {offsets = [0, 32], sizes = [32, 32], strides = [1, 1]} : vector<32x64xf32> to vector<32x32xf32>
    %c160_50 = arith.constant 160 : index
    %c0_51 = arith.constant 0 : index
    %168 = vector.load %arg10[%c160_50, %c0_51] : memref<256x32xf32, #tpu.memory_space<vmem>>, vector<32x32xf32>
    tpu.vector_store %arg10[%c160_50, %c0_51], %167 {strides = array<i32>} : memref<256x32xf32, #tpu.memory_space<vmem>>, vector<32x32xf32>,
    %c224 = arith.constant 224 : index
    %c0_52 = arith.constant 0 : index
    %169 = vector.load %arg9[%c224, %c0_52] : memref<288x256xf32, #tpu.memory_space<vmem>>, vector<32x256xf32>
    %c0_53 = arith.constant 0 : index
    %c0_54 = arith.constant 0 : index
    %170 = vector.load %arg3[%c0_53, %c0_54] : memref<64x256xf32, #tpu.memory_space<vmem>>, vector<64x256xf32>
    %cst_55 = arith.constant dense<0.000000e+00> : vector<32x256xf32>
    %171 = tpu.matmul %166, %170, %cst_55 {dimension_numbers = #tpu.dot_dimension_numbers<[1], [0], [0], [1], [0, 0, 1, 1], [], []>} : vector<32x64xf32>, vector<64x256xf32>, vector<32x256xf32> -> vector<32x256xf32>
    %172 = arith.addf %169, %171 : vector<32x256xf32>
    %173 = math.tanh %172 : vector<32x256xf32>
    %174 = vector.broadcast %16 : vector<1x256xf32> to vector<32x256xf32>
    %175 = arith.mulf %173, %174 : vector<32x256xf32>
    %176 = vector.broadcast %19 : vector<1x256xf32> to vector<32x256xf32>
    %177 = arith.addf %175, %176 : vector<32x256xf32>
    %178 = vector.extract_strided_slice %177 {offsets = [0, 0], sizes = [32, 64], strides = [1, 1]} : vector<32x256xf32> to vector<32x64xf32>
    %179 = vector.extract_strided_slice %177 {offsets = [0, 64], sizes = [32, 64], strides = [1, 1]} : vector<32x256xf32> to vector<32x64xf32>
    %180 = vector.extract_strided_slice %177 {offsets = [0, 128], sizes = [32, 64], strides = [1, 1]} : vector<32x256xf32> to vector<32x64xf32>
    %181 = vector.extract_strided_slice %177 {offsets = [0, 192], sizes = [32, 64], strides = [1, 1]} : vector<32x256xf32> to vector<32x64xf32>
    %182 = arith.mulf %179, %164 : vector<32x64xf32>
    %183 = arith.mulf %178, %180 : vector<32x64xf32>
    %184 = arith.addf %182, %183 : vector<32x64xf32>
    %185 = math.tanh %184 : vector<32x64xf32>
    %186 = arith.mulf %181, %185 : vector<32x64xf32>
    %187 = vector.extract_strided_slice %186 {offsets = [0, 32], sizes = [32, 32], strides = [1, 1]} : vector<32x64xf32> to vector<32x32xf32>
    %c192_56 = arith.constant 192 : index
    %c0_57 = arith.constant 0 : index
    %188 = vector.load %arg10[%c192_56, %c0_57] : memref<256x32xf32, #tpu.memory_space<vmem>>, vector<32x32xf32>
    tpu.vector_store %arg10[%c192_56, %c0_57], %187 {strides = array<i32>} : memref<256x32xf32, #tpu.memory_space<vmem>>, vector<32x32xf32>,
    %c256 = arith.constant 256 : index
    %c0_58 = arith.constant 0 : index
    %189 = vector.load %arg9[%c256, %c0_58] : memref<288x256xf32, #tpu.memory_space<vmem>>, vector<32x256xf32>
    %c0_59 = arith.constant 0 : index
    %c0_60 = arith.constant 0 : index
    %190 = vector.load %arg3[%c0_59, %c0_60] : memref<64x256xf32, #tpu.memory_space<vmem>>, vector<64x256xf32>
    %cst_61 = arith.constant dense<0.000000e+00> : vector<32x256xf32>
    %191 = tpu.matmul %186, %190, %cst_61 {dimension_numbers = #tpu.dot_dimension_numbers<[1], [0], [0], [1], [0, 0, 1, 1], [], []>} : vector<32x64xf32>, vector<64x256xf32>, vector<32x256xf32> -> vector<32x256xf32>
    %192 = arith.addf %189, %191 : vector<32x256xf32>
    %193 = math.tanh %192 : vector<32x256xf32>
    %194 = vector.broadcast %16 : vector<1x256xf32> to vector<32x256xf32>
    %195 = arith.mulf %193, %194 : vector<32x256xf32>
    %196 = vector.broadcast %19 : vector<1x256xf32> to vector<32x256xf32>
    %197 = arith.addf %195, %196 : vector<32x256xf32>
    %198 = vector.extract_strided_slice %197 {offsets = [0, 0], sizes = [32, 64], strides = [1, 1]} : vector<32x256xf32> to vector<32x64xf32>
    %199 = vector.extract_strided_slice %197 {offsets = [0, 64], sizes = [32, 64], strides = [1, 1]} : vector<32x256xf32> to vector<32x64xf32>
    %200 = vector.extract_strided_slice %197 {offsets = [0, 128], sizes = [32, 64], strides = [1, 1]} : vector<32x256xf32> to vector<32x64xf32>
    %201 = vector.extract_strided_slice %197 {offsets = [0, 192], sizes = [32, 64], strides = [1, 1]} : vector<32x256xf32> to vector<32x64xf32>
    %202 = arith.mulf %199, %184 : vector<32x64xf32>
    %203 = arith.mulf %198, %200 : vector<32x64xf32>
    %204 = arith.addf %202, %203 : vector<32x64xf32>
    %205 = math.tanh %204 : vector<32x64xf32>
    %206 = arith.mulf %201, %205 : vector<32x64xf32>
    %207 = tpu.iota {dimensions = array<i32: 1>} : vector<1x64xi32>
    %c32_i32_62 = arith.constant 32 : i32
    %208 = vector.broadcast %c32_i32_62 : i32 to vector<1x64xi32>
    %209 = arith.cmpi sge, %207, %208 : vector<1x64xi32>
    %c64_i32 = arith.constant 64 : i32
    %210 = vector.broadcast %c64_i32 : i32 to vector<1x64xi32>
    %211 = arith.cmpi slt, %207, %210 : vector<1x64xi32>
    %212 = arith.andi %209, %211 : vector<1x64xi1>
    %213 = vector.shape_cast %212 : vector<1x64xi1> to vector<1x64xi1>
    %214 = vector.broadcast %213 : vector<1x64xi1> to vector<32x64xi1>
    %215 = arith.select %214, %206, %186 : vector<32x64xi1>, vector<32x64xf32>
    %216 = vector.extract_strided_slice %206 {offsets = [0, 32], sizes = [32, 32], strides = [1, 1]} : vector<32x64xf32> to vector<32x32xf32>
    %c224_63 = arith.constant 224 : index
    %c0_64 = arith.constant 0 : index
    %217 = vector.load %arg10[%c224_63, %c0_64] : memref<256x32xf32, #tpu.memory_space<vmem>>, vector<32x32xf32>
    tpu.vector_store %arg10[%c224_63, %c0_64], %216 {strides = array<i32>} : memref<256x32xf32, #tpu.memory_space<vmem>>, vector<32x32xf32>,
    %c0_65 = arith.constant 0 : index
    %c0_66 = arith.constant 0 : index
    %218 = vector.load %arg8[%c0_65, %c0_66] : memref<32x64xf32, #tpu.memory_space<vmem>>, vector<32x64xf32>
    tpu.vector_store %arg8[%c0_65, %c0_66], %215 {strides = array<i32>} : memref<32x64xf32, #tpu.memory_space<vmem>>, vector<32x64xf32>,
    %c0_67 = arith.constant 0 : index
    %c0_68 = arith.constant 0 : index
    %219 = vector.load %arg5[%c0_67, %c0_68] : memref<1x32xf32, #tpu.memory_space<vmem>>, vector<1x32xf32>
    %c0_69 = arith.constant 0 : index
    %c0_70 = arith.constant 0 : index
    %220 = vector.load %arg10[%c0_69, %c0_70] : memref<256x32xf32, #tpu.memory_space<vmem>>, vector<32x32xf32>
    %221 = vector.broadcast %219 : vector<1x32xf32> to vector<32x32xf32>
    %222 = arith.mulf %220, %221 : vector<32x32xf32>
    %cst_71 = arith.constant dense<0.000000e+00> : vector<32xf32>
    %223 = vector.multi_reduction <add>, %222, %cst_71 [1] : vector<32x32xf32> to vector<32xf32>
    %224 = vector.shape_cast %223 : vector<32xf32> to vector<32x1xf32>
    %c32_72 = arith.constant 32 : index
    %c0_73 = arith.constant 0 : index
    %225 = vector.load %arg10[%c32_72, %c0_73] : memref<256x32xf32, #tpu.memory_space<vmem>>, vector<32x32xf32>
    %226 = vector.broadcast %219 : vector<1x32xf32> to vector<32x32xf32>
    %227 = arith.mulf %225, %226 : vector<32x32xf32>
    %cst_74 = arith.constant dense<0.000000e+00> : vector<32xf32>
    %228 = vector.multi_reduction <add>, %227, %cst_74 [1] : vector<32x32xf32> to vector<32xf32>
    %229 = vector.shape_cast %228 : vector<32xf32> to vector<32x1xf32>
    %c64_75 = arith.constant 64 : index
    %c0_76 = arith.constant 0 : index
    %230 = vector.load %arg10[%c64_75, %c0_76] : memref<256x32xf32, #tpu.memory_space<vmem>>, vector<32x32xf32>
    %231 = vector.broadcast %219 : vector<1x32xf32> to vector<32x32xf32>
    %232 = arith.mulf %230, %231 : vector<32x32xf32>
    %cst_77 = arith.constant dense<0.000000e+00> : vector<32xf32>
    %233 = vector.multi_reduction <add>, %232, %cst_77 [1] : vector<32x32xf32> to vector<32xf32>
    %234 = vector.shape_cast %233 : vector<32xf32> to vector<32x1xf32>
    %c96_78 = arith.constant 96 : index
    %c0_79 = arith.constant 0 : index
    %235 = vector.load %arg10[%c96_78, %c0_79] : memref<256x32xf32, #tpu.memory_space<vmem>>, vector<32x32xf32>
    %236 = vector.broadcast %219 : vector<1x32xf32> to vector<32x32xf32>
    %237 = arith.mulf %235, %236 : vector<32x32xf32>
    %cst_80 = arith.constant dense<0.000000e+00> : vector<32xf32>
    %238 = vector.multi_reduction <add>, %237, %cst_80 [1] : vector<32x32xf32> to vector<32xf32>
    %239 = vector.shape_cast %238 : vector<32xf32> to vector<32x1xf32>
    %c128_81 = arith.constant 128 : index
    %c0_82 = arith.constant 0 : index
    %240 = vector.load %arg10[%c128_81, %c0_82] : memref<256x32xf32, #tpu.memory_space<vmem>>, vector<32x32xf32>
    %241 = vector.broadcast %219 : vector<1x32xf32> to vector<32x32xf32>
    %242 = arith.mulf %240, %241 : vector<32x32xf32>
    %cst_83 = arith.constant dense<0.000000e+00> : vector<32xf32>
    %243 = vector.multi_reduction <add>, %242, %cst_83 [1] : vector<32x32xf32> to vector<32xf32>
    %244 = vector.shape_cast %243 : vector<32xf32> to vector<32x1xf32>
    %c160_84 = arith.constant 160 : index
    %c0_85 = arith.constant 0 : index
    %245 = vector.load %arg10[%c160_84, %c0_85] : memref<256x32xf32, #tpu.memory_space<vmem>>, vector<32x32xf32>
    %246 = vector.broadcast %219 : vector<1x32xf32> to vector<32x32xf32>
    %247 = arith.mulf %245, %246 : vector<32x32xf32>
    %cst_86 = arith.constant dense<0.000000e+00> : vector<32xf32>
    %248 = vector.multi_reduction <add>, %247, %cst_86 [1] : vector<32x32xf32> to vector<32xf32>
    %249 = vector.shape_cast %248 : vector<32xf32> to vector<32x1xf32>
    %c192_87 = arith.constant 192 : index
    %c0_88 = arith.constant 0 : index
    %250 = vector.load %arg10[%c192_87, %c0_88] : memref<256x32xf32, #tpu.memory_space<vmem>>, vector<32x32xf32>
    %251 = vector.broadcast %219 : vector<1x32xf32> to vector<32x32xf32>
    %252 = arith.mulf %250, %251 : vector<32x32xf32>
    %cst_89 = arith.constant dense<0.000000e+00> : vector<32xf32>
    %253 = vector.multi_reduction <add>, %252, %cst_89 [1] : vector<32x32xf32> to vector<32xf32>
    %254 = vector.shape_cast %253 : vector<32xf32> to vector<32x1xf32>
    %c224_90 = arith.constant 224 : index
    %c0_91 = arith.constant 0 : index
    %255 = vector.load %arg10[%c224_90, %c0_91] : memref<256x32xf32, #tpu.memory_space<vmem>>, vector<32x32xf32>
    %256 = vector.broadcast %219 : vector<1x32xf32> to vector<32x32xf32>
    %257 = arith.mulf %255, %256 : vector<32x32xf32>
    %cst_92 = arith.constant dense<0.000000e+00> : vector<32xf32>
    %258 = vector.multi_reduction <add>, %257, %cst_92 [1] : vector<32x32xf32> to vector<32xf32>
    %259 = vector.shape_cast %258 : vector<32xf32> to vector<32x1xf32>
    %260 = tpu.concatenate %224, %229, %234, %239, %244, %249, %254, %259 in 1 : vector<32x1xf32>, vector<32x1xf32>, vector<32x1xf32>, vector<32x1xf32>, vector<32x1xf32>, vector<32x1xf32>, vector<32x1xf32>, vector<32x1xf32> -> vector<32x8xf32>
    %c0_93 = arith.constant 0 : index
    %c0_94 = arith.constant 0 : index
    %261 = vector.load %arg6[%c0_93, %c0_94] : memref<1x1xf32, #tpu.memory_space<vmem>>, vector<1x1xf32>
    %262 = vector.broadcast %261 : vector<1x1xf32> to vector<32x8xf32>
    %263 = arith.addf %260, %262 : vector<32x8xf32>
    %cst_95 = arith.constant 0.000000e+00 : f32
    %264 = vector.broadcast %cst_95 : f32 to vector<32x8xf32>
    %265 = arith.maximumf %263, %264 : vector<32x8xf32>
    %c0_96 = arith.constant 0 : index
    %c0_97 = arith.constant 0 : index
    %266 = vector.load %arg7[%c0_96, %c0_97] : memref<32x8xf32, #tpu.memory_space<vmem>>, vector<32x8xf32>
    tpu.vector_store %arg7[%c0_96, %c0_97], %265 {strides = array<i32>} : memref<32x8xf32, #tpu.memory_space<vmem>>, vector<32x8xf32>,
    return
  }
  func.func @transform_0(%arg0: i32) -> (i32, i32, i32) {
    %c0_i32 = arith.constant 0 : i32
    %c0_i32_0 = arith.constant 0 : i32
    %c0_i32_1 = arith.constant 0 : i32
    return %arg0, %c0_i32, %c0_i32_0 : i32, i32, i32
  }
  func.func @transform_1(%arg0: i32) -> (i32, i32) {
    %c0_i32 = arith.constant 0 : i32
    %c0_i32_0 = arith.constant 0 : i32
    %c0_i32_1 = arith.constant 0 : i32
    return %c0_i32, %c0_i32_0 : i32, i32
  }
  func.func @transform_2(%arg0: i32) -> (i32, i32) {
    %c0_i32 = arith.constant 0 : i32
    %c0_i32_0 = arith.constant 0 : i32
    %c0_i32_1 = arith.constant 0 : i32
    return %c0_i32, %c0_i32_0 : i32, i32
  }
  func.func @transform_3(%arg0: i32) -> (i32, i32) {
    %c0_i32 = arith.constant 0 : i32
    %c0_i32_0 = arith.constant 0 : i32
    %c0_i32_1 = arith.constant 0 : i32
    return %c0_i32, %c0_i32_0 : i32, i32
  }
  func.func @transform_4(%arg0: i32) -> (i32, i32) {
    %c0_i32 = arith.constant 0 : i32
    %c0_i32_0 = arith.constant 0 : i32
    %c0_i32_1 = arith.constant 0 : i32
    return %c0_i32, %c0_i32_0 : i32, i32
  }
  func.func @transform_5(%arg0: i32) -> (i32, i32) {
    %c0_i32 = arith.constant 0 : i32
    %c0_i32_0 = arith.constant 0 : i32
    %c0_i32_1 = arith.constant 0 : i32
    return %c0_i32, %c0_i32_0 : i32, i32
  }
  func.func @transform_6(%arg0: i32) -> (i32, i32) {
    %c0_i32 = arith.constant 0 : i32
    %c0_i32_0 = arith.constant 0 : i32
    return %arg0, %c0_i32 : i32, i32
  }
  func.func @transform_7(%arg0: i32) -> (i32, i32) {
    %c0_i32 = arith.constant 0 : i32
    %c0_i32_0 = arith.constant 0 : i32
    return %arg0, %c0_i32 : i32, i32
  }
}

</mosaic_0001>

<llo_original>
// kernel: long_rnn_forward.1
$region0: #{long_rnn_forward.1}
  #allocation0 [shape = 'u32[]', space=smem, size = 0x4, offset = 0x4, fixed_abs, tag = 'smem constant byte address 0x4 - core index']
  #allocation1 [shape = 'u32[144,128]{1,0:T(1,128)}', space=vmem, size = 0x12000, scoped, tag = 'internal scratch']
  #allocation2 [shape = 'f32[288,256]{1,0:T(8,128)}', space=vmem, size = 0x48000, scoped, tag = 'scratch operand']
  #allocation3 [shape = 'f32[256,32]{1,0:T(8,128)}', space=vmem, size = 0x20000, scoped, tag = 'scratch operand']
  #allocation4 [shape = 'f32[1,1]{1,0:T(1,128)S(1)}', space=vmem, size = 0x200, scoped, tag = 'scoped memory for long_rnn_forward.1']
  %s0 = inlined_call_operand.vmem [shape: f32[2,288,4], index: 0, kind: input, shape index: {}]
  %s1 = inlined_call_operand.vmem [shape: f32[4,256], index: 1, kind: input, shape index: {}]
  %s2 = inlined_call_operand.vmem [shape: f32[64,256], index: 2, kind: input, shape index: {}]
  %s3 = inlined_call_operand.vmem [shape: f32[1,256], index: 3, kind: input, shape index: {}]
  %s4 = inlined_call_operand.vmem [shape: f32[1,32], index: 4, kind: input, shape index: {}]
  %s5 = inlined_call_operand.<no memory space> [shape: f32[1,1], index: 5, kind: input, shape index: {}]
  %s6 = inlined_call_operand.vmem [shape: f32[64,8], index: 6, kind: output, shape index: {0}]
  %s7 = inlined_call_operand.vmem [shape: f32[64,64], index: 7, kind: output, shape index: {1}]
  %8 = xla_tuple %s6, %s7
  %s9 = sld [smem:[#allocation0]]
  $region65: #{long_rnn_forward.1} parent=0
    _
  %s11 = ssub.s32 1, %s9
  %s12 = scalar_select 0, %s11, %s9
  %v13 = vstv %s5
  %14 = vst [vmem:[#allocation4] sm:$0x1] %v13
  loop: start=0, step=1, limit=4
  $region2: #{long_rnn_forward.1} parent=0 // loop_pre_header
    _
  $region3: #{long_rnn_forward.1} parent=0 // loop_header
    %s16 = sphi 0, %s20
    %p17 = scmp.ge.s32.totalorder %s16, 4
    %s26 = sphi 0, %s28
    %s29 = sphi 0, %s26
    %s30 = sphi 0, %s29
    %s46 = sphi 0, %s30
    %s50 = sphi 0, %s50
    %s52 = sphi 0, %s50
    %s53 = sphi 0, %s52
    %s67 = sphi 0, %s53
    %s71 = sphi 0, %s71
    %s73 = sphi 0, %s71
    %s74 = sphi 0, %s73
    %s88 = sphi 0, %s74
    %s92 = sphi 0, %s92
    %s94 = sphi 0, %s92
    %s95 = sphi 0, %s94
    %s109 = sphi 0, %s95
    %s113 = sphi 0, %s113
    %s115 = sphi 0, %s113
    %s116 = sphi 0, %s115
    %s130 = sphi 0, %s116
    %s134 = sphi 0, %s134
    %s136 = sphi 0, %s134
    %s137 = sphi 0, %s136
    %s151 = sphi 0, %s137
    %s157 = sphi 0, %s159
    %s160 = sphi 0, %s157
    %s161 = sphi 0, %s160
    %s177 = sphi 0, %s161
    %s183 = sphi 0, %s185
    %s186 = sphi 0, %s183
    %s187 = sphi 0, %s186
    %s203 = sphi 0, %s187
  $region4: #{long_rnn_forward.1} parent=0 // loop_header_branch
    %19 = sbr.rel (%p17) target = $region8
  $region5: #{long_rnn_forward.1} parent=0 // loop_body
    %s21 = ssub.s32 %s16, 1
    %s22 = ssub.s32 %s16, 2
    %s23 = sadd.s32 %s16, 1
    %s24 = ssub.s32 %s16, %s23
    %p25 = scmp.eq.s32.totalorder %s24, 0
    %s27 = sadd.s32 %s26, 1
    %s28 = scalar_select %p25, %s26, %s27
    %p31 = pneg %p25
    %p32 = scmp.eq.s32.totalorder %s16, 1
    %p33 = por %p31, %p32
    %p34 = scmp.ne.s32.totalorder %s26, %s29
    %p35 = scmp.eq.s32.totalorder %s16, 0
    %p36 = por %p34, %p35
    %p37 = scmp.ne.s32.totalorder %s26, %s29
    %p38 = scmp.eq.s32.totalorder %s21, 1
    %p39 = por %p37, %p38
    %p40 = scmp.ne.s32.totalorder %s29, %s30
    %p41 = scmp.eq.s32.totalorder %s21, 0
    %p42 = por %p40, %p41
    %p43 = scmp.ne.s32.totalorder %s29, %s30
    %p44 = scmp.eq.s32.totalorder %s22, 1
    %p45 = por %p43, %p44
    %p47 = scmp.ne.s32.totalorder %s30, %s46
    %p48 = scmp.eq.s32.totalorder %s22, 0
    %p49 = por %p47, %p48
    %s51 = sadd.s32 %s50, 1
    %p54 = scmp.eq.s32.totalorder %s16, 1
    %p55 = scmp.ne.s32.totalorder %s50, %s52
    %p56 = scmp.eq.s32.totalorder %s16, 0
    %p57 = por %p55, %p56
    %p58 = scmp.ne.s32.totalorder %s50, %s52
    %p59 = scmp.eq.s32.totalorder %s21, 1
    %p60 = por %p58, %p59
    %p61 = scmp.ne.s32.totalorder %s52, %s53
    %p62 = scmp.eq.s32.totalorder %s21, 0
    %p63 = por %p61, %p62
    %p64 = scmp.ne.s32.totalorder %s52, %s53
    %p65 = scmp.eq.s32.totalorder %s22, 1
    %p66 = por %p64, %p65
    %p68 = scmp.ne.s32.totalorder %s53, %s67
    %p69 = scmp.eq.s32.totalorder %s22, 0
    %p70 = por %p68, %p69
    %s72 = sadd.s32 %s71, 1
    %p75 = scmp.eq.s32.totalorder %s16, 1
    %p76 = scmp.ne.s32.totalorder %s71, %s73
    %p77 = scmp.eq.s32.totalorder %s16, 0
    %p78 = por %p76, %p77
    %p79 = scmp.ne.s32.totalorder %s71, %s73
    %p80 = scmp.eq.s32.totalorder %s21, 1
    %p81 = por %p79, %p80
    %p82 = scmp.ne.s32.totalorder %s73, %s74
    %p83 = scmp.eq.s32.totalorder %s21, 0
    %p84 = por %p82, %p83
    %p85 = scmp.ne.s32.totalorder %s73, %s74
    %p86 = scmp.eq.s32.totalorder %s22, 1
    %p87 = por %p85, %p86
    %p89 = scmp.ne.s32.totalorder %s74, %s88
    %p90 = scmp.eq.s32.totalorder %s22, 0
    %p91 = por %p89, %p90
    %s93 = sadd.s32 %s92, 1
    %p96 = scmp.eq.s32.totalorder %s16, 1
    %p97 = scmp.ne.s32.totalorder %s92, %s94
    %p98 = scmp.eq.s32.totalorder %s16, 0
    %p99 = por %p97, %p98
    %p100 = scmp.ne.s32.totalorder %s92, %s94
    %p101 = scmp.eq.s32.totalorder %s21, 1
    %p102 = por %p100, %p101
    %p103 = scmp.ne.s32.totalorder %s94, %s95
    %p104 = scmp.eq.s32.totalorder %s21, 0
    %p105 = por %p103, %p104
    %p106 = scmp.ne.s32.totalorder %s94, %s95
    %p107 = scmp.eq.s32.totalorder %s22, 1
    %p108 = por %p106, %p107
    %p110 = scmp.ne.s32.totalorder %s95, %s109
    %p111 = scmp.eq.s32.totalorder %s22, 0
    %p112 = por %p110, %p111
    %s114 = sadd.s32 %s113, 1
    %p117 = scmp.eq.s32.totalorder %s16, 1
    %p118 = scmp.ne.s32.totalorder %s113, %s115
    %p119 = scmp.eq.s32.totalorder %s16, 0
    %p120 = por %p118, %p119
    %p121 = scmp.ne.s32.totalorder %s113, %s115
    %p122 = scmp.eq.s32.totalorder %s21, 1
    %p123 = por %p121, %p122
    %p124 = scmp.ne.s32.totalorder %s115, %s116
    %p125 = scmp.eq.s32.totalorder %s21, 0
    %p126 = por %p124, %p125
    %p127 = scmp.ne.s32.totalorder %s115, %s116
    %p128 = scmp.eq.s32.totalorder %s22, 1
    %p129 = por %p127, %p128
    %p131 = scmp.ne.s32.totalorder %s116, %s130
    %p132 = scmp.eq.s32.totalorder %s22, 0
    %p133 = por %p131, %p132
    %s135 = sadd.s32 %s134, 1
    %p138 = scmp.eq.s32.totalorder %s16, 1
    %p139 = scmp.ne.s32.totalorder %s134, %s136
    %p140 = scmp.eq.s32.totalorder %s16, 0
    %p141 = por %p139, %p140
    %p142 = scmp.ne.s32.totalorder %s134, %s136
    %p143 = scmp.eq.s32.totalorder %s21, 1
    %p144 = por %p142, %p143
    %p145 = scmp.ne.s32.totalorder %s136, %s137
    %p146 = scmp.eq.s32.totalorder %s21, 0
    %p147 = por %p145, %p146
    %p148 = scmp.ne.s32.totalorder %s136, %s137
    %p149 = scmp.eq.s32.totalorder %s22, 1
    %p150 = por %p148, %p149
    %p152 = scmp.ne.s32.totalorder %s137, %s151
    %p153 = scmp.eq.s32.totalorder %s22, 0
    %p154 = por %p152, %p153
    %s155 = ssub.s32 %s16, %s23
    %p156 = scmp.eq.s32.totalorder %s155, 0
    %s158 = sadd.s32 %s157, 1
    %s159 = scalar_select %p156, %s157, %s158
    %p162 = pneg %p156
    %p163 = scmp.eq.s32.totalorder %s16, 1
    %p164 = por %p162, %p163
    %p165 = scmp.ne.s32.totalorder %s157, %s160
    %p166 = scmp.eq.s32.totalorder %s16, 0
    %p167 = por %p165, %p166
    %p168 = scmp.ne.s32.totalorder %s157, %s160
    %p169 = scmp.eq.s32.totalorder %s21, 1
    %p170 = por %p168, %p169
    %p171 = scmp.ne.s32.totalorder %s160, %s161
    %p172 = scmp.eq.s32.totalorder %s21, 0
    %p173 = por %p171, %p172
    %p174 = scmp.ne.s32.totalorder %s160, %s161
    %p175 = scmp.eq.s32.totalorder %s22, 1
    %p176 = por %p174, %p175
    %p178 = scmp.ne.s32.totalorder %s161, %s177
    %p179 = scmp.eq.s32.totalorder %s22, 0
    %p180 = por %p178, %p179
    %s181 = ssub.s32 %s16, %s23
    %p182 = scmp.eq.s32.totalorder %s181, 0
    %s184 = sadd.s32 %s183, 1
    %s185 = scalar_select %p182, %s183, %s184
    %p188 = pneg %p182
    %p189 = scmp.eq.s32.totalorder %s16, 1
    %p190 = por %p188, %p189
    %p191 = scmp.ne.s32.totalorder %s183, %s186
    %p192 = scmp.eq.s32.totalorder %s16, 0
    %p193 = por %p191, %p192
    %p194 = scmp.ne.s32.totalorder %s183, %s186
    %p195 = scmp.eq.s32.totalorder %s21, 1
    %p196 = por %p194, %p195
    %p197 = scmp.ne.s32.totalorder %s186, %s187
    %p198 = scmp.eq.s32.totalorder %s21, 0
    %p199 = por %p197, %p198
    %p200 = scmp.ne.s32.totalorder %s186, %s187
    %p201 = scmp.eq.s32.totalorder %s22, 1
    %p202 = por %p200, %p201
    %p204 = scmp.ne.s32.totalorder %s187, %s203
    %p205 = scmp.eq.s32.totalorder %s22, 0
    %p206 = por %p204, %p205
    %p207 = scmp.le.s32.totalorder 1, %s16
    %p208 = scmp.lt.s32.totalorder %s16, 3
    %p209 = pnand %p207, %p208
    %p210 = pneg %p209
    // Predicated region
    $region9: #{long_rnn_forward.1} parent=5 // pred_check
      _
    $region10: #{long_rnn_forward.1} parent=5 // pred_check_branch
      %212 = sbr.rel (%p209) target = $region12
    $region11: #{long_rnn_forward.1} parent=5 // pred_region
      %s213 = ssub.s32 %s16, 1
      // Predicated region
      $region13: #{long_rnn_forward.1} parent=11 // pred_check
        %p214 = pneg %p63
      $region14: #{long_rnn_forward.1} parent=11 // pred_check_branch
        %216 = sbr.rel (%p214) target = $region16
      $region15: #{long_rnn_forward.1} parent=11 // pred_region
        _
      $region16: #{long_rnn_forward.1} parent=11 // pred_fallthru
        _
      // Predicated region
      $region17: #{long_rnn_forward.1} parent=11 // pred_check
        %p217 = pneg %p84
      $region18: #{long_rnn_forward.1} parent=11 // pred_check_branch
        %219 = sbr.rel (%p217) target = $region20
      $region19: #{long_rnn_forward.1} parent=11 // pred_region
        _
      $region20: #{long_rnn_forward.1} parent=11 // pred_fallthru
        _
      // Predicated region
      $region21: #{long_rnn_forward.1} parent=11 // pred_check
        %p220 = pneg %p105
      $region22: #{long_rnn_forward.1} parent=11 // pred_check_branch
        %222 = sbr.rel (%p220) target = $region24
      $region23: #{long_rnn_forward.1} parent=11 // pred_region
        _
      $region24: #{long_rnn_forward.1} parent=11 // pred_fallthru
        _
      // Predicated region
      $region25: #{long_rnn_forward.1} parent=11 // pred_check
        %p223 = pneg %p126
      $region26: #{long_rnn_forward.1} parent=11 // pred_check_branch
        %225 = sbr.rel (%p223) target = $region28
      $region27: #{long_rnn_forward.1} parent=11 // pred_region
        _
      $region28: #{long_rnn_forward.1} parent=11 // pred_fallthru
        _
      // Predicated region
      $region29: #{long_rnn_forward.1} parent=11 // pred_check
        %p226 = pneg %p147
      $region30: #{long_rnn_forward.1} parent=11 // pred_check_branch
        %228 = sbr.rel (%p226) target = $region32
      $region31: #{long_rnn_forward.1} parent=11 // pred_region
        _
      $region32: #{long_rnn_forward.1} parent=11 // pred_fallthru
        _
    $region12: #{long_rnn_forward.1} parent=5 // pred_fallthru
      _
    %p229 = scmp.lt.s32.totalorder %s16, 2
    // Predicated region
    $region33: #{long_rnn_forward.1} parent=5 // pred_check
      %p230 = pneg %p229
    $region34: #{long_rnn_forward.1} parent=5 // pred_check_branch
      %232 = sbr.rel (%p230) target = $region36
    $region35: #{long_rnn_forward.1} parent=5 // pred_region
      // Predicated region
      $region37: #{long_rnn_forward.1} parent=35 // pred_check
        %p233 = pneg %p36
      $region38: #{long_rnn_forward.1} parent=35 // pred_check_branch
        %235 = sbr.rel (%p233) target = $region40
      $region39: #{long_rnn_forward.1} parent=35 // pred_region
        %p236 = scmp.lt.s32.totalorder %s16, 1
        %s237 = scalar_select %p236, %s16, 1
        %s238 = smul.addr %s237, 36
        %s239 = smul.addr %s238, 8
        %s240 = scalar_lea.vmem %s0, %s239
      $region40: #{long_rnn_forward.1} parent=35 // pred_fallthru
        _
    $region36: #{long_rnn_forward.1} parent=5 // pred_fallthru
      _
    %p241 = scmp.le.s32.totalorder 1, %s16
    %p242 = scmp.lt.s32.totalorder %s16, 3
    %p243 = pnand %p241, %p242
    %p244 = pneg %p243
    // Predicated region
    $region41: #{long_rnn_forward.1} parent=5 // pred_check
      _
    $region42: #{long_rnn_forward.1} parent=5 // pred_check_branch
      %246 = sbr.rel (%p243) target = $region44
    $region43: #{long_rnn_forward.1} parent=5 // pred_region
      %s247 = ssub.s32 %s16, 1
      %p248 = scmp.lt.s32.totalorder %s21, 1
      %s249 = scalar_select %p248, %s21, 1
      %s250 = smul.addr %s249, 36
      %s251 = smul.addr %s250, 8
      %s252 = scalar_lea.vmem %s0, %s251
      %p253 = pneg %p42
      %p254 = pneg %p39
      %p255 = pneg %p63
      %p256 = pneg %p60
      %p257 = pneg %p84
      %p258 = pneg %p81
      %p259 = pneg %p105
      %p260 = pneg %p102
      %p261 = pneg %p126
      %p262 = pneg %p123
      %p263 = pneg %p147
      %p264 = pneg %p144
      %p265 = pneg %p173
      %p266 = pneg %p170
      %s267 = smul.u32 4, %s21
      %p268 = scmp.lt.s32.totalorder %s267, 7
      %s269 = scalar_select %p268, %s267, 7
      %s270 = smul.addr %s269, 8
      %s271 = scalar_lea.vmem %s6, %s270
      %p272 = pneg %p199
      %p273 = pneg %p196
      %s274 = smul.u32 4, %s21
      %p275 = scmp.lt.s32.totalorder %s274, 7
      %s276 = scalar_select %p275, %s274, 7
      %s277 = smul.addr %s276, 8
      %s278 = scalar_lea.vmem %s7, %s277
      %p279 = scmp.lt.s32.totalorder %s21, 1
      %s280 = scalar_select %p279, %s21, 1
      %s281 = smul.addr %s280, 36
      %s282 = smul.addr %s281, 8
      %s283 = scalar_lea.vmem %s0, %s282
      %s284 = smul.u32 4, %s21
      %p285 = scmp.lt.s32.totalorder %s284, 7
      %s286 = scalar_select %p285, %s284, 7
      %s287 = smul.addr %s286, 8
      %s288 = scalar_lea.vmem %s6, %s287
      %s289 = smul.u32 4, %s21
      %s290 = smul.u32 4, %s21
      %p291 = scmp.lt.s32.totalorder %s290, 7
      %s292 = scalar_select %p291, %s290, 7
      %s293 = smul.addr %s292, 8
      %s294 = scalar_lea.vmem %s7, %s293
      %s295 = smul.u32 4, %s21
      %v296 = vld [vmem:[%s283] sm:$0xff]
      %v297 = vld [vmem:[%s283 + $0x8] sm:$0xff]
      %v298 = vld [vmem:[%s283 + $0x10] sm:$0xff]
      %v299 = vld [vmem:[%s283 + $0x18] sm:$0xff]
      %v300 = vld [vmem:[%s283 + $0x20] sm:$0xff]
      %v301 = vld [vmem:[%s283 + $0x28] sm:$0xff]
      %v302 = vld [vmem:[%s283 + $0x30] sm:$0xff]
      %v303 = vld [vmem:[%s283 + $0x38] sm:$0xff]
      %v304 = vld [vmem:[%s283 + $0x40] sm:$0xff]
      %v305 = vld [vmem:[%s283 + $0x48] sm:$0xff]
      %v306 = vld [vmem:[%s283 + $0x50] sm:$0xff]
      %v307 = vld [vmem:[%s283 + $0x58] sm:$0xff]
      %v308 = vld [vmem:[%s283 + $0x60] sm:$0xff]
      %v309 = vld [vmem:[%s283 + $0x68] sm:$0xff]
      %v310 = vld [vmem:[%s283 + $0x70] sm:$0xff]
      %v311 = vld [vmem:[%s283 + $0x78] sm:$0xff]
      %v312 = vld [vmem:[%s283 + $0x80] sm:$0xff]
      %v313 = vld [vmem:[%s283 + $0x88] sm:$0xff]
      %v314 = vld [vmem:[%s283 + $0x90] sm:$0xff]
      %v315 = vld [vmem:[%s283 + $0x98] sm:$0xff]
      %v316 = vld [vmem:[%s283 + $0xa0] sm:$0xff]
      %v317 = vld [vmem:[%s283 + $0xa8] sm:$0xff]
      %v318 = vld [vmem:[%s283 + $0xb0] sm:$0xff]
      %v319 = vld [vmem:[%s283 + $0xb8] sm:$0xff]
      %v320 = vld [vmem:[%s283 + $0xc0] sm:$0xff]
      %v321 = vld [vmem:[%s283 + $0xc8] sm:$0xff]
      %v322 = vld [vmem:[%s283 + $0xd0] sm:$0xff]
      %v323 = vld [vmem:[%s283 + $0xd8] sm:$0xff]
      %v324 = vld [vmem:[%s283 + $0xe0] sm:$0xff]
      %v325 = vld [vmem:[%s283 + $0xe8] sm:$0xff]
      %v326 = vld [vmem:[%s283 + $0xf0] sm:$0xff]
      %v327 = vld [vmem:[%s283 + $0xf8] sm:$0xff]
      %v328 = vld [vmem:[%s283 + $0x100] sm:$0xff]
      %v329 = vld [vmem:[%s283 + $0x108] sm:$0xff]
      %v330 = vld [vmem:[%s283 + $0x110] sm:$0xff]
      %v331 = vld [vmem:[%s283 + $0x118] sm:$0xff]
      %v332 = vld [vmem:[%s1] sm:$0xff]
      %v333 = vld [vmem:[%s3] sm:$0x3]
      %v335 = vlaneseq
      %v336 = vshrl.u32 %v335, 7
      %v337 = vsub.s32 0, %v336
      %v338 = vrot.slane %v333, %v337
      %v339 = vlaneseq
      %v340 = vshrl.u32 %v339, 7
      %v341 = vsub.s32 1, %v340
      %v342 = vrot.slane %v333, %v341
      %v346 = vcombine.high %v332, %v332
      %vm347 = vcmask 31744
      %v349 = vsel %vm347, %v296, 0
      %v352 = vsel %vm347, %v297, 0
      %v355 = vsel %vm347, %v298, 0
      %v358 = vsel %vm347, %v299, 0
      %v361 = vsel %vm347, %v300, 0
      %v364 = vsel %vm347, %v301, 0
      %v367 = vsel %vm347, %v302, 0
      %v370 = vsel %vm347, %v303, 0
      %v373 = vsel %vm347, %v304, 0
      %v376 = vsel %vm347, %v305, 0
      %v379 = vsel %vm347, %v306, 0
      %v382 = vsel %vm347, %v307, 0
      %v385 = vsel %vm347, %v308, 0
      %v388 = vsel %vm347, %v309, 0
      %v391 = vsel %vm347, %v310, 0
      %v394 = vsel %vm347, %v311, 0
      %v397 = vsel %vm347, %v312, 0
      %v400 = vsel %vm347, %v313, 0
      %v403 = vsel %vm347, %v314, 0
      %v406 = vsel %vm347, %v315, 0
      %v409 = vsel %vm347, %v316, 0
      %v412 = vsel %vm347, %v317, 0
      %v415 = vsel %vm347, %v318, 0
      %v418 = vsel %vm347, %v319, 0
      %v421 = vsel %vm347, %v320, 0
      %v424 = vsel %vm347, %v321, 0
      %v427 = vsel %vm347, %v322, 0
      %v430 = vsel %vm347, %v323, 0
      %v433 = vsel %vm347, %v324, 0
      %v436 = vsel %vm347, %v325, 0
      %v439 = vsel %vm347, %v326, 0
      %v442 = vsel %vm347, %v327, 0
      %v445 = vsel %vm347, %v328, 0
      %v448 = vsel %vm347, %v329, 0
      %v451 = vsel %vm347, %v330, 0
      %v454 = vsel %vm347, %v331, 0
      %vm456 = vcmask 1043456
      %v457 = vsel %vm456, %v332, 0
      %v459 = vsel %vm456, %v346, 0
      %461 = vmatprep.subr.mxu0 0.0
      %462 = vmatpush1.msra.mxu0 0.0
      %463 = vmatprep.subr.mxu0 0.0
      %464 = vmatpush1.msra.mxu0 0.0
      %465 = vmatprep.subr.mxu0 0.0
      %466 = vmatpush1.msra.mxu0 0.0
      %467 = vmatprep.subr.mxu0 0.0
      %468 = vmatpush1.msra.mxu0 0.0
      %469 = vmatprep.subr.mxu0 0.0
      %470 = vmatpush1.msra.mxu0 0.0
      %471 = vmatprep.subr.mxu0 0.0
      %472 = vmatpush1.msra.mxu0 0.0
      %473 = vmatprep.subr.mxu0 0.0
      %474 = vmatpush1.msra.mxu0 0.0
      %475 = vmatprep.subr.mxu0 0.0
      %476 = vmatpush1.msra.mxu0 0.0
      %477 = vmatprep.subr.mxu0 0.0
      %478 = vmatpush1.msra.mxu0 0.0
      %479 = vmatprep.subr.mxu0 0.0
      %480 = vmatpush1.msra.mxu0 0.0
      %481 = vmatprep.subr.mxu0 0.0
      %482 = vmatpush1.msra.mxu0 0.0
      %483 = vmatprep.subr.mxu0 0.0
      %484 = vmatpush1.msra.mxu0 0.0
      %485 = vmatprep.subr.mxu0 0.0
      %486 = vmatpush1.msra.mxu0 0.0
      %487 = vmatprep.subr.mxu0 0.0
      %488 = vmatpush1.msra.mxu0 0.0
      %489 = vmatprep.subr.mxu0 0.0
      %490 = vmatpush1.msra.mxu0 0.0
      %491 = vmatprep.subr.mxu0 %v459
      %492 = vmatpush1.msra.mxu0 %v457
      %493 = vmatprep.subr.mxu0 0.0
      %494 = vmatpush2.msra.mxu0 0.0
      %495 = vmatprep.subr.mxu0 0.0
      %496 = vmatpush2.msra.mxu0 0.0
      %497 = vmatprep.subr.mxu0 0.0
      %498 = vmatpush2.msra.mxu0 0.0
      %499 = vmatprep.subr.mxu0 0.0
      %500 = vmatpush2.msra.mxu0 0.0
      %501 = vmatprep.subr.mxu0 0.0
      %502 = vmatpush2.msra.mxu0 0.0
      %503 = vmatprep.subr.mxu0 0.0
      %504 = vmatpush2.msra.mxu0 0.0
      %505 = vmatprep.subr.mxu0 0.0
      %506 = vmatpush2.msra.mxu0 0.0
      %507 = vmatprep.subr.mxu0 0.0
      %508 = vmatpush2.msra.mxu0 0.0
      %509 = vmatprep.subr.mxu0 0.0
      %510 = vmatpush2.msra.mxu0 0.0
      %511 = vmatprep.subr.mxu0 0.0
      %512 = vmatpush2.msra.mxu0 0.0
      %513 = vmatprep.subr.mxu0 0.0
      %514 = vmatpush2.msra.mxu0 0.0
      %515 = vmatprep.subr.mxu0 0.0
      %516 = vmatpush2.msra.mxu0 0.0
      %517 = vmatprep.subr.mxu0 0.0
      %518 = vmatpush2.msra.mxu0 0.0
      %519 = vmatprep.subr.mxu0 0.0
      %520 = vmatpush2.msra.mxu0 0.0
      %521 = vmatprep.subr.mxu0 0.0
      %522 = vmatpush2.msra.mxu0 0.0
      %523 = vmatprep.subr.mxu0 0.0
      %524 = vmatpush2.msra.mxu0 0.0
      %525 = vmatprep.mubr.f32.mxu0 0.0
      %526 = vmatmul.mubr.f32.gmra.mxu0 %v349
      %v527 = vpop.f32.mrf.mxu0
      %v528 = vadd.f32 %v338, %v527
      %v529 = vpop.f32.mrf.mxu0
      %v530 = vadd.f32 %v342, %v529
      %531 = vmatprep.mubr.f32.mxu0 0.0
      %532 = vmatmul.mubr.f32.gmra.mxu0 %v352
      %v533 = vpop.f32.mrf.mxu0
      %v534 = vadd.f32 %v338, %v533
      %v535 = vpop.f32.mrf.mxu0
      %v536 = vadd.f32 %v342, %v535
      %537 = vmatprep.mubr.f32.mxu0 0.0
      %538 = vmatmul.mubr.f32.gmra.mxu0 %v355
      %v539 = vpop.f32.mrf.mxu0
      %v540 = vadd.f32 %v338, %v539
      %v541 = vpop.f32.mrf.mxu0
      %v542 = vadd.f32 %v342, %v541
      %543 = vmatprep.mubr.f32.mxu0 0.0
      %544 = vmatmul.mubr.f32.gmra.mxu0 %v358
      %v545 = vpop.f32.mrf.mxu0
      %v546 = vadd.f32 %v338, %v545
      %v547 = vpop.f32.mrf.mxu0
      %v548 = vadd.f32 %v342, %v547
      %549 = vmatprep.mubr.f32.mxu0 0.0
      %550 = vmatmul.mubr.f32.gmra.mxu0 %v361
      %v551 = vpop.f32.mrf.mxu0
      %v552 = vadd.f32 %v338, %v551
      %v553 = vpop.f32.mrf.mxu0
      %v554 = vadd.f32 %v342, %v553
      %555 = vmatprep.mubr.f32.mxu0 0.0
      %556 = vmatmul.mubr.f32.gmra.mxu0 %v364
      %v557 = vpop.f32.mrf.mxu0
      %v558 = vadd.f32 %v338, %v557
      %v559 = vpop.f32.mrf.mxu0
      %v560 = vadd.f32 %v342, %v559
      %561 = vmatprep.mubr.f32.mxu0 0.0
      %562 = vmatmul.mubr.f32.gmra.mxu0 %v367
      %v563 = vpop.f32.mrf.mxu0
      %v564 = vadd.f32 %v338, %v563
      %v565 = vpop.f32.mrf.mxu0
      %v566 = vadd.f32 %v342, %v565
      %567 = vmatprep.mubr.f32.mxu0 0.0
      %568 = vmatmul.mubr.f32.gmra.mxu0 %v370
      %v569 = vpop.f32.mrf.mxu0
      %v570 = vadd.f32 %v338, %v569
      %v571 = vpop.f32.mrf.mxu0
      %v572 = vadd.f32 %v342, %v571
      %573 = vmatprep.mubr.f32.mxu0 0.0
      %574 = vmatmul.mubr.f32.gmra.mxu0 %v373
      %v575 = vpop.f32.mrf.mxu0
      %v576 = vadd.f32 %v338, %v575
      %v577 = vpop.f32.mrf.mxu0
      %v578 = vadd.f32 %v342, %v577
      %579 = vmatprep.mubr.f32.mxu0 0.0
      %580 = vmatmul.mubr.f32.gmra.mxu0 %v376
      %v581 = vpop.f32.mrf.mxu0
      %v582 = vadd.f32 %v338, %v581
      %v583 = vpop.f32.mrf.mxu0
      %v584 = vadd.f32 %v342, %v583
      %585 = vmatprep.mubr.f32.mxu0 0.0
      %586 = vmatmul.mubr.f32.gmra.mxu0 %v379
      %v587 = vpop.f32.mrf.mxu0
      %v588 = vadd.f32 %v338, %v587
      %v589 = vpop.f32.mrf.mxu0
      %v590 = vadd.f32 %v342, %v589
      %591 = vmatprep.mubr.f32.mxu0 0.0
      %592 = vmatmul.mubr.f32.gmra.mxu0 %v382
      %v593 = vpop.f32.mrf.mxu0
      %v594 = vadd.f32 %v338, %v593
      %v595 = vpop.f32.mrf.mxu0
      %v596 = vadd.f32 %v342, %v595
      %597 = vmatprep.mubr.f32.mxu0 0.0
      %598 = vmatmul.mubr.f32.gmra.mxu0 %v385
      %v599 = vpop.f32.mrf.mxu0
      %v600 = vadd.f32 %v338, %v599
      %v601 = vpop.f32.mrf.mxu0
      %v602 = vadd.f32 %v342, %v601
      %603 = vmatprep.mubr.f32.mxu0 0.0
      %604 = vmatmul.mubr.f32.gmra.mxu0 %v388
      %v605 = vpop.f32.mrf.mxu0
      %v606 = vadd.f32 %v338, %v605
      %v607 = vpop.f32.mrf.mxu0
      %v608 = vadd.f32 %v342, %v607
      %609 = vmatprep.mubr.f32.mxu0 0.0
      %610 = vmatmul.mubr.f32.gmra.mxu0 %v391
      %v611 = vpop.f32.mrf.mxu0
      %v612 = vadd.f32 %v338, %v611
      %v613 = vpop.f32.mrf.mxu0
      %v614 = vadd.f32 %v342, %v613
      %615 = vmatprep.mubr.f32.mxu0 0.0
      %616 = vmatmul.mubr.f32.gmra.mxu0 %v394
      %v617 = vpop.f32.mrf.mxu0
      %v618 = vadd.f32 %v338, %v617
      %v619 = vpop.f32.mrf.mxu0
      %v620 = vadd.f32 %v342, %v619
      %621 = vmatprep.mubr.f32.mxu0 0.0
      %622 = vmatmul.mubr.f32.gmra.mxu0 %v397
      %v623 = vpop.f32.mrf.mxu0
      %v624 = vadd.f32 %v338, %v623
      %v625 = vpop.f32.mrf.mxu0
      %v626 = vadd.f32 %v342, %v625
      %627 = vmatprep.mubr.f32.mxu0 0.0
      %628 = vmatmul.mubr.f32.gmra.mxu0 %v400
      %v629 = vpop.f32.mrf.mxu0
      %v630 = vadd.f32 %v338, %v629
      %v631 = vpop.f32.mrf.mxu0
      %v632 = vadd.f32 %v342, %v631
      %633 = vmatprep.mubr.f32.mxu0 0.0
      %634 = vmatmul.mubr.f32.gmra.mxu0 %v403
      %v635 = vpop.f32.mrf.mxu0
      %v636 = vadd.f32 %v338, %v635
      %v637 = vpop.f32.mrf.mxu0
      %v638 = vadd.f32 %v342, %v637
      %639 = vmatprep.mubr.f32.mxu0 0.0
      %640 = vmatmul.mubr.f32.gmra.mxu0 %v406
      %v641 = vpop.f32.mrf.mxu0
      %v642 = vadd.f32 %v338, %v641
      %v643 = vpop.f32.mrf.mxu0
      %v644 = vadd.f32 %v342, %v643
      %645 = vmatprep.mubr.f32.mxu0 0.0
      %646 = vmatmul.mubr.f32.gmra.mxu0 %v409
      %v647 = vpop.f32.mrf.mxu0
      %v648 = vadd.f32 %v338, %v647
      %v649 = vpop.f32.mrf.mxu0
      %v650 = vadd.f32 %v342, %v649
      %651 = vmatprep.mubr.f32.mxu0 0.0
      %652 = vmatmul.mubr.f32.gmra.mxu0 %v412
      %v653 = vpop.f32.mrf.mxu0
      %v654 = vadd.f32 %v338, %v653
      %v655 = vpop.f32.mrf.mxu0
      %v656 = vadd.f32 %v342, %v655
      %657 = vmatprep.mubr.f32.mxu0 0.0
      %658 = vmatmul.mubr.f32.gmra.mxu0 %v415
      %v659 = vpop.f32.mrf.mxu0
      %v660 = vadd.f32 %v338, %v659
      %v661 = vpop.f32.mrf.mxu0
      %v662 = vadd.f32 %v342, %v661
      %663 = vmatprep.mubr.f32.mxu0 0.0
      %664 = vmatmul.mubr.f32.gmra.mxu0 %v418
      %v665 = vpop.f32.mrf.mxu0
      %v666 = vadd.f32 %v338, %v665
      %v667 = vpop.f32.mrf.mxu0
      %v668 = vadd.f32 %v342, %v667
      %669 = vmatprep.mubr.f32.mxu0 0.0
      %670 = vmatmul.mubr.f32.gmra.mxu0 %v421
      %v671 = vpop.f32.mrf.mxu0
      %v672 = vadd.f32 %v338, %v671
      %v673 = vpop.f32.mrf.mxu0
      %v674 = vadd.f32 %v342, %v673
      %675 = vmatprep.mubr.f32.mxu0 0.0
      %676 = vmatmul.mubr.f32.gmra.mxu0 %v424
      %v677 = vpop.f32.mrf.mxu0
      %v678 = vadd.f32 %v338, %v677
      %v679 = vpop.f32.mrf.mxu0
      %v680 = vadd.f32 %v342, %v679
      %681 = vmatprep.mubr.f32.mxu0 0.0
      %682 = vmatmul.mubr.f32.gmra.mxu0 %v427
      %v683 = vpop.f32.mrf.mxu0
      %v684 = vadd.f32 %v338, %v683
      %v685 = vpop.f32.mrf.mxu0
      %v686 = vadd.f32 %v342, %v685
      %687 = vmatprep.mubr.f32.mxu0 0.0
      %688 = vmatmul.mubr.f32.gmra.mxu0 %v430
      %v689 = vpop.f32.mrf.mxu0
      %v690 = vadd.f32 %v338, %v689
      %v691 = vpop.f32.mrf.mxu0
      %v692 = vadd.f32 %v342, %v691
      %693 = vmatprep.mubr.f32.mxu0 0.0
      %694 = vmatmul.mubr.f32.gmra.mxu0 %v433
      %v695 = vpop.f32.mrf.mxu0
      %v696 = vadd.f32 %v338, %v695
      %v697 = vpop.f32.mrf.mxu0
      %v698 = vadd.f32 %v342, %v697
      %699 = vmatprep.mubr.f32.mxu0 0.0
      %700 = vmatmul.mubr.f32.gmra.mxu0 %v436
      %v701 = vpop.f32.mrf.mxu0
      %v702 = vadd.f32 %v338, %v701
      %v703 = vpop.f32.mrf.mxu0
      %v704 = vadd.f32 %v342, %v703
      %705 = vmatprep.mubr.f32.mxu0 0.0
      %706 = vmatmul.mubr.f32.gmra.mxu0 %v439
      %v707 = vpop.f32.mrf.mxu0
      %v708 = vadd.f32 %v338, %v707
      %v709 = vpop.f32.mrf.mxu0
      %v710 = vadd.f32 %v342, %v709
      %711 = vmatprep.mubr.f32.mxu0 0.0
      %712 = vmatmul.mubr.f32.gmra.mxu0 %v442
      %v713 = vpop.f32.mrf.mxu0
      %v714 = vadd.f32 %v338, %v713
      %v715 = vpop.f32.mrf.mxu0
      %v716 = vadd.f32 %v342, %v715
      %717 = vmatprep.mubr.f32.mxu0 0.0
      %718 = vmatmul.mubr.f32.gmra.mxu0 %v445
      %v719 = vpop.f32.mrf.mxu0
      %v720 = vadd.f32 %v338, %v719
      %v721 = vpop.f32.mrf.mxu0
      %v722 = vadd.f32 %v342, %v721
      %723 = vmatprep.mubr.f32.mxu0 0.0
      %724 = vmatmul.mubr.f32.gmra.mxu0 %v448
      %v725 = vpop.f32.mrf.mxu0
      %v726 = vadd.f32 %v338, %v725
      %v727 = vpop.f32.mrf.mxu0
      %v728 = vadd.f32 %v342, %v727
      %729 = vmatprep.mubr.f32.mxu0 0.0
      %730 = vmatmul.mubr.f32.gmra.mxu0 %v451
      %v731 = vpop.f32.mrf.mxu0
      %v732 = vadd.f32 %v338, %v731
      %v733 = vpop.f32.mrf.mxu0
      %v734 = vadd.f32 %v342, %v733
      %735 = vmatprep.mubr.f32.mxu0 0.0
      %736 = vmatmul.mubr.f32.gmra.mxu0 %v454
      %v737 = vpop.f32.mrf.mxu0
      %v738 = vadd.f32 %v338, %v737
      %v739 = vpop.f32.mrf.mxu0
      %v740 = vadd.f32 %v342, %v739
      %741 = vdwg.mxu0
      %742 = vst [vmem:[#allocation2] sm:$0xff] %v528
      %743 = vst [vmem:[#allocation2 + $0x8] sm:$0xff] %v530
      %744 = vst [vmem:[#allocation2 + $0x10] sm:$0xff] %v534
      %745 = vst [vmem:[#allocation2 + $0x18] sm:$0xff] %v536
      %746 = vst [vmem:[#allocation2 + $0x20] sm:$0xff] %v540
      %747 = vst [vmem:[#allocation2 + $0x28] sm:$0xff] %v542
      %748 = vst [vmem:[#allocation2 + $0x30] sm:$0xff] %v546
      %749 = vst [vmem:[#allocation2 + $0x38] sm:$0xff] %v548
      %750 = vst [vmem:[#allocation2 + $0x40] sm:$0xff] %v552
      %751 = vst [vmem:[#allocation2 + $0x48] sm:$0xff] %v554
      %752 = vst [vmem:[#allocation2 + $0x50] sm:$0xff] %v558
      %753 = vst [vmem:[#allocation2 + $0x58] sm:$0xff] %v560
      %754 = vst [vmem:[#allocation2 + $0x60] sm:$0xff] %v564
      %755 = vst [vmem:[#allocation2 + $0x68] sm:$0xff] %v566
      %756 = vst [vmem:[#allocation2 + $0x70] sm:$0xff] %v570
      %757 = vst [vmem:[#allocation2 + $0x78] sm:$0xff] %v572
      %758 = vst [vmem:[#allocation2 + $0x80] sm:$0xff] %v576
      %759 = vst [vmem:[#allocation2 + $0x88] sm:$0xff] %v578
      %760 = vst [vmem:[#allocation2 + $0x90] sm:$0xff] %v582
      %761 = vst [vmem:[#allocation2 + $0x98] sm:$0xff] %v584
      %762 = vst [vmem:[#allocation2 + $0xa0] sm:$0xff] %v588
      %763 = vst [vmem:[#allocation2 + $0xa8] sm:$0xff] %v590
      %764 = vst [vmem:[#allocation2 + $0xb0] sm:$0xff] %v594
      %765 = vst [vmem:[#allocation2 + $0xb8] sm:$0xff] %v596
      %766 = vst [vmem:[#allocation2 + $0xc0] sm:$0xff] %v600
      %767 = vst [vmem:[#allocation2 + $0xc8] sm:$0xff] %v602
      %768 = vst [vmem:[#allocation2 + $0xd0] sm:$0xff] %v606
      %769 = vst [vmem:[#allocation2 + $0xd8] sm:$0xff] %v608
      %770 = vst [vmem:[#allocation2 + $0xe0] sm:$0xff] %v612
      %771 = vst [vmem:[#allocation2 + $0xe8] sm:$0xff] %v614
      %772 = vst [vmem:[#allocation2 + $0xf0] sm:$0xff] %v618
      %773 = vst [vmem:[#allocation2 + $0xf8] sm:$0xff] %v620
      %774 = vst [vmem:[#allocation2 + $0x100] sm:$0xff] %v624
      %775 = vst [vmem:[#allocation2 + $0x108] sm:$0xff] %v626
      %776 = vst [vmem:[#allocation2 + $0x110] sm:$0xff] %v630
      %777 = vst [vmem:[#allocation2 + $0x118] sm:$0xff] %v632
      %778 = vst [vmem:[#allocation2 + $0x120] sm:$0xff] %v636
      %779 = vst [vmem:[#allocation2 + $0x128] sm:$0xff] %v638
      %780 = vst [vmem:[#allocation2 + $0x130] sm:$0xff] %v642
      %781 = vst [vmem:[#allocation2 + $0x138] sm:$0xff] %v644
      %782 = vst [vmem:[#allocation2 + $0x140] sm:$0xff] %v648
      %783 = vst [vmem:[#allocation2 + $0x148] sm:$0xff] %v650
      %784 = vst [vmem:[#allocation2 + $0x150] sm:$0xff] %v654
      %785 = vst [vmem:[#allocation2 + $0x158] sm:$0xff] %v656
      %786 = vst [vmem:[#allocation2 + $0x160] sm:$0xff] %v660
      %787 = vst [vmem:[#allocation2 + $0x168] sm:$0xff] %v662
      %788 = vst [vmem:[#allocation2 + $0x170] sm:$0xff] %v666
      %789 = vst [vmem:[#allocation2 + $0x178] sm:$0xff] %v668
      %790 = vst [vmem:[#allocation2 + $0x180] sm:$0xff] %v672
      %791 = vst [vmem:[#allocation2 + $0x188] sm:$0xff] %v674
      %792 = vst [vmem:[#allocation2 + $0x190] sm:$0xff] %v678
      %793 = vst [vmem:[#allocation2 + $0x198] sm:$0xff] %v680
      %794 = vst [vmem:[#allocation2 + $0x1a0] sm:$0xff] %v684
      %795 = vst [vmem:[#allocation2 + $0x1a8] sm:$0xff] %v686
      %796 = vst [vmem:[#allocation2 + $0x1b0] sm:$0xff] %v690
      %797 = vst [vmem:[#allocation2 + $0x1b8] sm:$0xff] %v692
      %798 = vst [vmem:[#allocation2 + $0x1c0] sm:$0xff] %v696
      %799 = vst [vmem:[#allocation2 + $0x1c8] sm:$0xff] %v698
      %800 = vst [vmem:[#allocation2 + $0x1d0] sm:$0xff] %v702
      %801 = vst [vmem:[#allocation2 + $0x1d8] sm:$0xff] %v704
      %802 = vst [vmem:[#allocation2 + $0x1e0] sm:$0xff] %v708
      %803 = vst [vmem:[#allocation2 + $0x1e8] sm:$0xff] %v710
      %804 = vst [vmem:[#allocation2 + $0x1f0] sm:$0xff] %v714
      %805 = vst [vmem:[#allocation2 + $0x1f8] sm:$0xff] %v716
      %806 = vst [vmem:[#allocation2 + $0x200] sm:$0xff] %v720
      %807 = vst [vmem:[#allocation2 + $0x208] sm:$0xff] %v722
      %808 = vst [vmem:[#allocation2 + $0x210] sm:$0xff] %v726
      %809 = vst [vmem:[#allocation2 + $0x218] sm:$0xff] %v728
      %810 = vst [vmem:[#allocation2 + $0x220] sm:$0xff] %v732
      %811 = vst [vmem:[#allocation2 + $0x228] sm:$0xff] %v734
      %812 = vst [vmem:[#allocation2 + $0x230] sm:$0xff] %v738
      %813 = vst [vmem:[#allocation2 + $0x238] sm:$0xff] %v740
      %v814 = vlaneseq
      %v815 = vand.u32 %v814, 127
      %v816 = vadd.s32 %v815, 128
      %vm817 = vcmp.ge.s32.totalorder %v815, 128
      %vm818 = vcmp.ge.s32.totalorder %v816, 128
      %vm819 = vcmp.lt.s32.totalorder %v815, 192
      %vm820 = vcmp.lt.s32.totalorder %v816, 192
      %vm821 = vmand %vm817, %vm819
      %vm822 = vmand %vm818, %vm820
      %v823 = vsel %vm821, 1.0, 0.5
      %v824 = vsel %vm822, 1.0, 0.5
      %v825 = vsel %vm821, 0.0, 0.5
      %v826 = vsel %vm822, 0.0, 0.5
      %v827 = vld [vmem:[#allocation2] sm:$0xff]
      %v828 = vld [vmem:[#allocation2 + $0x8] sm:$0xff]
      %v829 = vld [vmem:[#allocation2 + $0x10] sm:$0xff]
      %v830 = vld [vmem:[#allocation2 + $0x18] sm:$0xff]
      %v831 = vld [vmem:[#allocation2 + $0x20] sm:$0xff]
      %v832 = vld [vmem:[#allocation2 + $0x28] sm:$0xff]
      %v833 = vld [vmem:[#allocation2 + $0x30] sm:$0xff]
      %v834 = vld [vmem:[#allocation2 + $0x38] sm:$0xff]
      %v835 = vtanh.pop %v827
      %v836 = vtanh.pop %v828
      %v837 = vtanh.pop %v829
      %v838 = vtanh.pop %v830
      %v839 = vtanh.pop %v831
      %v840 = vtanh.pop %v832
      %v841 = vtanh.pop %v833
      %v842 = vtanh.pop %v834
      %v843 = vmul.f32 %v835, %v823
      %v844 = vmul.f32 %v836, %v824
      %v845 = vmul.f32 %v837, %v823
      %v846 = vmul.f32 %v838, %v824
      %v847 = vmul.f32 %v839, %v823
      %v848 = vmul.f32 %v840, %v824
      %v849 = vmul.f32 %v841, %v823
      %v850 = vmul.f32 %v842, %v824
      %v851 = vadd.f32 %v843, %v825
      %v852 = vadd.f32 %v844, %v826
      %v853 = vadd.f32 %v845, %v825
      %v854 = vadd.f32 %v846, %v826
      %v855 = vadd.f32 %v847, %v825
      %v856 = vadd.f32 %v848, %v826
      %v857 = vadd.f32 %v849, %v825
      %v858 = vadd.f32 %v850, %v826
      %v859 = vmul.f32 %v851, 0.0
      %v860 = vmul.f32 %v853, 0.0
      %v861 = vmul.f32 %v855, 0.0
      %v862 = vmul.f32 %v857, 0.0
      %v863 = vmul.f32 %v851, %v852
      %v864 = vmul.f32 %v853, %v854
      %v865 = vmul.f32 %v855, %v856
      %v866 = vmul.f32 %v857, %v858
      %871 = vrot.lane.b32.xlu0 %v863, 64
      %v872 = vpop.permute.xlu0 %871
      %873 = vrot.lane.b32.xlu0 %v864, 64
      %v874 = vpop.permute.xlu0 %873
      %875 = vrot.lane.b32.xlu0 %v865, 64
      %v876 = vpop.permute.xlu0 %875
      %877 = vrot.lane.b32.xlu0 %v866, 64
      %v878 = vpop.permute.xlu0 %877
      %v883 = vadd.f32 %v859, %v872
      %v884 = vadd.f32 %v860, %v874
      %v885 = vadd.f32 %v861, %v876
      %v886 = vadd.f32 %v862, %v878
      %v887 = vtanh.pop %v883
      %v888 = vtanh.pop %v884
      %v889 = vtanh.pop %v885
      %v890 = vtanh.pop %v886
      %v891 = vmul.f32 %v852, %v887
      %v892 = vmul.f32 %v854, %v888
      %v893 = vmul.f32 %v856, %v889
      %v894 = vmul.f32 %v858, %v890
      %vm895 = vcmp.ge.s32.totalorder %v815, 0
      %vm896 = vcmp.lt.s32.totalorder %v815, 32
      %vm897 = vmand %vm895, %vm896
      %v898 = vsel %vm897, 1, 0
      %vm899 = vcmp.eq.s32.totalorder %v898, 1
      %904 = vrot.lane.b32.xlu0 %v883, 64
      %v905 = vpop.permute.xlu0 %904
      %906 = vrot.lane.b32.xlu0 %v884, 64
      %v907 = vpop.permute.xlu0 %906
      %908 = vrot.lane.b32.xlu0 %v885, 64
      %v909 = vpop.permute.xlu0 %908
      %910 = vrot.lane.b32.xlu0 %v886, 64
      %v911 = vpop.permute.xlu0 %910
      %v916 = vsel %vm899, %v905, 0.0
      %v917 = vsel %vm899, %v907, 0.0
      %v918 = vsel %vm899, %v909, 0.0
      %v919 = vsel %vm899, %v911, 0.0
      %924 = vrot.lane.b32.xlu0 %v891, 64
      %v925 = vpop.permute.xlu0 %924
      %926 = vrot.lane.b32.xlu0 %v892, 64
      %v927 = vpop.permute.xlu0 %926
      %928 = vrot.lane.b32.xlu0 %v893, 64
      %v929 = vpop.permute.xlu0 %928
      %930 = vrot.lane.b32.xlu0 %v894, 64
      %v931 = vpop.permute.xlu0 %930
      %v936 = vsel %vm899, %v925, 0.0
      %v937 = vsel %vm899, %v927, 0.0
      %v938 = vsel %vm899, %v929, 0.0
      %v939 = vsel %vm899, %v931, 0.0
      %v940 = vld [vmem:[#allocation2 + $0x40] sm:$0xff]
      %v941 = vld [vmem:[#allocation2 + $0x48] sm:$0xff]
      %v942 = vld [vmem:[#allocation2 + $0x50] sm:$0xff]
      %v943 = vld [vmem:[#allocation2 + $0x58] sm:$0xff]
      %v944 = vld [vmem:[#allocation2 + $0x60] sm:$0xff]
      %v945 = vld [vmem:[#allocation2 + $0x68] sm:$0xff]
      %v946 = vld [vmem:[#allocation2 + $0x70] sm:$0xff]
      %v947 = vld [vmem:[#allocation2 + $0x78] sm:$0xff]
      %v948 = vld [vmem:[%s2] sm:$0xff]
      %v949 = vld [vmem:[%s2 + $0x8] sm:$0xff]
      %v950 = vld [vmem:[%s2 + $0x10] sm:$0xff]
      %v951 = vld [vmem:[%s2 + $0x18] sm:$0xff]
      %v952 = vld [vmem:[%s2 + $0x20] sm:$0xff]
      %v953 = vld [vmem:[%s2 + $0x28] sm:$0xff]
      %v954 = vld [vmem:[%s2 + $0x30] sm:$0xff]
      %v955 = vld [vmem:[%s2 + $0x38] sm:$0xff]
      %v956 = vld [vmem:[%s2 + $0x40] sm:$0xff]
      %v957 = vld [vmem:[%s2 + $0x48] sm:$0xff]
      %v958 = vld [vmem:[%s2 + $0x50] sm:$0xff]
      %v959 = vld [vmem:[%s2 + $0x58] sm:$0xff]
      %v960 = vld [vmem:[%s2 + $0x60] sm:$0xff]
      %v961 = vld [vmem:[%s2 + $0x68] sm:$0xff]
      %v962 = vld [vmem:[%s2 + $0x70] sm:$0xff]
      %v963 = vld [vmem:[%s2 + $0x78] sm:$0xff]
      %vm964 = vcmask 523264
      %v966 = vsel %vm964, %v936, 0
      %v969 = vsel %vm964, %v937, 0
      %v972 = vsel %vm964, %v938, 0
      %v975 = vsel %vm964, %v939, 0
      %977 = vmatprep.subr.mxu0 0.0
      %978 = vmatpush1.msra.mxu0 0.0
      %979 = vmatprep.subr.mxu0 0.0
      %980 = vmatpush1.msra.mxu0 0.0
      %981 = vmatprep.subr.mxu0 0.0
      %982 = vmatpush1.msra.mxu0 0.0
      %983 = vmatprep.subr.mxu0 0.0
      %984 = vmatpush1.msra.mxu0 0.0
      %985 = vmatprep.subr.mxu0 0.0
      %986 = vmatpush1.msra.mxu0 0.0
      %987 = vmatprep.subr.mxu0 0.0
      %988 = vmatpush1.msra.mxu0 0.0
      %989 = vmatprep.subr.mxu0 0.0
      %990 = vmatpush1.msra.mxu0 0.0
      %991 = vmatprep.subr.mxu0 0.0
      %992 = vmatpush1.msra.mxu0 0.0
      %993 = vmatprep.subr.mxu0 %v963
      %994 = vmatpush1.msra.mxu0 %v962
      %995 = vmatprep.subr.mxu0 %v961
      %996 = vmatpush1.msra.mxu0 %v960
      %997 = vmatprep.subr.mxu0 %v959
      %998 = vmatpush1.msra.mxu0 %v958
      %999 = vmatprep.subr.mxu0 %v957
      %1000 = vmatpush1.msra.mxu0 %v956
      %1001 = vmatprep.subr.mxu0 %v955
      %1002 = vmatpush1.msra.mxu0 %v954
      %1003 = vmatprep.subr.mxu0 %v953
      %1004 = vmatpush1.msra.mxu0 %v952
      %1005 = vmatprep.subr.mxu0 %v951
      %1006 = vmatpush1.msra.mxu0 %v950
      %1007 = vmatprep.subr.mxu0 %v949
      %1008 = vmatpush1.msra.mxu0 %v948
      %1009 = vmatprep.subr.mxu0 0.0
      %1010 = vmatpush2.msra.mxu0 0.0
      %1011 = vmatprep.subr.mxu0 0.0
      %1012 = vmatpush2.msra.mxu0 0.0
      %1013 = vmatprep.subr.mxu0 0.0
      %1014 = vmatpush2.msra.mxu0 0.0
      %1015 = vmatprep.subr.mxu0 0.0
      %1016 = vmatpush2.msra.mxu0 0.0
      %1017 = vmatprep.subr.mxu0 0.0
      %1018 = vmatpush2.msra.mxu0 0.0
      %1019 = vmatprep.subr.mxu0 0.0
      %1020 = vmatpush2.msra.mxu0 0.0
      %1021 = vmatprep.subr.mxu0 0.0
      %1022 = vmatpush2.msra.mxu0 0.0
      %1023 = vmatprep.subr.mxu0 0.0
      %1024 = vmatpush2.msra.mxu0 0.0
      %1025 = vmatprep.subr.mxu0 0.0
      %1026 = vmatpush2.msra.mxu0 0.0
      %1027 = vmatprep.subr.mxu0 0.0
      %1028 = vmatpush2.msra.mxu0 0.0
      %1029 = vmatprep.subr.mxu0 0.0
      %1030 = vmatpush2.msra.mxu0 0.0
      %1031 = vmatprep.subr.mxu0 0.0
      %1032 = vmatpush2.msra.mxu0 0.0
      %1033 = vmatprep.subr.mxu0 0.0
      %1034 = vmatpush2.msra.mxu0 0.0
      %1035 = vmatprep.subr.mxu0 0.0
      %1036 = vmatpush2.msra.mxu0 0.0
      %1037 = vmatprep.subr.mxu0 0.0
      %1038 = vmatpush2.msra.mxu0 0.0
      %1039 = vmatprep.subr.mxu0 0.0
      %1040 = vmatpush2.msra.mxu0 0.0
      %1041 = vmatprep.mubr.f32.mxu0 0.0
      %1042 = vmatmul.mubr.f32.gmra.mxu0 %v966
      %v1043 = vpop.f32.mrf.mxu0
      %v1044 = vadd.f32 0.0, %v1043
      %v1045 = vpop.f32.mrf.mxu0
      %v1046 = vadd.f32 0.0, %v1045
      %1047 = vmatprep.mubr.f32.mxu0 0.0
      %1048 = vmatmul.mubr.f32.gmra.mxu0 %v969
      %v1049 = vpop.f32.mrf.mxu0
      %v1050 = vadd.f32 0.0, %v1049
      %v1051 = vpop.f32.mrf.mxu0
      %v1052 = vadd.f32 0.0, %v1051
      %1053 = vmatprep.mubr.f32.mxu0 0.0
      %1054 = vmatmul.mubr.f32.gmra.mxu0 %v972
      %v1055 = vpop.f32.mrf.mxu0
      %v1056 = vadd.f32 0.0, %v1055
      %v1057 = vpop.f32.mrf.mxu0
      %v1058 = vadd.f32 0.0, %v1057
      %1059 = vmatprep.mubr.f32.mxu0 0.0
      %1060 = vmatmul.mubr.f32.gmra.mxu0 %v975
      %v1061 = vpop.f32.mrf.mxu0
      %v1062 = vadd.f32 0.0, %v1061
      %v1063 = vpop.f32.mrf.mxu0
      %v1064 = vadd.f32 0.0, %v1063
      %1065 = vdwg.mxu0
      %v1066 = vadd.f32 %v940, %v1044
      %v1067 = vadd.f32 %v941, %v1046
      %v1068 = vadd.f32 %v942, %v1050
      %v1069 = vadd.f32 %v943, %v1052
      %v1070 = vadd.f32 %v944, %v1056
      %v1071 = vadd.f32 %v945, %v1058
      %v1072 = vadd.f32 %v946, %v1062
      %v1073 = vadd.f32 %v947, %v1064
      %v1074 = vtanh.pop %v1066
      %v1075 = vtanh.pop %v1067
      %v1076 = vtanh.pop %v1068
      %v1077 = vtanh.pop %v1069
      %v1078 = vtanh.pop %v1070
      %v1079 = vtanh.pop %v1071
      %v1080 = vtanh.pop %v1072
      %v1081 = vtanh.pop %v1073
      %v1082 = vmul.f32 %v1074, %v823
      %v1083 = vmul.f32 %v1075, %v824
      %v1084 = vmul.f32 %v1076, %v823
      %v1085 = vmul.f32 %v1077, %v824
      %v1086 = vmul.f32 %v1078, %v823
      %v1087 = vmul.f32 %v1079, %v824
      %v1088 = vmul.f32 %v1080, %v823
      %v1089 = vmul.f32 %v1081, %v824
      %v1090 = vadd.f32 %v1082, %v825
      %v1091 = vadd.f32 %v1083, %v826
      %v1092 = vadd.f32 %v1084, %v825
      %v1093 = vadd.f32 %v1085, %v826
      %v1094 = vadd.f32 %v1086, %v825
      %v1095 = vadd.f32 %v1087, %v826
      %v1096 = vadd.f32 %v1088, %v825
      %v1097 = vadd.f32 %v1089, %v826
      %1102 = vrot.lane.b32.xlu0 %v916, 64
      %v1103 = vpop.permute.xlu0 %1102
      %1104 = vrot.lane.b32.xlu0 %v917, 64
      %v1105 = vpop.permute.xlu0 %1104
      %1106 = vrot.lane.b32.xlu0 %v918, 64
      %v1107 = vpop.permute.xlu0 %1106
      %1108 = vrot.lane.b32.xlu0 %v919, 64
      %v1109 = vpop.permute.xlu0 %1108
      %v1114 = vmul.f32 %v1090, %v1103
      %v1115 = vmul.f32 %v1092, %v1105
      %v1116 = vmul.f32 %v1094, %v1107
      %v1117 = vmul.f32 %v1096, %v1109
      %v1118 = vmul.f32 %v1090, %v1091
      %v1119 = vmul.f32 %v1092, %v1093
      %v1120 = vmul.f32 %v1094, %v1095
      %v1121 = vmul.f32 %v1096, %v1097
      %1126 = vrot.lane.b32.xlu0 %v1118, 64
      %v1127 = vpop.permute.xlu0 %1126
      %1128 = vrot.lane.b32.xlu0 %v1119, 64
      %v1129 = vpop.permute.xlu0 %1128
      %1130 = vrot.lane.b32.xlu0 %v1120, 64
      %v1131 = vpop.permute.xlu0 %1130
      %1132 = vrot.lane.b32.xlu0 %v1121, 64
      %v1133 = vpop.permute.xlu0 %1132
      %v1138 = vadd.f32 %v1114, %v1127
      %v1139 = vadd.f32 %v1115, %v1129
      %v1140 = vadd.f32 %v1116, %v1131
      %v1141 = vadd.f32 %v1117, %v1133
      %v1142 = vtanh.pop %v1138
      %v1143 = vtanh.pop %v1139
      %v1144 = vtanh.pop %v1140
      %v1145 = vtanh.pop %v1141
      %v1146 = vmul.f32 %v1091, %v1142
      %v1147 = vmul.f32 %v1093, %v1143
      %v1148 = vmul.f32 %v1095, %v1144
      %v1149 = vmul.f32 %v1097, %v1145
      %1154 = vrot.lane.b32.xlu0 %v1146, 32
      %v1155 = vpop.permute.xlu0 %1154
      %1156 = vrot.lane.b32.xlu0 %v1147, 32
      %v1157 = vpop.permute.xlu0 %1156
      %1158 = vrot.lane.b32.xlu0 %v1148, 32
      %v1159 = vpop.permute.xlu0 %1158
      %1160 = vrot.lane.b32.xlu0 %v1149, 32
      %v1161 = vpop.permute.xlu0 %1160
      %vm1166 = vcmask 261120
      %1167 = vst.msk [vmem:[#allocation3] sm:$0xff] %vm1166, %v1155
      %1168 = vst.msk [vmem:[#allocation3 + $0x8] sm:$0xff] %vm1166, %v1157
      %1169 = vst.msk [vmem:[#allocation3 + $0x10] sm:$0xff] %vm1166, %v1159
      %1170 = vst.msk [vmem:[#allocation3 + $0x18] sm:$0xff] %vm1166, %v1161
      %v1171 = vld [vmem:[#allocation2 + $0x80] sm:$0xff]
      %v1172 = vld [vmem:[#allocation2 + $0x88] sm:$0xff]
      %v1173 = vld [vmem:[#allocation2 + $0x90] sm:$0xff]
      %v1174 = vld [vmem:[#allocation2 + $0x98] sm:$0xff]
      %v1175 = vld [vmem:[#allocation2 + $0xa0] sm:$0xff]
      %v1176 = vld [vmem:[#allocation2 + $0xa8] sm:$0xff]
      %v1177 = vld [vmem:[#allocation2 + $0xb0] sm:$0xff]
      %v1178 = vld [vmem:[#allocation2 + $0xb8] sm:$0xff]
      %v1179 = vld [vmem:[%s2] sm:$0xff]
      %v1180 = vld [vmem:[%s2 + $0x8] sm:$0xff]
      %v1181 = vld [vmem:[%s2 + $0x10] sm:$0xff]
      %v1182 = vld [vmem:[%s2 + $0x18] sm:$0xff]
      %v1183 = vld [vmem:[%s2 + $0x20] sm:$0xff]
      %v1184 = vld [vmem:[%s2 + $0x28] sm:$0xff]
      %v1185 = vld [vmem:[%s2 + $0x30] sm:$0xff]
      %v1186 = vld [vmem:[%s2 + $0x38] sm:$0xff]
      %v1187 = vld [vmem:[%s2 + $0x40] sm:$0xff]
      %v1188 = vld [vmem:[%s2 + $0x48] sm:$0xff]
      %v1189 = vld [vmem:[%s2 + $0x50] sm:$0xff]
      %v1190 = vld [vmem:[%s2 + $0x58] sm:$0xff]
      %v1191 = vld [vmem:[%s2 + $0x60] sm:$0xff]
      %v1192 = vld [vmem:[%s2 + $0x68] sm:$0xff]
      %v1193 = vld [vmem:[%s2 + $0x70] sm:$0xff]
      %v1194 = vld [vmem:[%s2 + $0x78] sm:$0xff]
      %1195 = vrot.lane.b32.xlu0 %v1146, 64
      %v1196 = vpop.permute.xlu0 %1195
      %1197 = vrot.lane.b32.xlu0 %v1147, 64
      %v1198 = vpop.permute.xlu0 %1197
      %1199 = vrot.lane.b32.xlu0 %v1148, 64
      %v1200 = vpop.permute.xlu0 %1199
      %1201 = vrot.lane.b32.xlu0 %v1149, 64
      %v1202 = vpop.permute.xlu0 %1201
      %v1203 = vsel %vm964, %v1196, 0
      %v1205 = vsel %vm964, %v1198, 0
      %v1207 = vsel %vm964, %v1200, 0
      %v1209 = vsel %vm964, %v1202, 0
      %1211 = vmatprep.subr.mxu0 0.0
      %1212 = vmatpush1.msra.mxu0 0.0
      %1213 = vmatprep.subr.mxu0 0.0
      %1214 = vmatpush1.msra.mxu0 0.0
      %1215 = vmatprep.subr.mxu0 0.0
      %1216 = vmatpush1.msra.mxu0 0.0
      %1217 = vmatprep.subr.mxu0 0.0
      %1218 = vmatpush1.msra.mxu0 0.0
      %1219 = vmatprep.subr.mxu0 0.0
      %1220 = vmatpush1.msra.mxu0 0.0
      %1221 = vmatprep.subr.mxu0 0.0
      %1222 = vmatpush1.msra.mxu0 0.0
      %1223 = vmatprep.subr.mxu0 0.0
      %1224 = vmatpush1.msra.mxu0 0.0
      %1225 = vmatprep.subr.mxu0 0.0
      %1226 = vmatpush1.msra.mxu0 0.0
      %1227 = vmatprep.subr.mxu0 %v1194
      %1228 = vmatpush1.msra.mxu0 %v1193
      %1229 = vmatprep.subr.mxu0 %v1192
      %1230 = vmatpush1.msra.mxu0 %v1191
      %1231 = vmatprep.subr.mxu0 %v1190
      %1232 = vmatpush1.msra.mxu0 %v1189
      %1233 = vmatprep.subr.mxu0 %v1188
      %1234 = vmatpush1.msra.mxu0 %v1187
      %1235 = vmatprep.subr.mxu0 %v1186
      %1236 = vmatpush1.msra.mxu0 %v1185
      %1237 = vmatprep.subr.mxu0 %v1184
      %1238 = vmatpush1.msra.mxu0 %v1183
      %1239 = vmatprep.subr.mxu0 %v1182
      %1240 = vmatpush1.msra.mxu0 %v1181
      %1241 = vmatprep.subr.mxu0 %v1180
      %1242 = vmatpush1.msra.mxu0 %v1179
      %1243 = vmatprep.subr.mxu0 0.0
      %1244 = vmatpush2.msra.mxu0 0.0
      %1245 = vmatprep.subr.mxu0 0.0
      %1246 = vmatpush2.msra.mxu0 0.0
      %1247 = vmatprep.subr.mxu0 0.0
      %1248 = vmatpush2.msra.mxu0 0.0
      %1249 = vmatprep.subr.mxu0 0.0
      %1250 = vmatpush2.msra.mxu0 0.0
      %1251 = vmatprep.subr.mxu0 0.0
      %1252 = vmatpush2.msra.mxu0 0.0
      %1253 = vmatprep.subr.mxu0 0.0
      %1254 = vmatpush2.msra.mxu0 0.0
      %1255 = vmatprep.subr.mxu0 0.0
      %1256 = vmatpush2.msra.mxu0 0.0
      %1257 = vmatprep.subr.mxu0 0.0
      %1258 = vmatpush2.msra.mxu0 0.0
      %1259 = vmatprep.subr.mxu0 0.0
      %1260 = vmatpush2.msra.mxu0 0.0
      %1261 = vmatprep.subr.mxu0 0.0
      %1262 = vmatpush2.msra.mxu0 0.0
      %1263 = vmatprep.subr.mxu0 0.0
      %1264 = vmatpush2.msra.mxu0 0.0
      %1265 = vmatprep.subr.mxu0 0.0
      %1266 = vmatpush2.msra.mxu0 0.0
      %1267 = vmatprep.subr.mxu0 0.0
      %1268 = vmatpush2.msra.mxu0 0.0
      %1269 = vmatprep.subr.mxu0 0.0
      %1270 = vmatpush2.msra.mxu0 0.0
      %1271 = vmatprep.subr.mxu0 0.0
      %1272 = vmatpush2.msra.mxu0 0.0
      %1273 = vmatprep.subr.mxu0 0.0
      %1274 = vmatpush2.msra.mxu0 0.0
      %1275 = vmatprep.mubr.f32.mxu0 0.0
      %1276 = vmatmul.mubr.f32.gmra.mxu0 %v1203
      %v1277 = vpop.f32.mrf.mxu0
      %v1278 = vadd.f32 0.0, %v1277
      %v1279 = vpop.f32.mrf.mxu0
      %v1280 = vadd.f32 0.0, %v1279
      %1281 = vmatprep.mubr.f32.mxu0 0.0
      %1282 = vmatmul.mubr.f32.gmra.mxu0 %v1205
      %v1283 = vpop.f32.mrf.mxu0
      %v1284 = vadd.f32 0.0, %v1283
      %v1285 = vpop.f32.mrf.mxu0
      %v1286 = vadd.f32 0.0, %v1285
      %1287 = vmatprep.mubr.f32.mxu0 0.0
      %1288 = vmatmul.mubr.f32.gmra.mxu0 %v1207
      %v1289 = vpop.f32.mrf.mxu0
      %v1290 = vadd.f32 0.0, %v1289
      %v1291 = vpop.f32.mrf.mxu0
      %v1292 = vadd.f32 0.0, %v1291
      %1293 = vmatprep.mubr.f32.mxu0 0.0
      %1294 = vmatmul.mubr.f32.gmra.mxu0 %v1209
      %v1295 = vpop.f32.mrf.mxu0
      %v1296 = vadd.f32 0.0, %v1295
      %v1297 = vpop.f32.mrf.mxu0
      %v1298 = vadd.f32 0.0, %v1297
      %1299 = vdwg.mxu0
      %v1300 = vadd.f32 %v1171, %v1278
      %v1301 = vadd.f32 %v1172, %v1280
      %v1302 = vadd.f32 %v1173, %v1284
      %v1303 = vadd.f32 %v1174, %v1286
      %v1304 = vadd.f32 %v1175, %v1290
      %v1305 = vadd.f32 %v1176, %v1292
      %v1306 = vadd.f32 %v1177, %v1296
      %v1307 = vadd.f32 %v1178, %v1298
      %v1308 = vtanh.pop %v1300
      %v1309 = vtanh.pop %v1301
      %v1310 = vtanh.pop %v1302
      %v1311 = vtanh.pop %v1303
      %v1312 = vtanh.pop %v1304
      %v1313 = vtanh.pop %v1305
      %v1314 = vtanh.pop %v1306
      %v1315 = vtanh.pop %v1307
      %v1316 = vmul.f32 %v1308, %v823
      %v1317 = vmul.f32 %v1309, %v824
      %v1318 = vmul.f32 %v1310, %v823
      %v1319 = vmul.f32 %v1311, %v824
      %v1320 = vmul.f32 %v1312, %v823
      %v1321 = vmul.f32 %v1313, %v824
      %v1322 = vmul.f32 %v1314, %v823
      %v1323 = vmul.f32 %v1315, %v824
      %v1324 = vadd.f32 %v1316, %v825
      %v1325 = vadd.f32 %v1317, %v826
      %v1326 = vadd.f32 %v1318, %v825
      %v1327 = vadd.f32 %v1319, %v826
      %v1328 = vadd.f32 %v1320, %v825
      %v1329 = vadd.f32 %v1321, %v826
      %v1330 = vadd.f32 %v1322, %v825
      %v1331 = vadd.f32 %v1323, %v826
      %v1332 = vmul.f32 %v1324, %v1138
      %v1333 = vmul.f32 %v1326, %v1139
      %v1334 = vmul.f32 %v1328, %v1140
      %v1335 = vmul.f32 %v1330, %v1141
      %v1336 = vmul.f32 %v1324, %v1325
      %v1337 = vmul.f32 %v1326, %v1327
      %v1338 = vmul.f32 %v1328, %v1329
      %v1339 = vmul.f32 %v1330, %v1331
      %1344 = vrot.lane.b32.xlu0 %v1336, 64
      %v1345 = vpop.permute.xlu0 %1344
      %1346 = vrot.lane.b32.xlu0 %v1337, 64
      %v1347 = vpop.permute.xlu0 %1346
      %1348 = vrot.lane.b32.xlu0 %v1338, 64
      %v1349 = vpop.permute.xlu0 %1348
      %1350 = vrot.lane.b32.xlu0 %v1339, 64
      %v1351 = vpop.permute.xlu0 %1350
      %v1356 = vadd.f32 %v1332, %v1345
      %v1357 = vadd.f32 %v1333, %v1347
      %v1358 = vadd.f32 %v1334, %v1349
      %v1359 = vadd.f32 %v1335, %v1351
      %v1360 = vtanh.pop %v1356
      %v1361 = vtanh.pop %v1357
      %v1362 = vtanh.pop %v1358
      %v1363 = vtanh.pop %v1359
      %v1364 = vmul.f32 %v1325, %v1360
      %v1365 = vmul.f32 %v1327, %v1361
      %v1366 = vmul.f32 %v1329, %v1362
      %v1367 = vmul.f32 %v1331, %v1363
      %1372 = vrot.lane.b32.xlu0 %v1364, 32
      %v1373 = vpop.permute.xlu0 %1372
      %1374 = vrot.lane.b32.xlu0 %v1365, 32
      %v1375 = vpop.permute.xlu0 %1374
      %1376 = vrot.lane.b32.xlu0 %v1366, 32
      %v1377 = vpop.permute.xlu0 %1376
      %1378 = vrot.lane.b32.xlu0 %v1367, 32
      %v1379 = vpop.permute.xlu0 %1378
      %1384 = vst.msk [vmem:[#allocation3 + $0x20] sm:$0xff] %vm1166, %v1373
      %1385 = vst.msk [vmem:[#allocation3 + $0x28] sm:$0xff] %vm1166, %v1375
      %1386 = vst.msk [vmem:[#allocation3 + $0x30] sm:$0xff] %vm1166, %v1377
      %1387 = vst.msk [vmem:[#allocation3 + $0x38] sm:$0xff] %vm1166, %v1379
      %v1388 = vld [vmem:[#allocation2 + $0xc0] sm:$0xff]
      %v1389 = vld [vmem:[#allocation2 + $0xc8] sm:$0xff]
      %v1390 = vld [vmem:[#allocation2 + $0xd0] sm:$0xff]
      %v1391 = vld [vmem:[#allocation2 + $0xd8] sm:$0xff]
      %v1392 = vld [vmem:[#allocation2 + $0xe0] sm:$0xff]
      %v1393 = vld [vmem:[#allocation2 + $0xe8] sm:$0xff]
      %v1394 = vld [vmem:[#allocation2 + $0xf0] sm:$0xff]
      %v1395 = vld [vmem:[#allocation2 + $0xf8] sm:$0xff]
      %v1396 = vld [vmem:[%s2] sm:$0xff]
      %v1397 = vld [vmem:[%s2 + $0x8] sm:$0xff]
      %v1398 = vld [vmem:[%s2 + $0x10] sm:$0xff]
      %v1399 = vld [vmem:[%s2 + $0x18] sm:$0xff]
      %v1400 = vld [vmem:[%s2 + $0x20] sm:$0xff]
      %v1401 = vld [vmem:[%s2 + $0x28] sm:$0xff]
      %v1402 = vld [vmem:[%s2 + $0x30] sm:$0xff]
      %v1403 = vld [vmem:[%s2 + $0x38] sm:$0xff]
      %v1404 = vld [vmem:[%s2 + $0x40] sm:$0xff]
      %v1405 = vld [vmem:[%s2 + $0x48] sm:$0xff]
      %v1406 = vld [vmem:[%s2 + $0x50] sm:$0xff]
      %v1407 = vld [vmem:[%s2 + $0x58] sm:$0xff]
      %v1408 = vld [vmem:[%s2 + $0x60] sm:$0xff]
      %v1409 = vld [vmem:[%s2 + $0x68] sm:$0xff]
      %v1410 = vld [vmem:[%s2 + $0x70] sm:$0xff]
      %v1411 = vld [vmem:[%s2 + $0x78] sm:$0xff]
      %1412 = vrot.lane.b32.xlu0 %v1364, 64
      %v1413 = vpop.permute.xlu0 %1412
      %1414 = vrot.lane.b32.xlu0 %v1365, 64
      %v1415 = vpop.permute.xlu0 %1414
      %1416 = vrot.lane.b32.xlu0 %v1366, 64
      %v1417 = vpop.permute.xlu0 %1416
      %1418 = vrot.lane.b32.xlu0 %v1367, 64
      %v1419 = vpop.permute.xlu0 %1418
      %v1420 = vsel %vm964, %v1413, 0
      %v1422 = vsel %vm964, %v1415, 0
      %v1424 = vsel %vm964, %v1417, 0
      %v1426 = vsel %vm964, %v1419, 0
      %1428 = vmatprep.subr.mxu0 0.0
      %1429 = vmatpush1.msra.mxu0 0.0
      %1430 = vmatprep.subr.mxu0 0.0
      %1431 = vmatpush1.msra.mxu0 0.0
      %1432 = vmatprep.subr.mxu0 0.0
      %1433 = vmatpush1.msra.mxu0 0.0
      %1434 = vmatprep.subr.mxu0 0.0
      %1435 = vmatpush1.msra.mxu0 0.0
      %1436 = vmatprep.subr.mxu0 0.0
      %1437 = vmatpush1.msra.mxu0 0.0
      %1438 = vmatprep.subr.mxu0 0.0
      %1439 = vmatpush1.msra.mxu0 0.0
      %1440 = vmatprep.subr.mxu0 0.0
      %1441 = vmatpush1.msra.mxu0 0.0
      %1442 = vmatprep.subr.mxu0 0.0
      %1443 = vmatpush1.msra.mxu0 0.0
      %1444 = vmatprep.subr.mxu0 %v1411
      %1445 = vmatpush1.msra.mxu0 %v1410
      %1446 = vmatprep.subr.mxu0 %v1409
      %1447 = vmatpush1.msra.mxu0 %v1408
      %1448 = vmatprep.subr.mxu0 %v1407
      %1449 = vmatpush1.msra.mxu0 %v1406
      %1450 = vmatprep.subr.mxu0 %v1405
      %1451 = vmatpush1.msra.mxu0 %v1404
      %1452 = vmatprep.subr.mxu0 %v1403
      %1453 = vmatpush1.msra.mxu0 %v1402
      %1454 = vmatprep.subr.mxu0 %v1401
      %1455 = vmatpush1.msra.mxu0 %v1400
      %1456 = vmatprep.subr.mxu0 %v1399
      %1457 = vmatpush1.msra.mxu0 %v1398
      %1458 = vmatprep.subr.mxu0 %v1397
      %1459 = vmatpush1.msra.mxu0 %v1396
      %1460 = vmatprep.subr.mxu0 0.0
      %1461 = vmatpush2.msra.mxu0 0.0
      %1462 = vmatprep.subr.mxu0 0.0
      %1463 = vmatpush2.msra.mxu0 0.0
      %1464 = vmatprep.subr.mxu0 0.0
      %1465 = vmatpush2.msra.mxu0 0.0
      %1466 = vmatprep.subr.mxu0 0.0
      %1467 = vmatpush2.msra.mxu0 0.0
      %1468 = vmatprep.subr.mxu0 0.0
      %1469 = vmatpush2.msra.mxu0 0.0
      %1470 = vmatprep.subr.mxu0 0.0
      %1471 = vmatpush2.msra.mxu0 0.0
      %1472 = vmatprep.subr.mxu0 0.0
      %1473 = vmatpush2.msra.mxu0 0.0
      %1474 = vmatprep.subr.mxu0 0.0
      %1475 = vmatpush2.msra.mxu0 0.0
      %1476 = vmatprep.subr.mxu0 0.0
      %1477 = vmatpush2.msra.mxu0 0.0
      %1478 = vmatprep.subr.mxu0 0.0
      %1479 = vmatpush2.msra.mxu0 0.0
      %1480 = vmatprep.subr.mxu0 0.0
      %1481 = vmatpush2.msra.mxu0 0.0
      %1482 = vmatprep.subr.mxu0 0.0
      %1483 = vmatpush2.msra.mxu0 0.0
      %1484 = vmatprep.subr.mxu0 0.0
      %1485 = vmatpush2.msra.mxu0 0.0
      %1486 = vmatprep.subr.mxu0 0.0
      %1487 = vmatpush2.msra.mxu0 0.0
      %1488 = vmatprep.subr.mxu0 0.0
      %1489 = vmatpush2.msra.mxu0 0.0
      %1490 = vmatprep.subr.mxu0 0.0
      %1491 = vmatpush2.msra.mxu0 0.0
      %1492 = vmatprep.mubr.f32.mxu0 0.0
      %1493 = vmatmul.mubr.f32.gmra.mxu0 %v1420
      %v1494 = vpop.f32.mrf.mxu0
      %v1495 = vadd.f32 0.0, %v1494
      %v1496 = vpop.f32.mrf.mxu0
      %v1497 = vadd.f32 0.0, %v1496
      %1498 = vmatprep.mubr.f32.mxu0 0.0
      %1499 = vmatmul.mubr.f32.gmra.mxu0 %v1422
      %v1500 = vpop.f32.mrf.mxu0
      %v1501 = vadd.f32 0.0, %v1500
      %v1502 = vpop.f32.mrf.mxu0
      %v1503 = vadd.f32 0.0, %v1502
      %1504 = vmatprep.mubr.f32.mxu0 0.0
      %1505 = vmatmul.mubr.f32.gmra.mxu0 %v1424
      %v1506 = vpop.f32.mrf.mxu0
      %v1507 = vadd.f32 0.0, %v1506
      %v1508 = vpop.f32.mrf.mxu0
      %v1509 = vadd.f32 0.0, %v1508
      %1510 = vmatprep.mubr.f32.mxu0 0.0
      %1511 = vmatmul.mubr.f32.gmra.mxu0 %v1426
      %v1512 = vpop.f32.mrf.mxu0
      %v1513 = vadd.f32 0.0, %v1512
      %v1514 = vpop.f32.mrf.mxu0
      %v1515 = vadd.f32 0.0, %v1514
      %1516 = vdwg.mxu0
      %v1517 = vadd.f32 %v1388, %v1495
      %v1518 = vadd.f32 %v1389, %v1497
      %v1519 = vadd.f32 %v1390, %v1501
      %v1520 = vadd.f32 %v1391, %v1503
      %v1521 = vadd.f32 %v1392, %v1507
      %v1522 = vadd.f32 %v1393, %v1509
      %v1523 = vadd.f32 %v1394, %v1513
      %v1524 = vadd.f32 %v1395, %v1515
      %v1525 = vtanh.pop %v1517
      %v1526 = vtanh.pop %v1518
      %v1527 = vtanh.pop %v1519
      %v1528 = vtanh.pop %v1520
      %v1529 = vtanh.pop %v1521
      %v1530 = vtanh.pop %v1522
      %v1531 = vtanh.pop %v1523
      %v1532 = vtanh.pop %v1524
      %v1533 = vmul.f32 %v1525, %v823
      %v1534 = vmul.f32 %v1526, %v824
      %v1535 = vmul.f32 %v1527, %v823
      %v1536 = vmul.f32 %v1528, %v824
      %v1537 = vmul.f32 %v1529, %v823
      %v1538 = vmul.f32 %v1530, %v824
      %v1539 = vmul.f32 %v1531, %v823
      %v1540 = vmul.f32 %v1532, %v824
      %v1541 = vadd.f32 %v1533, %v825
      %v1542 = vadd.f32 %v1534, %v826
      %v1543 = vadd.f32 %v1535, %v825
      %v1544 = vadd.f32 %v1536, %v826
      %v1545 = vadd.f32 %v1537, %v825
      %v1546 = vadd.f32 %v1538, %v826
      %v1547 = vadd.f32 %v1539, %v825
      %v1548 = vadd.f32 %v1540, %v826
      %v1549 = vmul.f32 %v1541, %v1356
      %v1550 = vmul.f32 %v1543, %v1357
      %v1551 = vmul.f32 %v1545, %v1358
      %v1552 = vmul.f32 %v1547, %v1359
      %v1553 = vmul.f32 %v1541, %v1542
      %v1554 = vmul.f32 %v1543, %v1544
      %v1555 = vmul.f32 %v1545, %v1546
      %v1556 = vmul.f32 %v1547, %v1548
      %1561 = vrot.lane.b32.xlu0 %v1553, 64
      %v1562 = vpop.permute.xlu0 %1561
      %1563 = vrot.lane.b32.xlu0 %v1554, 64
      %v1564 = vpop.permute.xlu0 %1563
      %1565 = vrot.lane.b32.xlu0 %v1555, 64
      %v1566 = vpop.permute.xlu0 %1565
      %1567 = vrot.lane.b32.xlu0 %v1556, 64
      %v1568 = vpop.permute.xlu0 %1567
      %v1573 = vadd.f32 %v1549, %v1562
      %v1574 = vadd.f32 %v1550, %v1564
      %v1575 = vadd.f32 %v1551, %v1566
      %v1576 = vadd.f32 %v1552, %v1568
      %v1577 = vtanh.pop %v1573
      %v1578 = vtanh.pop %v1574
      %v1579 = vtanh.pop %v1575
      %v1580 = vtanh.pop %v1576
      %v1581 = vmul.f32 %v1542, %v1577
      %v1582 = vmul.f32 %v1544, %v1578
      %v1583 = vmul.f32 %v1546, %v1579
      %v1584 = vmul.f32 %v1548, %v1580
      %1589 = vrot.lane.b32.xlu0 %v1581, 32
      %v1590 = vpop.permute.xlu0 %1589
      %1591 = vrot.lane.b32.xlu0 %v1582, 32
      %v1592 = vpop.permute.xlu0 %1591
      %1593 = vrot.lane.b32.xlu0 %v1583, 32
      %v1594 = vpop.permute.xlu0 %1593
      %1595 = vrot.lane.b32.xlu0 %v1584, 32
      %v1596 = vpop.permute.xlu0 %1595
      %1601 = vst.msk [vmem:[#allocation3 + $0x40] sm:$0xff] %vm1166, %v1590
      %1602 = vst.msk [vmem:[#allocation3 + $0x48] sm:$0xff] %vm1166, %v1592
      %1603 = vst.msk [vmem:[#allocation3 + $0x50] sm:$0xff] %vm1166, %v1594
      %1604 = vst.msk [vmem:[#allocation3 + $0x58] sm:$0xff] %vm1166, %v1596
      %v1605 = vld [vmem:[#allocation2 + $0x100] sm:$0xff]
      %v1606 = vld [vmem:[#allocation2 + $0x108] sm:$0xff]
      %v1607 = vld [vmem:[#allocation2 + $0x110] sm:$0xff]
      %v1608 = vld [vmem:[#allocation2 + $0x118] sm:$0xff]
      %v1609 = vld [vmem:[#allocation2 + $0x120] sm:$0xff]
      %v1610 = vld [vmem:[#allocation2 + $0x128] sm:$0xff]
      %v1611 = vld [vmem:[#allocation2 + $0x130] sm:$0xff]
      %v1612 = vld [vmem:[#allocation2 + $0x138] sm:$0xff]
      %v1613 = vld [vmem:[%s2] sm:$0xff]
      %v1614 = vld [vmem:[%s2 + $0x8] sm:$0xff]
      %v1615 = vld [vmem:[%s2 + $0x10] sm:$0xff]
      %v1616 = vld [vmem:[%s2 + $0x18] sm:$0xff]
      %v1617 = vld [vmem:[%s2 + $0x20] sm:$0xff]
      %v1618 = vld [vmem:[%s2 + $0x28] sm:$0xff]
      %v1619 = vld [vmem:[%s2 + $0x30] sm:$0xff]
      %v1620 = vld [vmem:[%s2 + $0x38] sm:$0xff]
      %v1621 = vld [vmem:[%s2 + $0x40] sm:$0xff]
      %v1622 = vld [vmem:[%s2 + $0x48] sm:$0xff]
      %v1623 = vld [vmem:[%s2 + $0x50] sm:$0xff]
      %v1624 = vld [vmem:[%s2 + $0x58] sm:$0xff]
      %v1625 = vld [vmem:[%s2 + $0x60] sm:$0xff]
      %v1626 = vld [vmem:[%s2 + $0x68] sm:$0xff]
      %v1627 = vld [vmem:[%s2 + $0x70] sm:$0xff]
      %v1628 = vld [vmem:[%s2 + $0x78] sm:$0xff]
      %1629 = vrot.lane.b32.xlu0 %v1581, 64
      %v1630 = vpop.permute.xlu0 %1629
      %1631 = vrot.lane.b32.xlu0 %v1582, 64
      %v1632 = vpop.permute.xlu0 %1631
      %1633 = vrot.lane.b32.xlu0 %v1583, 64
      %v1634 = vpop.permute.xlu0 %1633
      %1635 = vrot.lane.b32.xlu0 %v1584, 64
      %v1636 = vpop.permute.xlu0 %1635
      %v1637 = vsel %vm964, %v1630, 0
      %v1639 = vsel %vm964, %v1632, 0
      %v1641 = vsel %vm964, %v1634, 0
      %v1643 = vsel %vm964, %v1636, 0
      %1645 = vmatprep.subr.mxu0 0.0
      %1646 = vmatpush1.msra.mxu0 0.0
      %1647 = vmatprep.subr.mxu0 0.0
      %1648 = vmatpush1.msra.mxu0 0.0
      %1649 = vmatprep.subr.mxu0 0.0
      %1650 = vmatpush1.msra.mxu0 0.0
      %1651 = vmatprep.subr.mxu0 0.0
      %1652 = vmatpush1.msra.mxu0 0.0
      %1653 = vmatprep.subr.mxu0 0.0
      %1654 = vmatpush1.msra.mxu0 0.0
      %1655 = vmatprep.subr.mxu0 0.0
      %1656 = vmatpush1.msra.mxu0 0.0
      %1657 = vmatprep.subr.mxu0 0.0
      %1658 = vmatpush1.msra.mxu0 0.0
      %1659 = vmatprep.subr.mxu0 0.0
      %1660 = vmatpush1.msra.mxu0 0.0
      %1661 = vmatprep.subr.mxu0 %v1628
      %1662 = vmatpush1.msra.mxu0 %v1627
      %1663 = vmatprep.subr.mxu0 %v1626
      %1664 = vmatpush1.msra.mxu0 %v1625
      %1665 = vmatprep.subr.mxu0 %v1624
      %1666 = vmatpush1.msra.mxu0 %v1623
      %1667 = vmatprep.subr.mxu0 %v1622
      %1668 = vmatpush1.msra.mxu0 %v1621
      %1669 = vmatprep.subr.mxu0 %v1620
      %1670 = vmatpush1.msra.mxu0 %v1619
      %1671 = vmatprep.subr.mxu0 %v1618
      %1672 = vmatpush1.msra.mxu0 %v1617
      %1673 = vmatprep.subr.mxu0 %v1616
      %1674 = vmatpush1.msra.mxu0 %v1615
      %1675 = vmatprep.subr.mxu0 %v1614
      %1676 = vmatpush1.msra.mxu0 %v1613
      %1677 = vmatprep.subr.mxu0 0.0
      %1678 = vmatpush2.msra.mxu0 0.0
      %1679 = vmatprep.subr.mxu0 0.0
      %1680 = vmatpush2.msra.mxu0 0.0
      %1681 = vmatprep.subr.mxu0 0.0
      %1682 = vmatpush2.msra.mxu0 0.0
      %1683 = vmatprep.subr.mxu0 0.0
      %1684 = vmatpush2.msra.mxu0 0.0
      %1685 = vmatprep.subr.mxu0 0.0
      %1686 = vmatpush2.msra.mxu0 0.0
      %1687 = vmatprep.subr.mxu0 0.0
      %1688 = vmatpush2.msra.mxu0 0.0
      %1689 = vmatprep.subr.mxu0 0.0
      %1690 = vmatpush2.msra.mxu0 0.0
      %1691 = vmatprep.subr.mxu0 0.0
      %1692 = vmatpush2.msra.mxu0 0.0
      %1693 = vmatprep.subr.mxu0 0.0
      %1694 = vmatpush2.msra.mxu0 0.0
      %1695 = vmatprep.subr.mxu0 0.0
      %1696 = vmatpush2.msra.mxu0 0.0
      %1697 = vmatprep.subr.mxu0 0.0
      %1698 = vmatpush2.msra.mxu0 0.0
      %1699 = vmatprep.subr.mxu0 0.0
      %1700 = vmatpush2.msra.mxu0 0.0
      %1701 = vmatprep.subr.mxu0 0.0
      %1702 = vmatpush2.msra.mxu0 0.0
      %1703 = vmatprep.subr.mxu0 0.0
      %1704 = vmatpush2.msra.mxu0 0.0
      %1705 = vmatprep.subr.mxu0 0.0
      %1706 = vmatpush2.msra.mxu0 0.0
      %1707 = vmatprep.subr.mxu0 0.0
      %1708 = vmatpush2.msra.mxu0 0.0
      %1709 = vmatprep.mubr.f32.mxu0 0.0
      %1710 = vmatmul.mubr.f32.gmra.mxu0 %v1637
      %v1711 = vpop.f32.mrf.mxu0
      %v1712 = vadd.f32 0.0, %v1711
      %v1713 = vpop.f32.mrf.mxu0
      %v1714 = vadd.f32 0.0, %v1713
      %1715 = vmatprep.mubr.f32.mxu0 0.0
      %1716 = vmatmul.mubr.f32.gmra.mxu0 %v1639
      %v1717 = vpop.f32.mrf.mxu0
      %v1718 = vadd.f32 0.0, %v1717
      %v1719 = vpop.f32.mrf.mxu0
      %v1720 = vadd.f32 0.0, %v1719
      %1721 = vmatprep.mubr.f32.mxu0 0.0
      %1722 = vmatmul.mubr.f32.gmra.mxu0 %v1641
      %v1723 = vpop.f32.mrf.mxu0
      %v1724 = vadd.f32 0.0, %v1723
      %v1725 = vpop.f32.mrf.mxu0
      %v1726 = vadd.f32 0.0, %v1725
      %1727 = vmatprep.mubr.f32.mxu0 0.0
      %1728 = vmatmul.mubr.f32.gmra.mxu0 %v1643
      %v1729 = vpop.f32.mrf.mxu0
      %v1730 = vadd.f32 0.0, %v1729
      %v1731 = vpop.f32.mrf.mxu0
      %v1732 = vadd.f32 0.0, %v1731
      %1733 = vdwg.mxu0
      %v1734 = vadd.f32 %v1605, %v1712
      %v1735 = vadd.f32 %v1606, %v1714
      %v1736 = vadd.f32 %v1607, %v1718
      %v1737 = vadd.f32 %v1608, %v1720
      %v1738 = vadd.f32 %v1609, %v1724
      %v1739 = vadd.f32 %v1610, %v1726
      %v1740 = vadd.f32 %v1611, %v1730
      %v1741 = vadd.f32 %v1612, %v1732
      %v1742 = vtanh.pop %v1734
      %v1743 = vtanh.pop %v1735
      %v1744 = vtanh.pop %v1736
      %v1745 = vtanh.pop %v1737
      %v1746 = vtanh.pop %v1738
      %v1747 = vtanh.pop %v1739
      %v1748 = vtanh.pop %v1740
      %v1749 = vtanh.pop %v1741
      %v1750 = vmul.f32 %v1742, %v823
      %v1751 = vmul.f32 %v1743, %v824
      %v1752 = vmul.f32 %v1744, %v823
      %v1753 = vmul.f32 %v1745, %v824
      %v1754 = vmul.f32 %v1746, %v823
      %v1755 = vmul.f32 %v1747, %v824
      %v1756 = vmul.f32 %v1748, %v823
      %v1757 = vmul.f32 %v1749, %v824
      %v1758 = vadd.f32 %v1750, %v825
      %v1759 = vadd.f32 %v1751, %v826
      %v1760 = vadd.f32 %v1752, %v825
      %v1761 = vadd.f32 %v1753, %v826
      %v1762 = vadd.f32 %v1754, %v825
      %v1763 = vadd.f32 %v1755, %v826
      %v1764 = vadd.f32 %v1756, %v825
      %v1765 = vadd.f32 %v1757, %v826
      %v1766 = vmul.f32 %v1758, %v1573
      %v1767 = vmul.f32 %v1760, %v1574
      %v1768 = vmul.f32 %v1762, %v1575
      %v1769 = vmul.f32 %v1764, %v1576
      %v1770 = vmul.f32 %v1758, %v1759
      %v1771 = vmul.f32 %v1760, %v1761
      %v1772 = vmul.f32 %v1762, %v1763
      %v1773 = vmul.f32 %v1764, %v1765
      %1778 = vrot.lane.b32.xlu0 %v1770, 64
      %v1779 = vpop.permute.xlu0 %1778
      %1780 = vrot.lane.b32.xlu0 %v1771, 64
      %v1781 = vpop.permute.xlu0 %1780
      %1782 = vrot.lane.b32.xlu0 %v1772, 64
      %v1783 = vpop.permute.xlu0 %1782
      %1784 = vrot.lane.b32.xlu0 %v1773, 64
      %v1785 = vpop.permute.xlu0 %1784
      %v1790 = vadd.f32 %v1766, %v1779
      %v1791 = vadd.f32 %v1767, %v1781
      %v1792 = vadd.f32 %v1768, %v1783
      %v1793 = vadd.f32 %v1769, %v1785
      %v1794 = vtanh.pop %v1790
      %v1795 = vtanh.pop %v1791
      %v1796 = vtanh.pop %v1792
      %v1797 = vtanh.pop %v1793
      %v1798 = vmul.f32 %v1759, %v1794
      %v1799 = vmul.f32 %v1761, %v1795
      %v1800 = vmul.f32 %v1763, %v1796
      %v1801 = vmul.f32 %v1765, %v1797
      %1806 = vrot.lane.b32.xlu0 %v1798, 32
      %v1807 = vpop.permute.xlu0 %1806
      %1808 = vrot.lane.b32.xlu0 %v1799, 32
      %v1809 = vpop.permute.xlu0 %1808
      %1810 = vrot.lane.b32.xlu0 %v1800, 32
      %v1811 = vpop.permute.xlu0 %1810
      %1812 = vrot.lane.b32.xlu0 %v1801, 32
      %v1813 = vpop.permute.xlu0 %1812
      %1818 = vst.msk [vmem:[#allocation3 + $0x60] sm:$0xff] %vm1166, %v1807
      %1819 = vst.msk [vmem:[#allocation3 + $0x68] sm:$0xff] %vm1166, %v1809
      %1820 = vst.msk [vmem:[#allocation3 + $0x70] sm:$0xff] %vm1166, %v1811
      %1821 = vst.msk [vmem:[#allocation3 + $0x78] sm:$0xff] %vm1166, %v1813
      %v1822 = vld [vmem:[#allocation2 + $0x140] sm:$0xff]
      %v1823 = vld [vmem:[#allocation2 + $0x148] sm:$0xff]
      %v1824 = vld [vmem:[#allocation2 + $0x150] sm:$0xff]
      %v1825 = vld [vmem:[#allocation2 + $0x158] sm:$0xff]
      %v1826 = vld [vmem:[#allocation2 + $0x160] sm:$0xff]
      %v1827 = vld [vmem:[#allocation2 + $0x168] sm:$0xff]
      %v1828 = vld [vmem:[#allocation2 + $0x170] sm:$0xff]
      %v1829 = vld [vmem:[#allocation2 + $0x178] sm:$0xff]
      %v1830 = vld [vmem:[%s2] sm:$0xff]
      %v1831 = vld [vmem:[%s2 + $0x8] sm:$0xff]
      %v1832 = vld [vmem:[%s2 + $0x10] sm:$0xff]
      %v1833 = vld [vmem:[%s2 + $0x18] sm:$0xff]
      %v1834 = vld [vmem:[%s2 + $0x20] sm:$0xff]
      %v1835 = vld [vmem:[%s2 + $0x28] sm:$0xff]
      %v1836 = vld [vmem:[%s2 + $0x30] sm:$0xff]
      %v1837 = vld [vmem:[%s2 + $0x38] sm:$0xff]
      %v1838 = vld [vmem:[%s2 + $0x40] sm:$0xff]
      %v1839 = vld [vmem:[%s2 + $0x48] sm:$0xff]
      %v1840 = vld [vmem:[%s2 + $0x50] sm:$0xff]
      %v1841 = vld [vmem:[%s2 + $0x58] sm:$0xff]
      %v1842 = vld [vmem:[%s2 + $0x60] sm:$0xff]
      %v1843 = vld [vmem:[%s2 + $0x68] sm:$0xff]
      %v1844 = vld [vmem:[%s2 + $0x70] sm:$0xff]
      %v1845 = vld [vmem:[%s2 + $0x78] sm:$0xff]
      %1846 = vrot.lane.b32.xlu0 %v1798, 64
      %v1847 = vpop.permute.xlu0 %1846
      %1848 = vrot.lane.b32.xlu0 %v1799, 64
      %v1849 = vpop.permute.xlu0 %1848
      %1850 = vrot.lane.b32.xlu0 %v1800, 64
      %v1851 = vpop.permute.xlu0 %1850
      %1852 = vrot.lane.b32.xlu0 %v1801, 64
      %v1853 = vpop.permute.xlu0 %1852
      %v1854 = vsel %vm964, %v1847, 0
      %v1856 = vsel %vm964, %v1849, 0
      %v1858 = vsel %vm964, %v1851, 0
      %v1860 = vsel %vm964, %v1853, 0
      %1862 = vmatprep.subr.mxu0 0.0
      %1863 = vmatpush1.msra.mxu0 0.0
      %1864 = vmatprep.subr.mxu0 0.0
      %1865 = vmatpush1.msra.mxu0 0.0
      %1866 = vmatprep.subr.mxu0 0.0
      %1867 = vmatpush1.msra.mxu0 0.0
      %1868 = vmatprep.subr.mxu0 0.0
      %1869 = vmatpush1.msra.mxu0 0.0
      %1870 = vmatprep.subr.mxu0 0.0
      %1871 = vmatpush1.msra.mxu0 0.0
      %1872 = vmatprep.subr.mxu0 0.0
      %1873 = vmatpush1.msra.mxu0 0.0
      %1874 = vmatprep.subr.mxu0 0.0
      %1875 = vmatpush1.msra.mxu0 0.0
      %1876 = vmatprep.subr.mxu0 0.0
      %1877 = vmatpush1.msra.mxu0 0.0
      %1878 = vmatprep.subr.mxu0 %v1845
      %1879 = vmatpush1.msra.mxu0 %v1844
      %1880 = vmatprep.subr.mxu0 %v1843
      %1881 = vmatpush1.msra.mxu0 %v1842
      %1882 = vmatprep.subr.mxu0 %v1841
      %1883 = vmatpush1.msra.mxu0 %v1840
      %1884 = vmatprep.subr.mxu0 %v1839
      %1885 = vmatpush1.msra.mxu0 %v1838
      %1886 = vmatprep.subr.mxu0 %v1837
      %1887 = vmatpush1.msra.mxu0 %v1836
      %1888 = vmatprep.subr.mxu0 %v1835
      %1889 = vmatpush1.msra.mxu0 %v1834
      %1890 = vmatprep.subr.mxu0 %v1833
      %1891 = vmatpush1.msra.mxu0 %v1832
      %1892 = vmatprep.subr.mxu0 %v1831
      %1893 = vmatpush1.msra.mxu0 %v1830
      %1894 = vmatprep.subr.mxu0 0.0
      %1895 = vmatpush2.msra.mxu0 0.0
      %1896 = vmatprep.subr.mxu0 0.0
      %1897 = vmatpush2.msra.mxu0 0.0
      %1898 = vmatprep.subr.mxu0 0.0
      %1899 = vmatpush2.msra.mxu0 0.0
      %1900 = vmatprep.subr.mxu0 0.0
      %1901 = vmatpush2.msra.mxu0 0.0
      %1902 = vmatprep.subr.mxu0 0.0
      %1903 = vmatpush2.msra.mxu0 0.0
      %1904 = vmatprep.subr.mxu0 0.0
      %1905 = vmatpush2.msra.mxu0 0.0
      %1906 = vmatprep.subr.mxu0 0.0
      %1907 = vmatpush2.msra.mxu0 0.0
      %1908 = vmatprep.subr.mxu0 0.0
      %1909 = vmatpush2.msra.mxu0 0.0
      %1910 = vmatprep.subr.mxu0 0.0
      %1911 = vmatpush2.msra.mxu0 0.0
      %1912 = vmatprep.subr.mxu0 0.0
      %1913 = vmatpush2.msra.mxu0 0.0
      %1914 = vmatprep.subr.mxu0 0.0
      %1915 = vmatpush2.msra.mxu0 0.0
      %1916 = vmatprep.subr.mxu0 0.0
      %1917 = vmatpush2.msra.mxu0 0.0
      %1918 = vmatprep.subr.mxu0 0.0
      %1919 = vmatpush2.msra.mxu0 0.0
      %1920 = vmatprep.subr.mxu0 0.0
      %1921 = vmatpush2.msra.mxu0 0.0
      %1922 = vmatprep.subr.mxu0 0.0
      %1923 = vmatpush2.msra.mxu0 0.0
      %1924 = vmatprep.subr.mxu0 0.0
      %1925 = vmatpush2.msra.mxu0 0.0
      %1926 = vmatprep.mubr.f32.mxu0 0.0
      %1927 = vmatmul.mubr.f32.gmra.mxu0 %v1854
      %v1928 = vpop.f32.mrf.mxu0
      %v1929 = vadd.f32 0.0, %v1928
      %v1930 = vpop.f32.mrf.mxu0
      %v1931 = vadd.f32 0.0, %v1930
      %1932 = vmatprep.mubr.f32.mxu0 0.0
      %1933 = vmatmul.mubr.f32.gmra.mxu0 %v1856
      %v1934 = vpop.f32.mrf.mxu0
      %v1935 = vadd.f32 0.0, %v1934
      %v1936 = vpop.f32.mrf.mxu0
      %v1937 = vadd.f32 0.0, %v1936
      %1938 = vmatprep.mubr.f32.mxu0 0.0
      %1939 = vmatmul.mubr.f32.gmra.mxu0 %v1858
      %v1940 = vpop.f32.mrf.mxu0
      %v1941 = vadd.f32 0.0, %v1940
      %v1942 = vpop.f32.mrf.mxu0
      %v1943 = vadd.f32 0.0, %v1942
      %1944 = vmatprep.mubr.f32.mxu0 0.0
      %1945 = vmatmul.mubr.f32.gmra.mxu0 %v1860
      %v1946 = vpop.f32.mrf.mxu0
      %v1947 = vadd.f32 0.0, %v1946
      %v1948 = vpop.f32.mrf.mxu0
      %v1949 = vadd.f32 0.0, %v1948
      %1950 = vdwg.mxu0
      %v1951 = vadd.f32 %v1822, %v1929
      %v1952 = vadd.f32 %v1823, %v1931
      %v1953 = vadd.f32 %v1824, %v1935
      %v1954 = vadd.f32 %v1825, %v1937
      %v1955 = vadd.f32 %v1826, %v1941
      %v1956 = vadd.f32 %v1827, %v1943
      %v1957 = vadd.f32 %v1828, %v1947
      %v1958 = vadd.f32 %v1829, %v1949
      %v1959 = vtanh.pop %v1951
      %v1960 = vtanh.pop %v1952
      %v1961 = vtanh.pop %v1953
      %v1962 = vtanh.pop %v1954
      %v1963 = vtanh.pop %v1955
      %v1964 = vtanh.pop %v1956
      %v1965 = vtanh.pop %v1957
      %v1966 = vtanh.pop %v1958
      %v1967 = vmul.f32 %v1959, %v823
      %v1968 = vmul.f32 %v1960, %v824
      %v1969 = vmul.f32 %v1961, %v823
      %v1970 = vmul.f32 %v1962, %v824
      %v1971 = vmul.f32 %v1963, %v823
      %v1972 = vmul.f32 %v1964, %v824
      %v1973 = vmul.f32 %v1965, %v823
      %v1974 = vmul.f32 %v1966, %v824
      %v1975 = vadd.f32 %v1967, %v825
      %v1976 = vadd.f32 %v1968, %v826
      %v1977 = vadd.f32 %v1969, %v825
      %v1978 = vadd.f32 %v1970, %v826
      %v1979 = vadd.f32 %v1971, %v825
      %v1980 = vadd.f32 %v1972, %v826
      %v1981 = vadd.f32 %v1973, %v825
      %v1982 = vadd.f32 %v1974, %v826
      %v1983 = vmul.f32 %v1975, %v1790
      %v1984 = vmul.f32 %v1977, %v1791
      %v1985 = vmul.f32 %v1979, %v1792
      %v1986 = vmul.f32 %v1981, %v1793
      %v1987 = vmul.f32 %v1975, %v1976
      %v1988 = vmul.f32 %v1977, %v1978
      %v1989 = vmul.f32 %v1979, %v1980
      %v1990 = vmul.f32 %v1981, %v1982
      %1995 = vrot.lane.b32.xlu0 %v1987, 64
      %v1996 = vpop.permute.xlu0 %1995
      %1997 = vrot.lane.b32.xlu0 %v1988, 64
      %v1998 = vpop.permute.xlu0 %1997
      %1999 = vrot.lane.b32.xlu0 %v1989, 64
      %v2000 = vpop.permute.xlu0 %1999
      %2001 = vrot.lane.b32.xlu0 %v1990, 64
      %v2002 = vpop.permute.xlu0 %2001
      %v2007 = vadd.f32 %v1983, %v1996
      %v2008 = vadd.f32 %v1984, %v1998
      %v2009 = vadd.f32 %v1985, %v2000
      %v2010 = vadd.f32 %v1986, %v2002
      %v2011 = vtanh.pop %v2007
      %v2012 = vtanh.pop %v2008
      %v2013 = vtanh.pop %v2009
      %v2014 = vtanh.pop %v2010
      %v2015 = vmul.f32 %v1976, %v2011
      %v2016 = vmul.f32 %v1978, %v2012
      %v2017 = vmul.f32 %v1980, %v2013
      %v2018 = vmul.f32 %v1982, %v2014
      %2023 = vrot.lane.b32.xlu0 %v2015, 32
      %v2024 = vpop.permute.xlu0 %2023
      %2025 = vrot.lane.b32.xlu0 %v2016, 32
      %v2026 = vpop.permute.xlu0 %2025
      %2027 = vrot.lane.b32.xlu0 %v2017, 32
      %v2028 = vpop.permute.xlu0 %2027
      %2029 = vrot.lane.b32.xlu0 %v2018, 32
      %v2030 = vpop.permute.xlu0 %2029
      %2035 = vst.msk [vmem:[#allocation3 + $0x80] sm:$0xff] %vm1166, %v2024
      %2036 = vst.msk [vmem:[#allocation3 + $0x88] sm:$0xff] %vm1166, %v2026
      %2037 = vst.msk [vmem:[#allocation3 + $0x90] sm:$0xff] %vm1166, %v2028
      %2038 = vst.msk [vmem:[#allocation3 + $0x98] sm:$0xff] %vm1166, %v2030
      %v2039 = vld [vmem:[#allocation2 + $0x180] sm:$0xff]
      %v2040 = vld [vmem:[#allocation2 + $0x188] sm:$0xff]
      %v2041 = vld [vmem:[#allocation2 + $0x190] sm:$0xff]
      %v2042 = vld [vmem:[#allocation2 + $0x198] sm:$0xff]
      %v2043 = vld [vmem:[#allocation2 + $0x1a0] sm:$0xff]
      %v2044 = vld [vmem:[#allocation2 + $0x1a8] sm:$0xff]
      %v2045 = vld [vmem:[#allocation2 + $0x1b0] sm:$0xff]
      %v2046 = vld [vmem:[#allocation2 + $0x1b8] sm:$0xff]
      %v2047 = vld [vmem:[%s2] sm:$0xff]
      %v2048 = vld [vmem:[%s2 + $0x8] sm:$0xff]
      %v2049 = vld [vmem:[%s2 + $0x10] sm:$0xff]
      %v2050 = vld [vmem:[%s2 + $0x18] sm:$0xff]
      %v2051 = vld [vmem:[%s2 + $0x20] sm:$0xff]
      %v2052 = vld [vmem:[%s2 + $0x28] sm:$0xff]
      %v2053 = vld [vmem:[%s2 + $0x30] sm:$0xff]
      %v2054 = vld [vmem:[%s2 + $0x38] sm:$0xff]
      %v2055 = vld [vmem:[%s2 + $0x40] sm:$0xff]
      %v2056 = vld [vmem:[%s2 + $0x48] sm:$0xff]
      %v2057 = vld [vmem:[%s2 + $0x50] sm:$0xff]
      %v2058 = vld [vmem:[%s2 + $0x58] sm:$0xff]
      %v2059 = vld [vmem:[%s2 + $0x60] sm:$0xff]
      %v2060 = vld [vmem:[%s2 + $0x68] sm:$0xff]
      %v2061 = vld [vmem:[%s2 + $0x70] sm:$0xff]
      %v2062 = vld [vmem:[%s2 + $0x78] sm:$0xff]
      %2063 = vrot.lane.b32.xlu0 %v2015, 64
      %v2064 = vpop.permute.xlu0 %2063
      %2065 = vrot.lane.b32.xlu0 %v2016, 64
      %v2066 = vpop.permute.xlu0 %2065
      %2067 = vrot.lane.b32.xlu0 %v2017, 64
      %v2068 = vpop.permute.xlu0 %2067
      %2069 = vrot.lane.b32.xlu0 %v2018, 64
      %v2070 = vpop.permute.xlu0 %2069
      %v2071 = vsel %vm964, %v2064, 0
      %v2073 = vsel %vm964, %v2066, 0
      %v2075 = vsel %vm964, %v2068, 0
      %v2077 = vsel %vm964, %v2070, 0
      %2079 = vmatprep.subr.mxu0 0.0
      %2080 = vmatpush1.msra.mxu0 0.0
      %2081 = vmatprep.subr.mxu0 0.0
      %2082 = vmatpush1.msra.mxu0 0.0
      %2083 = vmatprep.subr.mxu0 0.0
      %2084 = vmatpush1.msra.mxu0 0.0
      %2085 = vmatprep.subr.mxu0 0.0
      %2086 = vmatpush1.msra.mxu0 0.0
      %2087 = vmatprep.subr.mxu0 0.0
      %2088 = vmatpush1.msra.mxu0 0.0
      %2089 = vmatprep.subr.mxu0 0.0
      %2090 = vmatpush1.msra.mxu0 0.0
      %2091 = vmatprep.subr.mxu0 0.0
      %2092 = vmatpush1.msra.mxu0 0.0
      %2093 = vmatprep.subr.mxu0 0.0
      %2094 = vmatpush1.msra.mxu0 0.0
      %2095 = vmatprep.subr.mxu0 %v2062
      %2096 = vmatpush1.msra.mxu0 %v2061
      %2097 = vmatprep.subr.mxu0 %v2060
      %2098 = vmatpush1.msra.mxu0 %v2059
      %2099 = vmatprep.subr.mxu0 %v2058
      %2100 = vmatpush1.msra.mxu0 %v2057
      %2101 = vmatprep.subr.mxu0 %v2056
      %2102 = vmatpush1.msra.mxu0 %v2055
      %2103 = vmatprep.subr.mxu0 %v2054
      %2104 = vmatpush1.msra.mxu0 %v2053
      %2105 = vmatprep.subr.mxu0 %v2052
      %2106 = vmatpush1.msra.mxu0 %v2051
      %2107 = vmatprep.subr.mxu0 %v2050
      %2108 = vmatpush1.msra.mxu0 %v2049
      %2109 = vmatprep.subr.mxu0 %v2048
      %2110 = vmatpush1.msra.mxu0 %v2047
      %2111 = vmatprep.subr.mxu0 0.0
      %2112 = vmatpush2.msra.mxu0 0.0
      %2113 = vmatprep.subr.mxu0 0.0
      %2114 = vmatpush2.msra.mxu0 0.0
      %2115 = vmatprep.subr.mxu0 0.0
      %2116 = vmatpush2.msra.mxu0 0.0
      %2117 = vmatprep.subr.mxu0 0.0
      %2118 = vmatpush2.msra.mxu0 0.0
      %2119 = vmatprep.subr.mxu0 0.0
      %2120 = vmatpush2.msra.mxu0 0.0
      %2121 = vmatprep.subr.mxu0 0.0
      %2122 = vmatpush2.msra.mxu0 0.0
      %2123 = vmatprep.subr.mxu0 0.0
      %2124 = vmatpush2.msra.mxu0 0.0
      %2125 = vmatprep.subr.mxu0 0.0
      %2126 = vmatpush2.msra.mxu0 0.0
      %2127 = vmatprep.subr.mxu0 0.0
      %2128 = vmatpush2.msra.mxu0 0.0
      %2129 = vmatprep.subr.mxu0 0.0
      %2130 = vmatpush2.msra.mxu0 0.0
      %2131 = vmatprep.subr.mxu0 0.0
      %2132 = vmatpush2.msra.mxu0 0.0
      %2133 = vmatprep.subr.mxu0 0.0
      %2134 = vmatpush2.msra.mxu0 0.0
      %2135 = vmatprep.subr.mxu0 0.0
      %2136 = vmatpush2.msra.mxu0 0.0
      %2137 = vmatprep.subr.mxu0 0.0
      %2138 = vmatpush2.msra.mxu0 0.0
      %2139 = vmatprep.subr.mxu0 0.0
      %2140 = vmatpush2.msra.mxu0 0.0
      %2141 = vmatprep.subr.mxu0 0.0
      %2142 = vmatpush2.msra.mxu0 0.0
      %2143 = vmatprep.mubr.f32.mxu0 0.0
      %2144 = vmatmul.mubr.f32.gmra.mxu0 %v2071
      %v2145 = vpop.f32.mrf.mxu0
      %v2146 = vadd.f32 0.0, %v2145
      %v2147 = vpop.f32.mrf.mxu0
      %v2148 = vadd.f32 0.0, %v2147
      %2149 = vmatprep.mubr.f32.mxu0 0.0
      %2150 = vmatmul.mubr.f32.gmra.mxu0 %v2073
      %v2151 = vpop.f32.mrf.mxu0
      %v2152 = vadd.f32 0.0, %v2151
      %v2153 = vpop.f32.mrf.mxu0
      %v2154 = vadd.f32 0.0, %v2153
      %2155 = vmatprep.mubr.f32.mxu0 0.0
      %2156 = vmatmul.mubr.f32.gmra.mxu0 %v2075
      %v2157 = vpop.f32.mrf.mxu0
      %v2158 = vadd.f32 0.0, %v2157
      %v2159 = vpop.f32.mrf.mxu0
      %v2160 = vadd.f32 0.0, %v2159
      %2161 = vmatprep.mubr.f32.mxu0 0.0
      %2162 = vmatmul.mubr.f32.gmra.mxu0 %v2077
      %v2163 = vpop.f32.mrf.mxu0
      %v2164 = vadd.f32 0.0, %v2163
      %v2165 = vpop.f32.mrf.mxu0
      %v2166 = vadd.f32 0.0, %v2165
      %2167 = vdwg.mxu0
      %v2168 = vadd.f32 %v2039, %v2146
      %v2169 = vadd.f32 %v2040, %v2148
      %v2170 = vadd.f32 %v2041, %v2152
      %v2171 = vadd.f32 %v2042, %v2154
      %v2172 = vadd.f32 %v2043, %v2158
      %v2173 = vadd.f32 %v2044, %v2160
      %v2174 = vadd.f32 %v2045, %v2164
      %v2175 = vadd.f32 %v2046, %v2166
      %v2176 = vtanh.pop %v2168
      %v2177 = vtanh.pop %v2169
      %v2178 = vtanh.pop %v2170
      %v2179 = vtanh.pop %v2171
      %v2180 = vtanh.pop %v2172
      %v2181 = vtanh.pop %v2173
      %v2182 = vtanh.pop %v2174
      %v2183 = vtanh.pop %v2175
      %v2184 = vmul.f32 %v2176, %v823
      %v2185 = vmul.f32 %v2177, %v824
      %v2186 = vmul.f32 %v2178, %v823
      %v2187 = vmul.f32 %v2179, %v824
      %v2188 = vmul.f32 %v2180, %v823
      %v2189 = vmul.f32 %v2181, %v824
      %v2190 = vmul.f32 %v2182, %v823
      %v2191 = vmul.f32 %v2183, %v824
      %v2192 = vadd.f32 %v2184, %v825
      %v2193 = vadd.f32 %v2185, %v826
      %v2194 = vadd.f32 %v2186, %v825
      %v2195 = vadd.f32 %v2187, %v826
      %v2196 = vadd.f32 %v2188, %v825
      %v2197 = vadd.f32 %v2189, %v826
      %v2198 = vadd.f32 %v2190, %v825
      %v2199 = vadd.f32 %v2191, %v826
      %v2200 = vmul.f32 %v2192, %v2007
      %v2201 = vmul.f32 %v2194, %v2008
      %v2202 = vmul.f32 %v2196, %v2009
      %v2203 = vmul.f32 %v2198, %v2010
      %v2204 = vmul.f32 %v2192, %v2193
      %v2205 = vmul.f32 %v2194, %v2195
      %v2206 = vmul.f32 %v2196, %v2197
      %v2207 = vmul.f32 %v2198, %v2199
      %2212 = vrot.lane.b32.xlu0 %v2204, 64
      %v2213 = vpop.permute.xlu0 %2212
      %2214 = vrot.lane.b32.xlu0 %v2205, 64
      %v2215 = vpop.permute.xlu0 %2214
      %2216 = vrot.lane.b32.xlu0 %v2206, 64
      %v2217 = vpop.permute.xlu0 %2216
      %2218 = vrot.lane.b32.xlu0 %v2207, 64
      %v2219 = vpop.permute.xlu0 %2218
      %v2224 = vadd.f32 %v2200, %v2213
      %v2225 = vadd.f32 %v2201, %v2215
      %v2226 = vadd.f32 %v2202, %v2217
      %v2227 = vadd.f32 %v2203, %v2219
      %v2228 = vtanh.pop %v2224
      %v2229 = vtanh.pop %v2225
      %v2230 = vtanh.pop %v2226
      %v2231 = vtanh.pop %v2227
      %v2232 = vmul.f32 %v2193, %v2228
      %v2233 = vmul.f32 %v2195, %v2229
      %v2234 = vmul.f32 %v2197, %v2230
      %v2235 = vmul.f32 %v2199, %v2231
      %2240 = vrot.lane.b32.xlu0 %v2232, 32
      %v2241 = vpop.permute.xlu0 %2240
      %2242 = vrot.lane.b32.xlu0 %v2233, 32
      %v2243 = vpop.permute.xlu0 %2242
      %2244 = vrot.lane.b32.xlu0 %v2234, 32
      %v2245 = vpop.permute.xlu0 %2244
      %2246 = vrot.lane.b32.xlu0 %v2235, 32
      %v2247 = vpop.permute.xlu0 %2246
      %2252 = vst.msk [vmem:[#allocation3 + $0xa0] sm:$0xff] %vm1166, %v2241
      %2253 = vst.msk [vmem:[#allocation3 + $0xa8] sm:$0xff] %vm1166, %v2243
      %2254 = vst.msk [vmem:[#allocation3 + $0xb0] sm:$0xff] %vm1166, %v2245
      %2255 = vst.msk [vmem:[#allocation3 + $0xb8] sm:$0xff] %vm1166, %v2247
      %v2256 = vld [vmem:[#allocation2 + $0x1c0] sm:$0xff]
      %v2257 = vld [vmem:[#allocation2 + $0x1c8] sm:$0xff]
      %v2258 = vld [vmem:[#allocation2 + $0x1d0] sm:$0xff]
      %v2259 = vld [vmem:[#allocation2 + $0x1d8] sm:$0xff]
      %v2260 = vld [vmem:[#allocation2 + $0x1e0] sm:$0xff]
      %v2261 = vld [vmem:[#allocation2 + $0x1e8] sm:$0xff]
      %v2262 = vld [vmem:[#allocation2 + $0x1f0] sm:$0xff]
      %v2263 = vld [vmem:[#allocation2 + $0x1f8] sm:$0xff]
      %v2264 = vld [vmem:[%s2] sm:$0xff]
      %v2265 = vld [vmem:[%s2 + $0x8] sm:$0xff]
      %v2266 = vld [vmem:[%s2 + $0x10] sm:$0xff]
      %v2267 = vld [vmem:[%s2 + $0x18] sm:$0xff]
      %v2268 = vld [vmem:[%s2 + $0x20] sm:$0xff]
      %v2269 = vld [vmem:[%s2 + $0x28] sm:$0xff]
      %v2270 = vld [vmem:[%s2 + $0x30] sm:$0xff]
      %v2271 = vld [vmem:[%s2 + $0x38] sm:$0xff]
      %v2272 = vld [vmem:[%s2 + $0x40] sm:$0xff]
      %v2273 = vld [vmem:[%s2 + $0x48] sm:$0xff]
      %v2274 = vld [vmem:[%s2 + $0x50] sm:$0xff]
      %v2275 = vld [vmem:[%s2 + $0x58] sm:$0xff]
      %v2276 = vld [vmem:[%s2 + $0x60] sm:$0xff]
      %v2277 = vld [vmem:[%s2 + $0x68] sm:$0xff]
      %v2278 = vld [vmem:[%s2 + $0x70] sm:$0xff]
      %v2279 = vld [vmem:[%s2 + $0x78] sm:$0xff]
      %2280 = vrot.lane.b32.xlu0 %v2232, 64
      %v2281 = vpop.permute.xlu0 %2280
      %2282 = vrot.lane.b32.xlu0 %v2233, 64
      %v2283 = vpop.permute.xlu0 %2282
      %2284 = vrot.lane.b32.xlu0 %v2234, 64
      %v2285 = vpop.permute.xlu0 %2284
      %2286 = vrot.lane.b32.xlu0 %v2235, 64
      %v2287 = vpop.permute.xlu0 %2286
      %v2288 = vsel %vm964, %v2281, 0
      %v2290 = vsel %vm964, %v2283, 0
      %v2292 = vsel %vm964, %v2285, 0
      %v2294 = vsel %vm964, %v2287, 0
      %2296 = vmatprep.subr.mxu0 0.0
      %2297 = vmatpush1.msra.mxu0 0.0
      %2298 = vmatprep.subr.mxu0 0.0
      %2299 = vmatpush1.msra.mxu0 0.0
      %2300 = vmatprep.subr.mxu0 0.0
      %2301 = vmatpush1.msra.mxu0 0.0
      %2302 = vmatprep.subr.mxu0 0.0
      %2303 = vmatpush1.msra.mxu0 0.0
      %2304 = vmatprep.subr.mxu0 0.0
      %2305 = vmatpush1.msra.mxu0 0.0
      %2306 = vmatprep.subr.mxu0 0.0
      %2307 = vmatpush1.msra.mxu0 0.0
      %2308 = vmatprep.subr.mxu0 0.0
      %2309 = vmatpush1.msra.mxu0 0.0
      %2310 = vmatprep.subr.mxu0 0.0
      %2311 = vmatpush1.msra.mxu0 0.0
      %2312 = vmatprep.subr.mxu0 %v2279
      %2313 = vmatpush1.msra.mxu0 %v2278
      %2314 = vmatprep.subr.mxu0 %v2277
      %2315 = vmatpush1.msra.mxu0 %v2276
      %2316 = vmatprep.subr.mxu0 %v2275
      %2317 = vmatpush1.msra.mxu0 %v2274
      %2318 = vmatprep.subr.mxu0 %v2273
      %2319 = vmatpush1.msra.mxu0 %v2272
      %2320 = vmatprep.subr.mxu0 %v2271
      %2321 = vmatpush1.msra.mxu0 %v2270
      %2322 = vmatprep.subr.mxu0 %v2269
      %2323 = vmatpush1.msra.mxu0 %v2268
      %2324 = vmatprep.subr.mxu0 %v2267
      %2325 = vmatpush1.msra.mxu0 %v2266
      %2326 = vmatprep.subr.mxu0 %v2265
      %2327 = vmatpush1.msra.mxu0 %v2264
      %2328 = vmatprep.subr.mxu0 0.0
      %2329 = vmatpush2.msra.mxu0 0.0
      %2330 = vmatprep.subr.mxu0 0.0
      %2331 = vmatpush2.msra.mxu0 0.0
      %2332 = vmatprep.subr.mxu0 0.0
      %2333 = vmatpush2.msra.mxu0 0.0
      %2334 = vmatprep.subr.mxu0 0.0
      %2335 = vmatpush2.msra.mxu0 0.0
      %2336 = vmatprep.subr.mxu0 0.0
      %2337 = vmatpush2.msra.mxu0 0.0
      %2338 = vmatprep.subr.mxu0 0.0
      %2339 = vmatpush2.msra.mxu0 0.0
      %2340 = vmatprep.subr.mxu0 0.0
      %2341 = vmatpush2.msra.mxu0 0.0
      %2342 = vmatprep.subr.mxu0 0.0
      %2343 = vmatpush2.msra.mxu0 0.0
      %2344 = vmatprep.subr.mxu0 0.0
      %2345 = vmatpush2.msra.mxu0 0.0
      %2346 = vmatprep.subr.mxu0 0.0
      %2347 = vmatpush2.msra.mxu0 0.0
      %2348 = vmatprep.subr.mxu0 0.0
      %2349 = vmatpush2.msra.mxu0 0.0
      %2350 = vmatprep.subr.mxu0 0.0
      %2351 = vmatpush2.msra.mxu0 0.0
      %2352 = vmatprep.subr.mxu0 0.0
      %2353 = vmatpush2.msra.mxu0 0.0
      %2354 = vmatprep.subr.mxu0 0.0
      %2355 = vmatpush2.msra.mxu0 0.0
      %2356 = vmatprep.subr.mxu0 0.0
      %2357 = vmatpush2.msra.mxu0 0.0
      %2358 = vmatprep.subr.mxu0 0.0
      %2359 = vmatpush2.msra.mxu0 0.0
      %2360 = vmatprep.mubr.f32.mxu0 0.0
      %2361 = vmatmul.mubr.f32.gmra.mxu0 %v2288
      %v2362 = vpop.f32.mrf.mxu0
      %v2363 = vadd.f32 0.0, %v2362
      %v2364 = vpop.f32.mrf.mxu0
      %v2365 = vadd.f32 0.0, %v2364
      %2366 = vmatprep.mubr.f32.mxu0 0.0
      %2367 = vmatmul.mubr.f32.gmra.mxu0 %v2290
      %v2368 = vpop.f32.mrf.mxu0
      %v2369 = vadd.f32 0.0, %v2368
      %v2370 = vpop.f32.mrf.mxu0
      %v2371 = vadd.f32 0.0, %v2370
      %2372 = vmatprep.mubr.f32.mxu0 0.0
      %2373 = vmatmul.mubr.f32.gmra.mxu0 %v2292
      %v2374 = vpop.f32.mrf.mxu0
      %v2375 = vadd.f32 0.0, %v2374
      %v2376 = vpop.f32.mrf.mxu0
      %v2377 = vadd.f32 0.0, %v2376
      %2378 = vmatprep.mubr.f32.mxu0 0.0
      %2379 = vmatmul.mubr.f32.gmra.mxu0 %v2294
      %v2380 = vpop.f32.mrf.mxu0
      %v2381 = vadd.f32 0.0, %v2380
      %v2382 = vpop.f32.mrf.mxu0
      %v2383 = vadd.f32 0.0, %v2382
      %2384 = vdwg.mxu0
      %v2385 = vadd.f32 %v2256, %v2363
      %v2386 = vadd.f32 %v2257, %v2365
      %v2387 = vadd.f32 %v2258, %v2369
      %v2388 = vadd.f32 %v2259, %v2371
      %v2389 = vadd.f32 %v2260, %v2375
      %v2390 = vadd.f32 %v2261, %v2377
      %v2391 = vadd.f32 %v2262, %v2381
      %v2392 = vadd.f32 %v2263, %v2383
      %v2393 = vtanh.pop %v2385
      %v2394 = vtanh.pop %v2386
      %v2395 = vtanh.pop %v2387
      %v2396 = vtanh.pop %v2388
      %v2397 = vtanh.pop %v2389
      %v2398 = vtanh.pop %v2390
      %v2399 = vtanh.pop %v2391
      %v2400 = vtanh.pop %v2392
      %v2401 = vmul.f32 %v2393, %v823
      %v2402 = vmul.f32 %v2394, %v824
      %v2403 = vmul.f32 %v2395, %v823
      %v2404 = vmul.f32 %v2396, %v824
      %v2405 = vmul.f32 %v2397, %v823
      %v2406 = vmul.f32 %v2398, %v824
      %v2407 = vmul.f32 %v2399, %v823
      %v2408 = vmul.f32 %v2400, %v824
      %v2409 = vadd.f32 %v2401, %v825
      %v2410 = vadd.f32 %v2402, %v826
      %v2411 = vadd.f32 %v2403, %v825
      %v2412 = vadd.f32 %v2404, %v826
      %v2413 = vadd.f32 %v2405, %v825
      %v2414 = vadd.f32 %v2406, %v826
      %v2415 = vadd.f32 %v2407, %v825
      %v2416 = vadd.f32 %v2408, %v826
      %v2417 = vmul.f32 %v2409, %v2224
      %v2418 = vmul.f32 %v2411, %v2225
      %v2419 = vmul.f32 %v2413, %v2226
      %v2420 = vmul.f32 %v2415, %v2227
      %v2421 = vmul.f32 %v2409, %v2410
      %v2422 = vmul.f32 %v2411, %v2412
      %v2423 = vmul.f32 %v2413, %v2414
      %v2424 = vmul.f32 %v2415, %v2416
      %2429 = vrot.lane.b32.xlu0 %v2421, 64
      %v2430 = vpop.permute.xlu0 %2429
      %2431 = vrot.lane.b32.xlu0 %v2422, 64
      %v2432 = vpop.permute.xlu0 %2431
      %2433 = vrot.lane.b32.xlu0 %v2423, 64
      %v2434 = vpop.permute.xlu0 %2433
      %2435 = vrot.lane.b32.xlu0 %v2424, 64
      %v2436 = vpop.permute.xlu0 %2435
      %v2441 = vadd.f32 %v2417, %v2430
      %v2442 = vadd.f32 %v2418, %v2432
      %v2443 = vadd.f32 %v2419, %v2434
      %v2444 = vadd.f32 %v2420, %v2436
      %v2445 = vtanh.pop %v2441
      %v2446 = vtanh.pop %v2442
      %v2447 = vtanh.pop %v2443
      %v2448 = vtanh.pop %v2444
      %v2449 = vmul.f32 %v2410, %v2445
      %v2450 = vmul.f32 %v2412, %v2446
      %v2451 = vmul.f32 %v2414, %v2447
      %v2452 = vmul.f32 %v2416, %v2448
      %2457 = vrot.lane.b32.xlu0 %v2449, 32
      %v2458 = vpop.permute.xlu0 %2457
      %2459 = vrot.lane.b32.xlu0 %v2450, 32
      %v2460 = vpop.permute.xlu0 %2459
      %2461 = vrot.lane.b32.xlu0 %v2451, 32
      %v2462 = vpop.permute.xlu0 %2461
      %2463 = vrot.lane.b32.xlu0 %v2452, 32
      %v2464 = vpop.permute.xlu0 %2463
      %2469 = vst.msk [vmem:[#allocation3 + $0xc0] sm:$0xff] %vm1166, %v2458
      %2470 = vst.msk [vmem:[#allocation3 + $0xc8] sm:$0xff] %vm1166, %v2460
      %2471 = vst.msk [vmem:[#allocation3 + $0xd0] sm:$0xff] %vm1166, %v2462
      %2472 = vst.msk [vmem:[#allocation3 + $0xd8] sm:$0xff] %vm1166, %v2464
      %v2473 = vld [vmem:[#allocation2 + $0x200] sm:$0xff]
      %v2474 = vld [vmem:[#allocation2 + $0x208] sm:$0xff]
      %v2475 = vld [vmem:[#allocation2 + $0x210] sm:$0xff]
      %v2476 = vld [vmem:[#allocation2 + $0x218] sm:$0xff]
      %v2477 = vld [vmem:[#allocation2 + $0x220] sm:$0xff]
      %v2478 = vld [vmem:[#allocation2 + $0x228] sm:$0xff]
      %v2479 = vld [vmem:[#allocation2 + $0x230] sm:$0xff]
      %v2480 = vld [vmem:[#allocation2 + $0x238] sm:$0xff]
      %v2481 = vld [vmem:[%s2] sm:$0xff]
      %v2482 = vld [vmem:[%s2 + $0x8] sm:$0xff]
      %v2483 = vld [vmem:[%s2 + $0x10] sm:$0xff]
      %v2484 = vld [vmem:[%s2 + $0x18] sm:$0xff]
      %v2485 = vld [vmem:[%s2 + $0x20] sm:$0xff]
      %v2486 = vld [vmem:[%s2 + $0x28] sm:$0xff]
      %v2487 = vld [vmem:[%s2 + $0x30] sm:$0xff]
      %v2488 = vld [vmem:[%s2 + $0x38] sm:$0xff]
      %v2489 = vld [vmem:[%s2 + $0x40] sm:$0xff]
      %v2490 = vld [vmem:[%s2 + $0x48] sm:$0xff]
      %v2491 = vld [vmem:[%s2 + $0x50] sm:$0xff]
      %v2492 = vld [vmem:[%s2 + $0x58] sm:$0xff]
      %v2493 = vld [vmem:[%s2 + $0x60] sm:$0xff]
      %v2494 = vld [vmem:[%s2 + $0x68] sm:$0xff]
      %v2495 = vld [vmem:[%s2 + $0x70] sm:$0xff]
      %v2496 = vld [vmem:[%s2 + $0x78] sm:$0xff]
      %2497 = vrot.lane.b32.xlu0 %v2449, 64
      %v2498 = vpop.permute.xlu0 %2497
      %2499 = vrot.lane.b32.xlu0 %v2450, 64
      %v2500 = vpop.permute.xlu0 %2499
      %2501 = vrot.lane.b32.xlu0 %v2451, 64
      %v2502 = vpop.permute.xlu0 %2501
      %2503 = vrot.lane.b32.xlu0 %v2452, 64
      %v2504 = vpop.permute.xlu0 %2503
      %v2505 = vsel %vm964, %v2498, 0
      %v2507 = vsel %vm964, %v2500, 0
      %v2509 = vsel %vm964, %v2502, 0
      %v2511 = vsel %vm964, %v2504, 0
      %2513 = vmatprep.subr.mxu0 0.0
      %2514 = vmatpush1.msra.mxu0 0.0
      %2515 = vmatprep.subr.mxu0 0.0
      %2516 = vmatpush1.msra.mxu0 0.0
      %2517 = vmatprep.subr.mxu0 0.0
      %2518 = vmatpush1.msra.mxu0 0.0
      %2519 = vmatprep.subr.mxu0 0.0
      %2520 = vmatpush1.msra.mxu0 0.0
      %2521 = vmatprep.subr.mxu0 0.0
      %2522 = vmatpush1.msra.mxu0 0.0
      %2523 = vmatprep.subr.mxu0 0.0
      %2524 = vmatpush1.msra.mxu0 0.0
      %2525 = vmatprep.subr.mxu0 0.0
      %2526 = vmatpush1.msra.mxu0 0.0
      %2527 = vmatprep.subr.mxu0 0.0
      %2528 = vmatpush1.msra.mxu0 0.0
      %2529 = vmatprep.subr.mxu0 %v2496
      %2530 = vmatpush1.msra.mxu0 %v2495
      %2531 = vmatprep.subr.mxu0 %v2494
      %2532 = vmatpush1.msra.mxu0 %v2493
      %2533 = vmatprep.subr.mxu0 %v2492
      %2534 = vmatpush1.msra.mxu0 %v2491
      %2535 = vmatprep.subr.mxu0 %v2490
      %2536 = vmatpush1.msra.mxu0 %v2489
      %2537 = vmatprep.subr.mxu0 %v2488
      %2538 = vmatpush1.msra.mxu0 %v2487
      %2539 = vmatprep.subr.mxu0 %v2486
      %2540 = vmatpush1.msra.mxu0 %v2485
      %2541 = vmatprep.subr.mxu0 %v2484
      %2542 = vmatpush1.msra.mxu0 %v2483
      %2543 = vmatprep.subr.mxu0 %v2482
      %2544 = vmatpush1.msra.mxu0 %v2481
      %2545 = vmatprep.subr.mxu0 0.0
      %2546 = vmatpush2.msra.mxu0 0.0
      %2547 = vmatprep.subr.mxu0 0.0
      %2548 = vmatpush2.msra.mxu0 0.0
      %2549 = vmatprep.subr.mxu0 0.0
      %2550 = vmatpush2.msra.mxu0 0.0
      %2551 = vmatprep.subr.mxu0 0.0
      %2552 = vmatpush2.msra.mxu0 0.0
      %2553 = vmatprep.subr.mxu0 0.0
      %2554 = vmatpush2.msra.mxu0 0.0
      %2555 = vmatprep.subr.mxu0 0.0
      %2556 = vmatpush2.msra.mxu0 0.0
      %2557 = vmatprep.subr.mxu0 0.0
      %2558 = vmatpush2.msra.mxu0 0.0
      %2559 = vmatprep.subr.mxu0 0.0
      %2560 = vmatpush2.msra.mxu0 0.0
      %2561 = vmatprep.subr.mxu0 0.0
      %2562 = vmatpush2.msra.mxu0 0.0
      %2563 = vmatprep.subr.mxu0 0.0
      %2564 = vmatpush2.msra.mxu0 0.0
      %2565 = vmatprep.subr.mxu0 0.0
      %2566 = vmatpush2.msra.mxu0 0.0
      %2567 = vmatprep.subr.mxu0 0.0
      %2568 = vmatpush2.msra.mxu0 0.0
      %2569 = vmatprep.subr.mxu0 0.0
      %2570 = vmatpush2.msra.mxu0 0.0
      %2571 = vmatprep.subr.mxu0 0.0
      %2572 = vmatpush2.msra.mxu0 0.0
      %2573 = vmatprep.subr.mxu0 0.0
      %2574 = vmatpush2.msra.mxu0 0.0
      %2575 = vmatprep.subr.mxu0 0.0
      %2576 = vmatpush2.msra.mxu0 0.0
      %2577 = vmatprep.mubr.f32.mxu0 0.0
      %2578 = vmatmul.mubr.f32.gmra.mxu0 %v2505
      %v2579 = vpop.f32.mrf.mxu0
      %v2580 = vadd.f32 0.0, %v2579
      %v2581 = vpop.f32.mrf.mxu0
      %v2582 = vadd.f32 0.0, %v2581
      %2583 = vmatprep.mubr.f32.mxu0 0.0
      %2584 = vmatmul.mubr.f32.gmra.mxu0 %v2507
      %v2585 = vpop.f32.mrf.mxu0
      %v2586 = vadd.f32 0.0, %v2585
      %v2587 = vpop.f32.mrf.mxu0
      %v2588 = vadd.f32 0.0, %v2587
      %2589 = vmatprep.mubr.f32.mxu0 0.0
      %2590 = vmatmul.mubr.f32.gmra.mxu0 %v2509
      %v2591 = vpop.f32.mrf.mxu0
      %v2592 = vadd.f32 0.0, %v2591
      %v2593 = vpop.f32.mrf.mxu0
      %v2594 = vadd.f32 0.0, %v2593
      %2595 = vmatprep.mubr.f32.mxu0 0.0
      %2596 = vmatmul.mubr.f32.gmra.mxu0 %v2511
      %v2597 = vpop.f32.mrf.mxu0
      %v2598 = vadd.f32 0.0, %v2597
      %v2599 = vpop.f32.mrf.mxu0
      %v2600 = vadd.f32 0.0, %v2599
      %2601 = vdwg.mxu0
      %v2602 = vadd.f32 %v2473, %v2580
      %v2603 = vadd.f32 %v2474, %v2582
      %v2604 = vadd.f32 %v2475, %v2586
      %v2605 = vadd.f32 %v2476, %v2588
      %v2606 = vadd.f32 %v2477, %v2592
      %v2607 = vadd.f32 %v2478, %v2594
      %v2608 = vadd.f32 %v2479, %v2598
      %v2609 = vadd.f32 %v2480, %v2600
      %v2610 = vtanh.pop %v2602
      %v2611 = vtanh.pop %v2603
      %v2612 = vtanh.pop %v2604
      %v2613 = vtanh.pop %v2605
      %v2614 = vtanh.pop %v2606
      %v2615 = vtanh.pop %v2607
      %v2616 = vtanh.pop %v2608
      %v2617 = vtanh.pop %v2609
      %v2618 = vmul.f32 %v2610, %v823
      %v2619 = vmul.f32 %v2611, %v824
      %v2620 = vmul.f32 %v2612, %v823
      %v2621 = vmul.f32 %v2613, %v824
      %v2622 = vmul.f32 %v2614, %v823
      %v2623 = vmul.f32 %v2615, %v824
      %v2624 = vmul.f32 %v2616, %v823
      %v2625 = vmul.f32 %v2617, %v824
      %v2626 = vadd.f32 %v2618, %v825
      %v2627 = vadd.f32 %v2619, %v826
      %v2628 = vadd.f32 %v2620, %v825
      %v2629 = vadd.f32 %v2621, %v826
      %v2630 = vadd.f32 %v2622, %v825
      %v2631 = vadd.f32 %v2623, %v826
      %v2632 = vadd.f32 %v2624, %v825
      %v2633 = vadd.f32 %v2625, %v826
      %v2634 = vmul.f32 %v2626, %v2441
      %v2635 = vmul.f32 %v2628, %v2442
      %v2636 = vmul.f32 %v2630, %v2443
      %v2637 = vmul.f32 %v2632, %v2444
      %v2638 = vmul.f32 %v2626, %v2627
      %v2639 = vmul.f32 %v2628, %v2629
      %v2640 = vmul.f32 %v2630, %v2631
      %v2641 = vmul.f32 %v2632, %v2633
      %2646 = vrot.lane.b32.xlu0 %v2638, 64
      %v2647 = vpop.permute.xlu0 %2646
      %2648 = vrot.lane.b32.xlu0 %v2639, 64
      %v2649 = vpop.permute.xlu0 %2648
      %2650 = vrot.lane.b32.xlu0 %v2640, 64
      %v2651 = vpop.permute.xlu0 %2650
      %2652 = vrot.lane.b32.xlu0 %v2641, 64
      %v2653 = vpop.permute.xlu0 %2652
      %v2658 = vadd.f32 %v2634, %v2647
      %v2659 = vadd.f32 %v2635, %v2649
      %v2660 = vadd.f32 %v2636, %v2651
      %v2661 = vadd.f32 %v2637, %v2653
      %v2662 = vtanh.pop %v2658
      %v2663 = vtanh.pop %v2659
      %v2664 = vtanh.pop %v2660
      %v2665 = vtanh.pop %v2661
      %v2666 = vmul.f32 %v2627, %v2662
      %v2667 = vmul.f32 %v2629, %v2663
      %v2668 = vmul.f32 %v2631, %v2664
      %v2669 = vmul.f32 %v2633, %v2665
      %vm2670 = vcmp.ge.s32.totalorder %v815, 32
      %vm2671 = vcmp.lt.s32.totalorder %v815, 64
      %vm2672 = vmand %vm2670, %vm2671
      %v2673 = vsel %vm2672, 1, 0
      %vm2674 = vcmp.eq.s32.totalorder %v2673, 1
      %2679 = vrot.lane.b32.xlu0 %v2666, 64
      %v2680 = vpop.permute.xlu0 %2679
      %2681 = vrot.lane.b32.xlu0 %v2667, 64
      %v2682 = vpop.permute.xlu0 %2681
      %2683 = vrot.lane.b32.xlu0 %v2668, 64
      %v2684 = vpop.permute.xlu0 %2683
      %2685 = vrot.lane.b32.xlu0 %v2669, 64
      %v2686 = vpop.permute.xlu0 %2685
      %v2695 = vsel %vm2674, %v2680, %v2498
      %v2696 = vsel %vm2674, %v2682, %v2500
      %v2697 = vsel %vm2674, %v2684, %v2502
      %v2698 = vsel %vm2674, %v2686, %v2504
      %2699 = vrot.lane.b32.xlu0 %v2666, 32
      %v2700 = vpop.permute.xlu0 %2699
      %2701 = vrot.lane.b32.xlu0 %v2667, 32
      %v2702 = vpop.permute.xlu0 %2701
      %2703 = vrot.lane.b32.xlu0 %v2668, 32
      %v2704 = vpop.permute.xlu0 %2703
      %2705 = vrot.lane.b32.xlu0 %v2669, 32
      %v2706 = vpop.permute.xlu0 %2705
      %2711 = vst.msk [vmem:[#allocation3 + $0xe0] sm:$0xff] %vm1166, %v2700
      %2712 = vst.msk [vmem:[#allocation3 + $0xe8] sm:$0xff] %vm1166, %v2702
      %2713 = vst.msk [vmem:[#allocation3 + $0xf0] sm:$0xff] %vm1166, %v2704
      %2714 = vst.msk [vmem:[#allocation3 + $0xf8] sm:$0xff] %vm1166, %v2706
      %2715 = vst.msk [vmem:[%s294] sm:$0xff] %vm964, %v2695
      %2716 = vst.msk [vmem:[%s294 + $0x8] sm:$0xff] %vm964, %v2696
      %2717 = vst.msk [vmem:[%s294 + $0x10] sm:$0xff] %vm964, %v2697
      %2718 = vst.msk [vmem:[%s294 + $0x18] sm:$0xff] %vm964, %v2698
      %v2719 = vld [vmem:[%s4] sm:$0x1]
      %v2720 = vld [vmem:[#allocation3] sm:$0xff]
      %v2721 = vld [vmem:[#allocation3 + $0x8] sm:$0xff]
      %v2722 = vld [vmem:[#allocation3 + $0x10] sm:$0xff]
      %v2723 = vld [vmem:[#allocation3 + $0x18] sm:$0xff]
      %v2725 = vlaneseq
      %v2726 = vshrl.u32 %v2725, 7
      %v2727 = vsub.s32 0, %v2726
      %v2728 = vrot.slane %v2719, %v2727
      %v2730 = vmul.f32 %v2720, %v2728
      %v2731 = vmul.f32 %v2721, %v2728
      %v2732 = vmul.f32 %v2722, %v2728
      %v2733 = vmul.f32 %v2723, %v2728
      %v2734 = vsel %vm1166, %v2730, 0.0
      %2735 = vadd.xlane.f32.xlu0 %v2734
      %v2736 = vpop.xlane.xlu0 %2735
      %v2737 = vsel %vm1166, %v2731, 0.0
      %2738 = vadd.xlane.f32.xlu0 %v2737
      %v2739 = vpop.xlane.xlu0 %2738
      %v2740 = vsel %vm1166, %v2732, 0.0
      %2741 = vadd.xlane.f32.xlu0 %v2740
      %v2742 = vpop.xlane.xlu0 %2741
      %v2743 = vsel %vm1166, %v2733, 0.0
      %2744 = vadd.xlane.f32.xlu0 %v2743
      %v2745 = vpop.xlane.xlu0 %2744
      %v2746 = vld [vmem:[#allocation3 + $0x20] sm:$0xff]
      %v2747 = vld [vmem:[#allocation3 + $0x28] sm:$0xff]
      %v2748 = vld [vmem:[#allocation3 + $0x30] sm:$0xff]
      %v2749 = vld [vmem:[#allocation3 + $0x38] sm:$0xff]
      %v2750 = vmul.f32 %v2746, %v2728
      %v2751 = vmul.f32 %v2747, %v2728
      %v2752 = vmul.f32 %v2748, %v2728
      %v2753 = vmul.f32 %v2749, %v2728
      %v2754 = vsel %vm1166, %v2750, 0.0
      %2755 = vadd.xlane.f32.xlu0 %v2754
      %v2756 = vpop.xlane.xlu0 %2755
      %v2757 = vsel %vm1166, %v2751, 0.0
      %2758 = vadd.xlane.f32.xlu0 %v2757
      %v2759 = vpop.xlane.xlu0 %2758
      %v2760 = vsel %vm1166, %v2752, 0.0
      %2761 = vadd.xlane.f32.xlu0 %v2760
      %v2762 = vpop.xlane.xlu0 %2761
      %v2763 = vsel %vm1166, %v2753, 0.0
      %2764 = vadd.xlane.f32.xlu0 %v2763
      %v2765 = vpop.xlane.xlu0 %2764
      %v2766 = vld [vmem:[#allocation3 + $0x40] sm:$0xff]
      %v2767 = vld [vmem:[#allocation3 + $0x48] sm:$0xff]
      %v2768 = vld [vmem:[#allocation3 + $0x50] sm:$0xff]
      %v2769 = vld [vmem:[#allocation3 + $0x58] sm:$0xff]
      %v2770 = vmul.f32 %v2766, %v2728
      %v2771 = vmul.f32 %v2767, %v2728
      %v2772 = vmul.f32 %v2768, %v2728
      %v2773 = vmul.f32 %v2769, %v2728
      %v2774 = vsel %vm1166, %v2770, 0.0
      %2775 = vadd.xlane.f32.xlu0 %v2774
      %v2776 = vpop.xlane.xlu0 %2775
      %v2777 = vsel %vm1166, %v2771, 0.0
      %2778 = vadd.xlane.f32.xlu0 %v2777
      %v2779 = vpop.xlane.xlu0 %2778
      %v2780 = vsel %vm1166, %v2772, 0.0
      %2781 = vadd.xlane.f32.xlu0 %v2780
      %v2782 = vpop.xlane.xlu0 %2781
      %v2783 = vsel %vm1166, %v2773, 0.0
      %2784 = vadd.xlane.f32.xlu0 %v2783
      %v2785 = vpop.xlane.xlu0 %2784
      %v2786 = vld [vmem:[#allocation3 + $0x60] sm:$0xff]
      %v2787 = vld [vmem:[#allocation3 + $0x68] sm:$0xff]
      %v2788 = vld [vmem:[#allocation3 + $0x70] sm:$0xff]
      %v2789 = vld [vmem:[#allocation3 + $0x78] sm:$0xff]
      %v2790 = vmul.f32 %v2786, %v2728
      %v2791 = vmul.f32 %v2787, %v2728
      %v2792 = vmul.f32 %v2788, %v2728
      %v2793 = vmul.f32 %v2789, %v2728
      %v2794 = vsel %vm1166, %v2790, 0.0
      %2795 = vadd.xlane.f32.xlu0 %v2794
      %v2796 = vpop.xlane.xlu0 %2795
      %v2797 = vsel %vm1166, %v2791, 0.0
      %2798 = vadd.xlane.f32.xlu0 %v2797
      %v2799 = vpop.xlane.xlu0 %2798
      %v2800 = vsel %vm1166, %v2792, 0.0
      %2801 = vadd.xlane.f32.xlu0 %v2800
      %v2802 = vpop.xlane.xlu0 %2801
      %v2803 = vsel %vm1166, %v2793, 0.0
      %2804 = vadd.xlane.f32.xlu0 %v2803
      %v2805 = vpop.xlane.xlu0 %2804
      %v2806 = vld [vmem:[#allocation3 + $0x80] sm:$0xff]
      %v2807 = vld [vmem:[#allocation3 + $0x88] sm:$0xff]
      %v2808 = vld [vmem:[#allocation3 + $0x90] sm:$0xff]
      %v2809 = vld [vmem:[#allocation3 + $0x98] sm:$0xff]
      %v2810 = vmul.f32 %v2806, %v2728
      %v2811 = vmul.f32 %v2807, %v2728
      %v2812 = vmul.f32 %v2808, %v2728
      %v2813 = vmul.f32 %v2809, %v2728
      %v2814 = vsel %vm1166, %v2810, 0.0
      %2815 = vadd.xlane.f32.xlu0 %v2814
      %v2816 = vpop.xlane.xlu0 %2815
      %v2817 = vsel %vm1166, %v2811, 0.0
      %2818 = vadd.xlane.f32.xlu0 %v2817
      %v2819 = vpop.xlane.xlu0 %2818
      %v2820 = vsel %vm1166, %v2812, 0.0
      %2821 = vadd.xlane.f32.xlu0 %v2820
      %v2822 = vpop.xlane.xlu0 %2821
      %v2823 = vsel %vm1166, %v2813, 0.0
      %2824 = vadd.xlane.f32.xlu0 %v2823
      %v2825 = vpop.xlane.xlu0 %2824
      %v2826 = vld [vmem:[#allocation3 + $0xa0] sm:$0xff]
      %v2827 = vld [vmem:[#allocation3 + $0xa8] sm:$0xff]
      %v2828 = vld [vmem:[#allocation3 + $0xb0] sm:$0xff]
      %v2829 = vld [vmem:[#allocation3 + $0xb8] sm:$0xff]
      %v2830 = vmul.f32 %v2826, %v2728
      %v2831 = vmul.f32 %v2827, %v2728
      %v2832 = vmul.f32 %v2828, %v2728
      %v2833 = vmul.f32 %v2829, %v2728
      %v2834 = vsel %vm1166, %v2830, 0.0
      %2835 = vadd.xlane.f32.xlu0 %v2834
      %v2836 = vpop.xlane.xlu0 %2835
      %v2837 = vsel %vm1166, %v2831, 0.0
      %2838 = vadd.xlane.f32.xlu0 %v2837
      %v2839 = vpop.xlane.xlu0 %2838
      %v2840 = vsel %vm1166, %v2832, 0.0
      %2841 = vadd.xlane.f32.xlu0 %v2840
      %v2842 = vpop.xlane.xlu0 %2841
      %v2843 = vsel %vm1166, %v2833, 0.0
      %2844 = vadd.xlane.f32.xlu0 %v2843
      %v2845 = vpop.xlane.xlu0 %2844
      %v2846 = vld [vmem:[#allocation3 + $0xc0] sm:$0xff]
      %v2847 = vld [vmem:[#allocation3 + $0xc8] sm:$0xff]
      %v2848 = vld [vmem:[#allocation3 + $0xd0] sm:$0xff]
      %v2849 = vld [vmem:[#allocation3 + $0xd8] sm:$0xff]
      %v2850 = vmul.f32 %v2846, %v2728
      %v2851 = vmul.f32 %v2847, %v2728
      %v2852 = vmul.f32 %v2848, %v2728
      %v2853 = vmul.f32 %v2849, %v2728
      %v2854 = vsel %vm1166, %v2850, 0.0
      %2855 = vadd.xlane.f32.xlu0 %v2854
      %v2856 = vpop.xlane.xlu0 %2855
      %v2857 = vsel %vm1166, %v2851, 0.0
      %2858 = vadd.xlane.f32.xlu0 %v2857
      %v2859 = vpop.xlane.xlu0 %2858
      %v2860 = vsel %vm1166, %v2852, 0.0
      %2861 = vadd.xlane.f32.xlu0 %v2860
      %v2862 = vpop.xlane.xlu0 %2861
      %v2863 = vsel %vm1166, %v2853, 0.0
      %2864 = vadd.xlane.f32.xlu0 %v2863
      %v2865 = vpop.xlane.xlu0 %2864
      %v2866 = vld [vmem:[#allocation3 + $0xe0] sm:$0xff]
      %v2867 = vld [vmem:[#allocation3 + $0xe8] sm:$0xff]
      %v2868 = vld [vmem:[#allocation3 + $0xf0] sm:$0xff]
      %v2869 = vld [vmem:[#allocation3 + $0xf8] sm:$0xff]
      %v2870 = vmul.f32 %v2866, %v2728
      %v2871 = vmul.f32 %v2867, %v2728
      %v2872 = vmul.f32 %v2868, %v2728
      %v2873 = vmul.f32 %v2869, %v2728
      %v2874 = vsel %vm1166, %v2870, 0.0
      %2875 = vadd.xlane.f32.xlu0 %v2874
      %v2876 = vpop.xlane.xlu0 %2875
      %v2877 = vsel %vm1166, %v2871, 0.0
      %2878 = vadd.xlane.f32.xlu0 %v2877
      %v2879 = vpop.xlane.xlu0 %2878
      %v2880 = vsel %vm1166, %v2872, 0.0
      %2881 = vadd.xlane.f32.xlu0 %v2880
      %v2882 = vpop.xlane.xlu0 %2881
      %v2883 = vsel %vm1166, %v2873, 0.0
      %2884 = vadd.xlane.f32.xlu0 %v2883
      %v2885 = vpop.xlane.xlu0 %2884
      %vm2886 = vcmask 7168
      %v2887 = vsel %vm2886, %v2736, %v2756
      %v2888 = vsel %vm2886, %v2739, %v2759
      %v2889 = vsel %vm2886, %v2742, %v2762
      %v2890 = vsel %vm2886, %v2745, %v2765
      %vm2891 = vcmask 15360
      %v2892 = vsel %vm2891, %v2887, %v2776
      %v2893 = vsel %vm2891, %v2888, %v2779
      %v2894 = vsel %vm2891, %v2889, %v2782
      %v2895 = vsel %vm2891, %v2890, %v2785
      %vm2896 = vcmask 23552
      %v2897 = vsel %vm2896, %v2892, %v2796
      %v2898 = vsel %vm2896, %v2893, %v2799
      %v2899 = vsel %vm2896, %v2894, %v2802
      %v2900 = vsel %vm2896, %v2895, %v2805
      %v2901 = vsel %vm347, %v2897, %v2816
      %v2902 = vsel %vm347, %v2898, %v2819
      %v2903 = vsel %vm347, %v2899, %v2822
      %v2904 = vsel %vm347, %v2900, %v2825
      %vm2905 = vcmask 39936
      %v2906 = vsel %vm2905, %v2901, %v2836
      %v2907 = vsel %vm2905, %v2902, %v2839
      %v2908 = vsel %vm2905, %v2903, %v2842
      %v2909 = vsel %vm2905, %v2904, %v2845
      %vm2910 = vcmask 48128
      %v2911 = vsel %vm2910, %v2906, %v2856
      %v2912 = vsel %vm2910, %v2907, %v2859
      %v2913 = vsel %vm2910, %v2908, %v2862
      %v2914 = vsel %vm2910, %v2909, %v2865
      %vm2915 = vcmask 56320
      %v2916 = vsel %vm2915, %v2911, %v2876
      %v2917 = vsel %vm2915, %v2912, %v2879
      %v2918 = vsel %vm2915, %v2913, %v2882
      %v2919 = vsel %vm2915, %v2914, %v2885
      %v2920 = vld [vmem:[#allocation4] sm:$0x1]
      %v2922 = vlaneseq
      %v2923 = vshrl.u32 %v2922, 7
      %v2924 = vsub.s32 0, %v2923
      %v2925 = vrot.slane %v2920, %v2924
      %2926 = vset.pattern.permute.xlu0 0
      %2927 = vperm.xlu0 %2926, %v2925
      %v2928 = vpop.permute.xlu0 %2927
      %v2930 = vadd.f32 %v2916, %v2928
      %v2931 = vadd.f32 %v2917, %v2928
      %v2932 = vadd.f32 %v2918, %v2928
      %v2933 = vadd.f32 %v2919, %v2928
      %v2934 = vmax.f32 %v2930, 0.0
      %v2935 = vmax.f32 %v2931, 0.0
      %v2936 = vmax.f32 %v2932, 0.0
      %v2937 = vmax.f32 %v2933, 0.0
      %vm2938 = vcmask 64512
      %2939 = vst.msk [vmem:[%s288] sm:$0xff] %vm2938, %v2934
      %2940 = vst.msk [vmem:[%s288 + $0x8] sm:$0xff] %vm2938, %v2935
      %2941 = vst.msk [vmem:[%s288 + $0x10] sm:$0xff] %vm2938, %v2936
      %2942 = vst.msk [vmem:[%s288 + $0x18] sm:$0xff] %vm2938, %v2937
      %s2943 = smul.u32 4, %s21
      %p2944 = scmp.lt.s32.totalorder %s2943, 7
      %s2945 = scalar_select %p2944, %s2943, 7
      %s2946 = smul.addr %s2945, 8
      %s2947 = scalar_lea.vmem %s6, %s2946
      %s2948 = smul.u32 4, %s21
      %p2949 = scmp.lt.s32.totalorder %s2948, 7
      %s2950 = scalar_select %p2949, %s2948, 7
      %s2951 = smul.addr %s2950, 8
      %s2952 = scalar_lea.vmem %s7, %s2951
      // Predicated region
      $region45: #{long_rnn_forward.1} parent=43 // pred_check
        %p2953 = pneg %p170
      $region46: #{long_rnn_forward.1} parent=43 // pred_check_branch
        %2955 = sbr.rel (%p2953) target = $region48
      $region47: #{long_rnn_forward.1} parent=43 // pred_region
        %s2956 = smul.u32 4, %s21
      $region48: #{long_rnn_forward.1} parent=43 // pred_fallthru
        _
      // Predicated region
      $region49: #{long_rnn_forward.1} parent=43 // pred_check
        %p2957 = pneg %p196
      $region50: #{long_rnn_forward.1} parent=43 // pred_check_branch
        %2959 = sbr.rel (%p2957) target = $region52
      $region51: #{long_rnn_forward.1} parent=43 // pred_region
        %s2960 = smul.u32 4, %s21
      $region52: #{long_rnn_forward.1} parent=43 // pred_fallthru
        _
    $region44: #{long_rnn_forward.1} parent=5 // pred_fallthru
      _
    %p2961 = scmp.le.s32.totalorder 2, %s16
    // Predicated region
    $region53: #{long_rnn_forward.1} parent=5 // pred_check
      %p2962 = pneg %p2961
    $region54: #{long_rnn_forward.1} parent=5 // pred_check_branch
      %2964 = sbr.rel (%p2962) target = $region56
    $region55: #{long_rnn_forward.1} parent=5 // pred_region
      %s2965 = ssub.s32 %s16, 2
      // Predicated region
      $region57: #{long_rnn_forward.1} parent=55 // pred_check
        %p2966 = pneg %p176
      $region58: #{long_rnn_forward.1} parent=55 // pred_check_branch
        %2968 = sbr.rel (%p2966) target = $region60
      $region59: #{long_rnn_forward.1} parent=55 // pred_region
        %s2969 = smul.u32 4, %s22
        %p2970 = scmp.lt.s32.totalorder %s2969, 7
        %s2971 = scalar_select %p2970, %s2969, 7
        %s2972 = smul.addr %s2971, 8
        %s2973 = scalar_lea.vmem %s6, %s2972
      $region60: #{long_rnn_forward.1} parent=55 // pred_fallthru
        _
      // Predicated region
      $region61: #{long_rnn_forward.1} parent=55 // pred_check
        %p2974 = pneg %p202
      $region62: #{long_rnn_forward.1} parent=55 // pred_check_branch
        %2976 = sbr.rel (%p2974) target = $region64
      $region63: #{long_rnn_forward.1} parent=55 // pred_region
        %s2977 = smul.u32 4, %s22
        %p2978 = scmp.lt.s32.totalorder %s2977, 7
        %s2979 = scalar_select %p2978, %s2977, 7
        %s2980 = smul.addr %s2979, 8
        %s2981 = scalar_lea.vmem %s7, %s2980
      $region64: #{long_rnn_forward.1} parent=55 // pred_fallthru
        _
    $region56: #{long_rnn_forward.1} parent=5 // pred_fallthru
      _
  $region6: #{long_rnn_forward.1} parent=0 // loop_footer
    %s20 = sadd.s32 1, %s16
  $region7: #{long_rnn_forward.1} parent=0 // loop_footer_branch
    %15 = sbr.rel target = $region3
  $region8: #{long_rnn_forward.1} parent=0 // loop_exit
    _

</llo_original>
